<compile_context>
chip_gen: v7x
topology: tpu7x:2x2x1
jax: 0.10.0
libtpu: 0.0.40
codegen_flags: <defaults>
</compile_context>

<pallas_src>
import functools

import jax
import jax.numpy as jnp
from jax import lax
from jax.experimental import pallas as pl
from jax.experimental.pallas import tpu as pltpu


THETA_PAD = 128   # lane-padded width of the (2x3)=6 theta vector


# ----------------------------------------------------------------------------
# Kernel 1: K-tiled patch-embedding matmul (bf16 operands, f32 accumulation)
# ----------------------------------------------------------------------------

def patch_embed_kernel(patch_ref, w_pe_ref, emb_ref):
    @pl.when(pl.program_id(0) == 0)
    def _init():
        emb_ref[...] = jnp.zeros_like(emb_ref)
    emb_ref[...] += jnp.dot(patch_ref[...], w_pe_ref[...],
                            preferred_element_type=jnp.float32)


# ----------------------------------------------------------------------------
# Kernel 2: fc_loc head (one big matmul + small MLP) -> theta (+ identity)
# ----------------------------------------------------------------------------

def fc_head_kernel(emb_ref, w1_ref, b1_ref, w2_ref, b2_ref, w3_ref, b3_ref,
                   w4_ref, b4_ref, ident_ref, theta_ref):
    # cls/pos/b_pe contributions are pre-folded into b1_ref (b1_eff) outside.
    tok = emb_ref[...].astype(jnp.bfloat16)                    # (B, (T-1)*E)
    h = jnp.dot(tok, w1_ref[...],
                preferred_element_type=jnp.float32) + b1_ref[...]   # (B, H1)
    h = jnp.maximum(h, 0.0)                                          # ReLU
    h = jnp.dot(h, w2_ref[...], preferred_element_type=jnp.float32) + b2_ref[...]
    h = jnp.maximum(h, 0.0)                                          # ReLU
    h = jnp.dot(h, w3_ref[...], preferred_element_type=jnp.float32) + b3_ref[...]
    h = 1.0 / (1.0 + jnp.exp(-h))                                    # exact Sigmoid
    th = jnp.dot(h, w4_ref[...], preferred_element_type=jnp.float32) + b4_ref[...]
    theta_ref[...] = th + ident_ref[...]        # dtheta + identity (lane-padded)


# ----------------------------------------------------------------------------
# Kernel 3: affine_grid + bicubic grid_sample (border padding, align_corners)
# ----------------------------------------------------------------------------

_CUBIC_A = -0.75   # PyTorch bicubic convolution constant


def _cubic_w_inner(t):   # weight for |t| <= 1
    return ((_CUBIC_A + 2.0) * t - (_CUBIC_A + 3.0)) * t * t + 1.0


def _cubic_w_outer(t):   # weight for 1 < |t| < 2
    return ((_CUBIC_A * t - 5.0 * _CUBIC_A) * t + 8.0 * _CUBIC_A) * t - 4.0 * _CUBIC_A


def warp_kernel(theta_ref, xs_ref, ys_ref, img_ref, out_ref, *, H, W, C):
    """One (batch element, output-pixel tile) of the bicubic warp."""
    b = pl.program_id(0)
    t00 = theta_ref[b, 0]
    t01 = theta_ref[b, 1]
    t02 = theta_ref[b, 2]
    t10 = theta_ref[b, 3]
    t11 = theta_ref[b, 4]
    t12 = theta_ref[b, 5]

    xs = xs_ref[...]                      # (1, To) normalized output-x coords
    ys = ys_ref[...]                      # (1, To) normalized output-y coords
    To = xs.shape[1]

    # affine_grid: sampling location in normalized coords.
    x_s = t00 * xs + t01 * ys + t02
    y_s = t10 * xs + t11 * ys + t12
    # grid_sample unnormalize, align_corners=True.
    ix = (x_s + 1.0) * (0.5 * (W - 1))
    iy = (y_s + 1.0) * (0.5 * (H - 1))
    ix_f = jnp.floor(ix)
    iy_f = jnp.floor(iy)
    tx = ix - ix_f
    ty = iy - iy_f

    wx = [_cubic_w_outer(tx + 1.0), _cubic_w_inner(tx),
          _cubic_w_inner(1.0 - tx), _cubic_w_outer(2.0 - tx)]
    wy = [_cubic_w_outer(ty + 1.0), _cubic_w_inner(ty),
          _cubic_w_inner(1.0 - ty), _cubic_w_outer(2.0 - ty)]

    # Separable interpolation matrices.  'border' padding == clamping each tap;
    # clamped taps accumulate their weight on the border row/column, so
    #   out[c, p] = sum_r sum_q img[c, r, q] * RY[r, p] * CX[q, p]   is exact.
    # Construction stays f32 (v5e has no bf16 VALU); only MXU operands are bf16.
    rows = lax.broadcasted_iota(jnp.int32, (H, To), 0)
    cols = lax.broadcasted_iota(jnp.int32, (W, To), 0)
    ry = jnp.zeros((H, To), jnp.float32)
    cx = jnp.zeros((W, To), jnp.float32)
    for d in range(4):
        py = jnp.clip(iy_f + (d - 1.0), 0.0, H - 1.0).astype(jnp.int32)   # (1, To)
        px = jnp.clip(ix_f + (d - 1.0), 0.0, W - 1.0).astype(jnp.int32)   # (1, To)
        ry = ry + jnp.where(rows == py, wy[d], 0.0)
        cx = cx + jnp.where(cols == px, wx[d], 0.0)

    # ONE MXU matmul per tile: horizontal interpolation of all C*H rows.
    # img_ref is already bf16 (cast hoisted to the wrapper, done once per stage).
    img = img_ref[0]                                            # (C*H, W) bf16
    t1 = jnp.dot(img, cx.astype(jnp.bfloat16),
                 preferred_element_type=jnp.float32)            # (C*H, To) f32

    # Vertical interpolation: weighted sublane reduction over H, per channel.
    # Store each channel row directly (no concat temp; lane-dense stores).
    for c in range(C):
        t1c = t1[c * H:(c + 1) * H, :]                          # (H, To)
        out_ref[0, c:c + 1, :] = jnp.sum(
            t1c * ry, axis=0, keepdims=True).astype(out_ref.dtype)


# ----------------------------------------------------------------------------
# Wrappers (glue: reshapes / parameter plumbing stay in plain JAX)
# ----------------------------------------------------------------------------

def extract_patches(x, P):
    """(B, Cin, H, W) -> (B*Np, Cin*P*P); rows ordered batch-major then patch.
    Patch flattening order (Cin, P, P) matches Conv2d(kernel=P, stride=P)."""
    B, Cin, H, W = x.shape
    hp, wp = H // P, W // P
    x = x.reshape(B, Cin, hp, P, wp, P)
    x = jnp.transpose(x, (0, 2, 4, 1, 3, 5))          # (B, hp, wp, Cin, P, P)
    return x.reshape(B * hp * wp, Cin * P * P)


def prepare_stage_params(params, *, E):
    """One-time per-stage preparation (call once, outside the hot forward):
    fold all input-independent localizer work (cls token, positional
    embeddings, patch-embed bias) into an effective first-layer bias, and
    pre-cast the two bandwidth-dominant weights to bf16."""
    w1 = params["w1"]                              # (T*E, H1) f32
    w1_cls = w1[:E, :]                             # rows hit by the cls token
    w1_body = w1[E:, :]                            # rows hit by patch tokens
    tok_const = params["pos"][1:, :] + params["b_pe"]          # (T-1, E)
    b1_eff = (params["b1"]
              + jnp.dot(params["cls"] + params["pos"][0:1, :], w1_cls)
              + jnp.dot(tok_const.reshape(1, -1), w1_body))
    return {
        "w_pe": params["w_pe"].astype(jnp.bfloat16),     # streamed weight -> bf16
        "w1_body": w1_body.astype(jnp.bfloat16),         # big fc weight   -> bf16
        "b1_eff": b1_eff.astype(jnp.float32),
        "w2": params["w2"], "b2": params["b2"],
        "w3": params["w3"], "b3": params["b3"],
        "w4p": params["w4p"], "b4p": params["b4p"],
    }


def stn_theta(prep, img_input_bf16, identp, *, P, E, T, tk=1024):
    """Per-stage theta head: patch-embed matmul + fused fc_loc head + identity."""
    B = img_input_bf16.shape[0]
    n_patch = T - 1
    patches = extract_patches(img_input_bf16, P)          # (B*Np, Dp) bf16
    NpB, Dp = patches.shape
    tk = min(tk, Dp)
    assert Dp % tk == 0, "flattened patch dim must divide the K tile"
    nk = Dp // tk

    # Kernel 1: K-tiled patch embedding, f32 accumulation in the resident output.
    # NOTE(v7x): if this kernel shows up in a profile, split the E (N) dim over a
    # leading "parallel" grid axis so both TensorCores stream disjoint w_pe halves.
    emb = pl.pallas_call(
        patch_embed_kernel,
        out_shape=jax.ShapeDtypeStruct((NpB, E), jnp.float32),
        grid=(nk,),
        in_specs=[
            pl.BlockSpec((NpB, tk), lambda k: (0, k)),    # patches (K-tiled)
            pl.BlockSpec((tk, E), lambda k: (k, 0)),      # w_pe    (K-tiled, bf16)
        ],
        out_specs=pl.BlockSpec((NpB, E), lambda k: (0, 0)),
        compiler_params=pltpu.CompilerParams(
            dimension_semantics=("arbitrary",)),          # K axis is a reduction
    )(patches, prep["w_pe"])

    # (B*Np, E) -> (B, (T-1)*E): rows are batch-major so this is a free
    # row-major view; it feeds ONE big matmul in the head (no per-token dots).
    emb_flat = emb.reshape(B, n_patch * E)

    # Kernel 2: fc_loc head, single grid point, everything resident in VMEM.
    theta_pad = pl.pallas_call(
        fc_head_kernel,
        out_shape=jax.ShapeDtypeStruct((B, THETA_PAD), jnp.float32),
    )(emb_flat, prep["w1_body"], prep["b1_eff"], prep["w2"], prep["b2"],
      prep["w3"], prep["b3"], prep["w4p"], prep["b4p"], identp)

    # TODO(synk): kornia VisionTransformer's 12-layer self-attention encoder has
    # no compact Pallas equivalent here; only the patch-embed front-end is used.
    return theta_pad[:, :6]


def grid_sample_warp(theta, img_bchw, xs_norm, ys_norm, *, tile_out=1024):
    """theta: (B, 6) f32; img: (B, C, H, W) (any float dtype) -> (B,C,H,W) bf16."""
    B, C, H, W = img_bchw.shape
    npix = H * W
    To = min(tile_out, npix)
    assert npix % To == 0
    # bf16 cast hoisted OUT of the kernel: done once per stage here (and it is a
    # no-op when the image stream is already bf16), instead of once per pixel
    # tile inside the kernel.  Also halves the image HBM->VMEM DMA.
    img_rows = img_bchw.reshape(B, C * H, W).astype(jnp.bfloat16)
    kern = functools.partial(warp_kernel, H=H, W=W, C=C)
    out = pl.pallas_call(
        kern,
        out_shape=jax.ShapeDtypeStruct((B, C, npix), jnp.bfloat16),
        grid=(B, npix // To),
        in_specs=[
            pl.BlockSpec(memory_space=pltpu.MemorySpace.SMEM),     # theta scalars
            pl.BlockSpec((1, To), lambda b, t: (0, t)),            # xs_norm tile
            pl.BlockSpec((1, To), lambda b, t: (0, t)),            # ys_norm tile
            pl.BlockSpec((1, C * H, W), lambda b, t: (b, 0, 0)),   # image rows bf16
        ],
        out_specs=pl.BlockSpec((1, C, To), lambda b, t: (b, 0, t)),
        compiler_params=pltpu.CompilerParams(
            # Batch elements and output-pixel tiles are independent -> both
            # "parallel" (lets v7x shard across its 2 TensorCores).  Per-tile
            # temporaries are MiB-scale at 256x256, so the default scoped-VMEM
            # limit is fine on v5e/v6e/v7x; no vmem_limit override needed.
            dimension_semantics=("parallel", "parallel")),
    )(theta.astype(jnp.float32), xs_norm, ys_norm, img_rows)
    return out.reshape(B, C, H, W)


def compose_thetas(total_theta, dtheta):
    """StackedSTN.compose_transformations, batched (tiny 3x3 matmuls; glue)."""
    B = total_theta.shape[0]
    t1 = total_theta.reshape(B, 2, 3)
    t2 = dtheta.reshape(B, 2, 3)
    bottom = jnp.broadcast_to(
        jnp.array([[[0.0, 0.0, 1.0]]], jnp.float32), (B, 1, 3))
    t1h = jnp.concatenate([t1, bottom], axis=1)
    t2h = jnp.concatenate([t2, bottom], axis=1)
    comp = jnp.einsum("bij,bjk->bik", t2h, t1h)
    return comp[:, :2, :].reshape(B, 6)


def stacked_stn_forward(prep_list, img_A, img_B, src, *, P, E, T,
                        tile_out=1024, tk=1024):
    B, C, H, W = src.shape
    npix = H * W

    # identity theta, zero-padded to the lane-padded theta width
    identp = jnp.zeros((1, THETA_PAD), jnp.float32)
    identp = identp.at[0, :6].set(
        jnp.array([1.0, 0.0, 0.0, 0.0, 1.0, 0.0], jnp.float32))

    # Base sampling grid of affine_grid(align_corners=True): constant across
    # batch elements and across all STN stages -> computed once here and
    # streamed into the warp kernel as lane-dense (1, To) tiles.
    pix = jnp.arange(npix, dtype=jnp.int32)
    iy_o = (pix // W).astype(jnp.float32)
    ix_o = (pix % W).astype(jnp.float32)
    xs_norm = (ix_o * (2.0 / (W - 1)) - 1.0).reshape(1, npix)
    ys_norm = (iy_o * (2.0 / (H - 1)) - 1.0).reshape(1, npix)

    # Image stream stays bf16 end-to-end across stages (no per-stage f32 copies).
    img_A_bf = img_A.astype(jnp.bfloat16)
    img_B_bf = img_B.astype(jnp.bfloat16)
    current_src = src.astype(jnp.bfloat16)

    total_theta = None
    for i, prep in enumerate(prep_list):
        other = img_B_bf if i == 0 else current_src
        img_input = jnp.concatenate([img_A_bf, other], axis=1)   # (B, 2C, H, W)
        dtheta = stn_theta(prep, img_input, identp, P=P, E=E, T=T, tk=tk)
        if total_theta is None:
            total_theta = dtheta
        else:
            total_theta = compose_thetas(total_theta, dtheta)
        # As in the reference, each stage re-warps current_src with ITS dtheta
        # (total_theta is only composed and returned).
        current_src = grid_sample_warp(dtheta, current_src, xs_norm, ys_norm,
                                       tile_out=tile_out)
    # Match the reference's `.type(HalfTensor)` on the returned warped images.
    return current_src.astype(jnp.float16), total_theta


# ----------------------------------------------------------------------------
# Deterministic parameter init (shapes scaled down from the reference module)
# ----------------------------------------------------------------------------

def init_net_params(key, *, C2, P, E, T, H1, H2, H3):
    Dp = C2 * P * P
    ks = jax.random.split(key, 10)
    s = 0.02
    w4 = jax.random.normal(ks[9], (H3, 6), jnp.float32) * s
    w4p = jnp.zeros((H3, THETA_PAD), jnp.float32).at[:, :6].set(w4)
    return {
        "w_pe": jax.random.normal(ks[0], (Dp, E), jnp.float32) * s,
        "b_pe": jax.random.normal(ks[1], (1, E), jnp.float32) * s,
        "cls": jax.random.normal(ks[2], (1, E), jnp.float32) * s,
        "pos": jax.random.normal(ks[3], (T, E), jnp.float32) * s,
        "w1": jax.random.normal(ks[4], (T * E, H1), jnp.float32) * s,
        "b1": jax.random.normal(ks[5], (1, H1), jnp.float32) * s,
        "w2": jax.random.normal(ks[6], (H1, H2), jnp.float32) * s,
        "b2": jnp.zeros((1, H2), jnp.float32),   # fc_loc[2].bias.data.zero_()
        "w3": jax.random.normal(ks[7], (H2, H3), jnp.float32) * s,
        "b3": jax.random.normal(ks[8], (1, H3), jnp.float32) * s,
        # final Linear(H3, 6), zero-padded to 128 output lanes (cols >= 6 are 0)
        "w4p": w4p,
        "b4p": jnp.zeros((1, THETA_PAD), jnp.float32),
    }


if __name__ == "__main__":
    # Small shapes consistent with the module (scaled down from 256x256 / patch
    # 64 / embed 768 / fc 1024-512-256), keeping every matmul width a multiple
    # of 128 so stores stay lane-dense.
    B, C, H, W = 2, 2, 32, 32
    P = 16                        # patch size -> Np = 4 patches, T = 5 tokens
    E = 128                       # embed dim (stand-in for 768)
    T = (H // P) * (W // P) + 1
    H1, H2, H3 = 256, 128, 128    # stand-ins for 1024 / 512 / 256
    NUM_STNS = 3

    key = jax.random.PRNGKey(0)
    k_params, k_a, k_b, k_s = jax.random.split(key, 4)
    params_list = [
        init_net_params(k, C2=2 * C, P=P, E=E, T=T, H1=H1, H2=H2, H3=H3)
        for k in jax.random.split(k_params, NUM_STNS)
    ]
    # One-time constant folding / bf16 casts (outside the hot forward).
    prep_list = [prepare_stage_params(p, E=E) for p in params_list]

    img_A = jax.random.normal(k_a, (B, C, H, W), jnp.float32)
    img_B = jax.random.normal(k_b, (B, C, H, W), jnp.float32)
    src = jax.random.normal(k_s, (B, C, H, W), jnp.float32)

    fwd = jax.jit(functools.partial(stacked_stn_forward, P=P, E=E, T=T))
    warped, total_theta = fwd(prep_list, img_A, img_B, src)
    jax.block_until_ready((warped, total_theta))

    assert warped.shape == (B, C, H, W) and warped.dtype == jnp.float16
    assert total_theta.shape == (B, 6) and total_theta.dtype == jnp.float32
    print("KERNEL_OK")
</pallas_src>

<mosaic_0001>
module attributes {stable_mosaic.version = 11 : i64} {
  func.func @fc_head_kernel(%arg0: memref<2x512xf32, #tpu.memory_space<vmem>>, %arg1: memref<512x256xbf16, #tpu.memory_space<vmem>>, %arg2: memref<1x256xf32, #tpu.memory_space<vmem>>, %arg3: memref<256x128xf32, #tpu.memory_space<vmem>>, %arg4: memref<1x128xf32, #tpu.memory_space<vmem>>, %arg5: memref<128x128xf32, #tpu.memory_space<vmem>>, %arg6: memref<1x128xf32, #tpu.memory_space<vmem>>, %arg7: memref<128x128xf32, #tpu.memory_space<vmem>>, %arg8: memref<1x128xf32, #tpu.memory_space<vmem>>, %arg9: memref<1x128xf32, #tpu.memory_space<vmem>>, %arg10: memref<2x128xf32, #tpu.memory_space<vmem>>) attributes {dimension_semantics = [], scalar_prefetch = 0 : i64, scratch_operands = 0 : i64, tpu.core_type = #tpu.core_type<tc>} {
    %c0 = arith.constant 0 : index
    %c0_0 = arith.constant 0 : index
    %0 = vector.load %arg0[%c0, %c0_0] : memref<2x512xf32, #tpu.memory_space<vmem>>, vector<2x512xf32>
    %1 = arith.truncf %0 : vector<2x512xf32> to vector<2x512xbf16>
    %c0_1 = arith.constant 0 : index
    %c0_2 = arith.constant 0 : index
    %2 = vector.load %arg1[%c0_1, %c0_2] : memref<512x256xbf16, #tpu.memory_space<vmem>>, vector<512x256xbf16>
    %cst = arith.constant dense<0.000000e+00> : vector<2x256xf32>
    %3 = tpu.matmul %1, %2, %cst {dimension_numbers = #tpu.dot_dimension_numbers<[1], [0], [0], [1], [0, 0, 1, 1], [], []>} : vector<2x512xbf16>, vector<512x256xbf16>, vector<2x256xf32> -> vector<2x256xf32>
    %c0_3 = arith.constant 0 : index
    %c0_4 = arith.constant 0 : index
    %4 = vector.load %arg2[%c0_3, %c0_4] : memref<1x256xf32, #tpu.memory_space<vmem>>, vector<1x256xf32>
    %5 = vector.broadcast %4 : vector<1x256xf32> to vector<2x256xf32>
    %6 = arith.addf %3, %5 : vector<2x256xf32>
    %cst_5 = arith.constant 0.000000e+00 : f32
    %7 = vector.broadcast %cst_5 : f32 to vector<2x256xf32>
    %8 = arith.maximumf %6, %7 : vector<2x256xf32>
    %c0_6 = arith.constant 0 : index
    %c0_7 = arith.constant 0 : index
    %9 = vector.load %arg3[%c0_6, %c0_7] : memref<256x128xf32, #tpu.memory_space<vmem>>, vector<256x128xf32>
    %cst_8 = arith.constant dense<0.000000e+00> : vector<2x128xf32>
    %10 = tpu.matmul %8, %9, %cst_8 {dimension_numbers = #tpu.dot_dimension_numbers<[1], [0], [0], [1], [0, 0, 1, 1], [], []>} : vector<2x256xf32>, vector<256x128xf32>, vector<2x128xf32> -> vector<2x128xf32>
    %c0_9 = arith.constant 0 : index
    %c0_10 = arith.constant 0 : index
    %11 = vector.load %arg4[%c0_9, %c0_10] : memref<1x128xf32, #tpu.memory_space<vmem>>, vector<1x128xf32>
    %12 = vector.broadcast %11 : vector<1x128xf32> to vector<2x128xf32>
    %13 = arith.addf %10, %12 : vector<2x128xf32>
    %cst_11 = arith.constant 0.000000e+00 : f32
    %14 = vector.broadcast %cst_11 : f32 to vector<2x128xf32>
    %15 = arith.maximumf %13, %14 : vector<2x128xf32>
    %c0_12 = arith.constant 0 : index
    %c0_13 = arith.constant 0 : index
    %16 = vector.load %arg5[%c0_12, %c0_13] : memref<128x128xf32, #tpu.memory_space<vmem>>, vector<128x128xf32>
    %cst_14 = arith.constant dense<0.000000e+00> : vector<2x128xf32>
    %17 = tpu.matmul %15, %16, %cst_14 {dimension_numbers = #tpu.dot_dimension_numbers<[1], [0], [0], [1], [0, 0, 1, 1], [], []>} : vector<2x128xf32>, vector<128x128xf32>, vector<2x128xf32> -> vector<2x128xf32>
    %c0_15 = arith.constant 0 : index
    %c0_16 = arith.constant 0 : index
    %18 = vector.load %arg6[%c0_15, %c0_16] : memref<1x128xf32, #tpu.memory_space<vmem>>, vector<1x128xf32>
    %19 = vector.broadcast %18 : vector<1x128xf32> to vector<2x128xf32>
    %20 = arith.addf %17, %19 : vector<2x128xf32>
    %cst_17 = arith.constant 0.000000e+00 : f32
    %21 = vector.broadcast %cst_17 : f32 to vector<2x128xf32>
    %22 = arith.subf %21, %20 : vector<2x128xf32>
    %23 = math.exp %22 : vector<2x128xf32>
    %cst_18 = arith.constant 1.000000e+00 : f32
    %24 = vector.broadcast %cst_18 : f32 to vector<2x128xf32>
    %25 = arith.addf %24, %23 : vector<2x128xf32>
    %cst_19 = arith.constant 1.000000e+00 : f32
    %26 = vector.broadcast %cst_19 : f32 to vector<2x128xf32>
    %27 = arith.divf %26, %25 : vector<2x128xf32>
    %c0_20 = arith.constant 0 : index
    %c0_21 = arith.constant 0 : index
    %28 = vector.load %arg7[%c0_20, %c0_21] : memref<128x128xf32, #tpu.memory_space<vmem>>, vector<128x128xf32>
    %cst_22 = arith.constant dense<0.000000e+00> : vector<2x128xf32>
    %29 = tpu.matmul %27, %28, %cst_22 {dimension_numbers = #tpu.dot_dimension_numbers<[1], [0], [0], [1], [0, 0, 1, 1], [], []>} : vector<2x128xf32>, vector<128x128xf32>, vector<2x128xf32> -> vector<2x128xf32>
    %c0_23 = arith.constant 0 : index
    %c0_24 = arith.constant 0 : index
    %30 = vector.load %arg8[%c0_23, %c0_24] : memref<1x128xf32, #tpu.memory_space<vmem>>, vector<1x128xf32>
    %31 = vector.broadcast %30 : vector<1x128xf32> to vector<2x128xf32>
    %32 = arith.addf %29, %31 : vector<2x128xf32>
    %c0_25 = arith.constant 0 : index
    %c0_26 = arith.constant 0 : index
    %33 = vector.load %arg9[%c0_25, %c0_26] : memref<1x128xf32, #tpu.memory_space<vmem>>, vector<1x128xf32>
    %34 = vector.broadcast %33 : vector<1x128xf32> to vector<2x128xf32>
    %35 = arith.addf %32, %34 : vector<2x128xf32>
    %c0_27 = arith.constant 0 : index
    %c0_28 = arith.constant 0 : index
    %36 = vector.load %arg10[%c0_27, %c0_28] : memref<2x128xf32, #tpu.memory_space<vmem>>, vector<2x128xf32>
    tpu.vector_store %arg10[%c0_27, %c0_28], %35 {strides = array<i32>} : memref<2x128xf32, #tpu.memory_space<vmem>>, vector<2x128xf32>,
    return
  }
}

module attributes {stable_mosaic.version = 11 : i64} {
  func.func @patch_embed_kernel(%arg0: i32, %arg1: memref<8x1024xbf16, #tpu.memory_space<vmem>>, %arg2: memref<1024x128xbf16, #tpu.memory_space<vmem>>, %arg3: memref<8x128xf32, #tpu.memory_space<vmem>>) attributes {dimension_semantics = [#tpu.dimension_semantics<arbitrary>], iteration_bounds = array<i64: 1>, scalar_prefetch = 0 : i64, scratch_operands = 0 : i64, tpu.core_type = #tpu.core_type<tc>, window_params = [{transform_indices = @transform_0, window_bounds = array<i64: 8, 1024>}, {transform_indices = @transform_1, window_bounds = array<i64: 1024, 128>}, {pipeline_mode = #tpu.pipeline_mode<synchronous>, transform_indices = @transform_2, window_bounds = array<i64: 8, 128>}]} {
    %c0_i32 = arith.constant 0 : i32
    %0 = arith.cmpi eq, %arg0, %c0_i32 : i32
    %1 = arith.extui %0 : i1 to i32
    %c0_i32_0 = arith.constant 0 : i32
    %2 = arith.cmpi ne, %1, %c0_i32_0 : i32
    scf.if %2 {
      %cst_8 = arith.constant 0.000000e+00 : f32
      %9 = vector.broadcast %cst_8 : f32 to vector<8x128xf32>
      %c0_9 = arith.constant 0 : index
      %c0_10 = arith.constant 0 : index
      %10 = vector.load %arg3[%c0_9, %c0_10] : memref<8x128xf32, #tpu.memory_space<vmem>>, vector<8x128xf32>
      tpu.vector_store %arg3[%c0_9, %c0_10], %9 {strides = array<i32>} : memref<8x128xf32, #tpu.memory_space<vmem>>, vector<8x128xf32>,
    } else {
    }
    %c0 = arith.constant 0 : index
    %c0_1 = arith.constant 0 : index
    %3 = vector.load %arg3[%c0, %c0_1] : memref<8x128xf32, #tpu.memory_space<vmem>>, vector<8x128xf32>
    %c0_2 = arith.constant 0 : index
    %c0_3 = arith.constant 0 : index
    %4 = vector.load %arg1[%c0_2, %c0_3] : memref<8x1024xbf16, #tpu.memory_space<vmem>>, vector<8x1024xbf16>
    %c0_4 = arith.constant 0 : index
    %c0_5 = arith.constant 0 : index
    %5 = vector.load %arg2[%c0_4, %c0_5] : memref<1024x128xbf16, #tpu.memory_space<vmem>>, vector<1024x128xbf16>
    %cst = arith.constant dense<0.000000e+00> : vector<8x128xf32>
    %6 = tpu.matmul %4, %5, %cst {dimension_numbers = #tpu.dot_dimension_numbers<[1], [0], [0], [1], [0, 0, 1, 1], [], []>} : vector<8x1024xbf16>, vector<1024x128xbf16>, vector<8x128xf32> -> vector<8x128xf32>
    %7 = arith.addf %3, %6 : vector<8x128xf32>
    %c0_6 = arith.constant 0 : index
    %c0_7 = arith.constant 0 : index
    %8 = vector.load %arg3[%c0_6, %c0_7] : memref<8x128xf32, #tpu.memory_space<vmem>>, vector<8x128xf32>
    tpu.vector_store %arg3[%c0_6, %c0_7], %7 {strides = array<i32>} : memref<8x128xf32, #tpu.memory_space<vmem>>, vector<8x128xf32>,
    return
  }
  func.func @transform_0(%arg0: i32) -> (i32, i32) {
    %c0_i32 = arith.constant 0 : i32
    %c0_i32_0 = arith.constant 0 : i32
    return %c0_i32, %arg0 : i32, i32
  }
  func.func @transform_1(%arg0: i32) -> (i32, i32) {
    %c0_i32 = arith.constant 0 : i32
    %c0_i32_0 = arith.constant 0 : i32
    return %arg0, %c0_i32 : i32, i32
  }
  func.func @transform_2(%arg0: i32) -> (i32, i32) {
    %c0_i32 = arith.constant 0 : i32
    %c0_i32_0 = arith.constant 0 : i32
    %c0_i32_1 = arith.constant 0 : i32
    return %c0_i32, %c0_i32_0 : i32, i32
  }
}

module attributes {stable_mosaic.version = 11 : i64} {
  func.func @warp_kernel(%arg0: i32, %arg1: i32, %arg2: memref<2x6xf32, #tpu.memory_space<smem>>, %arg3: memref<1x1024xf32, #tpu.memory_space<vmem>>, %arg4: memref<1x1024xf32, #tpu.memory_space<vmem>>, %arg5: memref<1x64x32xbf16, #tpu.memory_space<vmem>>, %arg6: memref<1x2x1024xbf16, #tpu.memory_space<vmem>>) attributes {dimension_semantics = [#tpu.dimension_semantics<parallel>, #tpu.dimension_semantics<parallel>], iteration_bounds = array<i64: 2, 1>, scalar_prefetch = 0 : i64, scratch_operands = 0 : i64, tpu.core_type = #tpu.core_type<tc>, window_params = [{transform_indices = @transform_0, window_bounds = array<i64: 2, 6>}, {transform_indices = @transform_1, window_bounds = array<i64: 1, 1024>}, {transform_indices = @transform_2, window_bounds = array<i64: 1, 1024>}, {transform_indices = @transform_3, window_bounds = array<i64: 1, 64, 32>}, {transform_indices = @transform_4, window_bounds = array<i64: 1, 2, 1024>}]} {
    %0 = arith.index_cast %arg0 : i32 to index
    %c0 = arith.constant 0 : index
    %1 = memref.load %arg2[%0, %c0] : memref<2x6xf32, #tpu.memory_space<smem>>
    %2 = arith.index_cast %arg0 : i32 to index
    %c1 = arith.constant 1 : index
    %3 = memref.load %arg2[%2, %c1] : memref<2x6xf32, #tpu.memory_space<smem>>
    %4 = arith.index_cast %arg0 : i32 to index
    %c2 = arith.constant 2 : index
    %5 = memref.load %arg2[%4, %c2] : memref<2x6xf32, #tpu.memory_space<smem>>
    %6 = arith.index_cast %arg0 : i32 to index
    %c3 = arith.constant 3 : index
    %7 = memref.load %arg2[%6, %c3] : memref<2x6xf32, #tpu.memory_space<smem>>
    %8 = arith.index_cast %arg0 : i32 to index
    %c4 = arith.constant 4 : index
    %9 = memref.load %arg2[%8, %c4] : memref<2x6xf32, #tpu.memory_space<smem>>
    %10 = arith.index_cast %arg0 : i32 to index
    %c5 = arith.constant 5 : index
    %11 = memref.load %arg2[%10, %c5] : memref<2x6xf32, #tpu.memory_space<smem>>
    %c0_0 = arith.constant 0 : index
    %c0_1 = arith.constant 0 : index
    %12 = vector.load %arg3[%c0_0, %c0_1] : memref<1x1024xf32, #tpu.memory_space<vmem>>, vector<1x1024xf32>
    %c0_2 = arith.constant 0 : index
    %c0_3 = arith.constant 0 : index
    %13 = vector.load %arg4[%c0_2, %c0_3] : memref<1x1024xf32, #tpu.memory_space<vmem>>, vector<1x1024xf32>
    %14 = vector.broadcast %1 : f32 to vector<1x1024xf32>
    %15 = arith.mulf %14, %12 : vector<1x1024xf32>
    %16 = vector.broadcast %3 : f32 to vector<1x1024xf32>
    %17 = arith.mulf %16, %13 : vector<1x1024xf32>
    %18 = arith.addf %15, %17 : vector<1x1024xf32>
    %19 = vector.broadcast %5 : f32 to vector<1x1024xf32>
    %20 = arith.addf %18, %19 : vector<1x1024xf32>
    %21 = vector.broadcast %7 : f32 to vector<1x1024xf32>
    %22 = arith.mulf %21, %12 : vector<1x1024xf32>
    %23 = vector.broadcast %9 : f32 to vector<1x1024xf32>
    %24 = arith.mulf %23, %13 : vector<1x1024xf32>
    %25 = arith.addf %22, %24 : vector<1x1024xf32>
    %26 = vector.broadcast %11 : f32 to vector<1x1024xf32>
    %27 = arith.addf %25, %26 : vector<1x1024xf32>
    %cst = arith.constant 1.000000e+00 : f32
    %28 = vector.broadcast %cst : f32 to vector<1x1024xf32>
    %29 = arith.addf %20, %28 : vector<1x1024xf32>
    %cst_4 = arith.constant 1.550000e+01 : f32
    %30 = vector.broadcast %cst_4 : f32 to vector<1x1024xf32>
    %31 = arith.mulf %29, %30 : vector<1x1024xf32>
    %cst_5 = arith.constant 1.000000e+00 : f32
    %32 = vector.broadcast %cst_5 : f32 to vector<1x1024xf32>
    %33 = arith.addf %27, %32 : vector<1x1024xf32>
    %cst_6 = arith.constant 1.550000e+01 : f32
    %34 = vector.broadcast %cst_6 : f32 to vector<1x1024xf32>
    %35 = arith.mulf %33, %34 : vector<1x1024xf32>
    %36 = math.floor %31 : vector<1x1024xf32>
    %37 = math.floor %35 : vector<1x1024xf32>
    %38 = arith.subf %31, %36 : vector<1x1024xf32>
    %39 = arith.subf %35, %37 : vector<1x1024xf32>
    %cst_7 = arith.constant 1.000000e+00 : f32
    %40 = vector.broadcast %cst_7 : f32 to vector<1x1024xf32>
    %41 = arith.addf %38, %40 : vector<1x1024xf32>
    %cst_8 = arith.constant -7.500000e-01 : f32
    %42 = vector.broadcast %cst_8 : f32 to vector<1x1024xf32>
    %43 = arith.mulf %42, %41 : vector<1x1024xf32>
    %cst_9 = arith.constant -3.750000e+00 : f32
    %44 = vector.broadcast %cst_9 : f32 to vector<1x1024xf32>
    %45 = arith.subf %43, %44 : vector<1x1024xf32>
    %46 = arith.mulf %45, %41 : vector<1x1024xf32>
    %cst_10 = arith.constant -6.000000e+00 : f32
    %47 = vector.broadcast %cst_10 : f32 to vector<1x1024xf32>
    %48 = arith.addf %46, %47 : vector<1x1024xf32>
    %49 = arith.mulf %48, %41 : vector<1x1024xf32>
    %cst_11 = arith.constant -3.000000e+00 : f32
    %50 = vector.broadcast %cst_11 : f32 to vector<1x1024xf32>
    %51 = arith.subf %49, %50 : vector<1x1024xf32>
    %cst_12 = arith.constant 1.250000e+00 : f32
    %52 = vector.broadcast %cst_12 : f32 to vector<1x1024xf32>
    %53 = arith.mulf %52, %38 : vector<1x1024xf32>
    %cst_13 = arith.constant 2.250000e+00 : f32
    %54 = vector.broadcast %cst_13 : f32 to vector<1x1024xf32>
    %55 = arith.subf %53, %54 : vector<1x1024xf32>
    %56 = arith.mulf %55, %38 : vector<1x1024xf32>
    %57 = arith.mulf %56, %38 : vector<1x1024xf32>
    %cst_14 = arith.constant 1.000000e+00 : f32
    %58 = vector.broadcast %cst_14 : f32 to vector<1x1024xf32>
    %59 = arith.addf %57, %58 : vector<1x1024xf32>
    %cst_15 = arith.constant 1.000000e+00 : f32
    %60 = vector.broadcast %cst_15 : f32 to vector<1x1024xf32>
    %61 = arith.subf %60, %38 : vector<1x1024xf32>
    %cst_16 = arith.constant 1.250000e+00 : f32
    %62 = vector.broadcast %cst_16 : f32 to vector<1x1024xf32>
    %63 = arith.mulf %62, %61 : vector<1x1024xf32>
    %cst_17 = arith.constant 2.250000e+00 : f32
    %64 = vector.broadcast %cst_17 : f32 to vector<1x1024xf32>
    %65 = arith.subf %63, %64 : vector<1x1024xf32>
    %66 = arith.mulf %65, %61 : vector<1x1024xf32>
    %67 = arith.mulf %66, %61 : vector<1x1024xf32>
    %cst_18 = arith.constant 1.000000e+00 : f32
    %68 = vector.broadcast %cst_18 : f32 to vector<1x1024xf32>
    %69 = arith.addf %67, %68 : vector<1x1024xf32>
    %cst_19 = arith.constant 2.000000e+00 : f32
    %70 = vector.broadcast %cst_19 : f32 to vector<1x1024xf32>
    %71 = arith.subf %70, %38 : vector<1x1024xf32>
    %cst_20 = arith.constant -7.500000e-01 : f32
    %72 = vector.broadcast %cst_20 : f32 to vector<1x1024xf32>
    %73 = arith.mulf %72, %71 : vector<1x1024xf32>
    %cst_21 = arith.constant -3.750000e+00 : f32
    %74 = vector.broadcast %cst_21 : f32 to vector<1x1024xf32>
    %75 = arith.subf %73, %74 : vector<1x1024xf32>
    %76 = arith.mulf %75, %71 : vector<1x1024xf32>
    %cst_22 = arith.constant -6.000000e+00 : f32
    %77 = vector.broadcast %cst_22 : f32 to vector<1x1024xf32>
    %78 = arith.addf %76, %77 : vector<1x1024xf32>
    %79 = arith.mulf %78, %71 : vector<1x1024xf32>
    %cst_23 = arith.constant -3.000000e+00 : f32
    %80 = vector.broadcast %cst_23 : f32 to vector<1x1024xf32>
    %81 = arith.subf %79, %80 : vector<1x1024xf32>
    %cst_24 = arith.constant 1.000000e+00 : f32
    %82 = vector.broadcast %cst_24 : f32 to vector<1x1024xf32>
    %83 = arith.addf %39, %82 : vector<1x1024xf32>
    %cst_25 = arith.constant -7.500000e-01 : f32
    %84 = vector.broadcast %cst_25 : f32 to vector<1x1024xf32>
    %85 = arith.mulf %84, %83 : vector<1x1024xf32>
    %cst_26 = arith.constant -3.750000e+00 : f32
    %86 = vector.broadcast %cst_26 : f32 to vector<1x1024xf32>
    %87 = arith.subf %85, %86 : vector<1x1024xf32>
    %88 = arith.mulf %87, %83 : vector<1x1024xf32>
    %cst_27 = arith.constant -6.000000e+00 : f32
    %89 = vector.broadcast %cst_27 : f32 to vector<1x1024xf32>
    %90 = arith.addf %88, %89 : vector<1x1024xf32>
    %91 = arith.mulf %90, %83 : vector<1x1024xf32>
    %cst_28 = arith.constant -3.000000e+00 : f32
    %92 = vector.broadcast %cst_28 : f32 to vector<1x1024xf32>
    %93 = arith.subf %91, %92 : vector<1x1024xf32>
    %cst_29 = arith.constant 1.250000e+00 : f32
    %94 = vector.broadcast %cst_29 : f32 to vector<1x1024xf32>
    %95 = arith.mulf %94, %39 : vector<1x1024xf32>
    %cst_30 = arith.constant 2.250000e+00 : f32
    %96 = vector.broadcast %cst_30 : f32 to vector<1x1024xf32>
    %97 = arith.subf %95, %96 : vector<1x1024xf32>
    %98 = arith.mulf %97, %39 : vector<1x1024xf32>
    %99 = arith.mulf %98, %39 : vector<1x1024xf32>
    %cst_31 = arith.constant 1.000000e+00 : f32
    %100 = vector.broadcast %cst_31 : f32 to vector<1x1024xf32>
    %101 = arith.addf %99, %100 : vector<1x1024xf32>
    %cst_32 = arith.constant 1.000000e+00 : f32
    %102 = vector.broadcast %cst_32 : f32 to vector<1x1024xf32>
    %103 = arith.subf %102, %39 : vector<1x1024xf32>
    %cst_33 = arith.constant 1.250000e+00 : f32
    %104 = vector.broadcast %cst_33 : f32 to vector<1x1024xf32>
    %105 = arith.mulf %104, %103 : vector<1x1024xf32>
    %cst_34 = arith.constant 2.250000e+00 : f32
    %106 = vector.broadcast %cst_34 : f32 to vector<1x1024xf32>
    %107 = arith.subf %105, %106 : vector<1x1024xf32>
    %108 = arith.mulf %107, %103 : vector<1x1024xf32>
    %109 = arith.mulf %108, %103 : vector<1x1024xf32>
    %cst_35 = arith.constant 1.000000e+00 : f32
    %110 = vector.broadcast %cst_35 : f32 to vector<1x1024xf32>
    %111 = arith.addf %109, %110 : vector<1x1024xf32>
    %cst_36 = arith.constant 2.000000e+00 : f32
    %112 = vector.broadcast %cst_36 : f32 to vector<1x1024xf32>
    %113 = arith.subf %112, %39 : vector<1x1024xf32>
    %cst_37 = arith.constant -7.500000e-01 : f32
    %114 = vector.broadcast %cst_37 : f32 to vector<1x1024xf32>
    %115 = arith.mulf %114, %113 : vector<1x1024xf32>
    %cst_38 = arith.constant -3.750000e+00 : f32
    %116 = vector.broadcast %cst_38 : f32 to vector<1x1024xf32>
    %117 = arith.subf %115, %116 : vector<1x1024xf32>
    %118 = arith.mulf %117, %113 : vector<1x1024xf32>
    %cst_39 = arith.constant -6.000000e+00 : f32
    %119 = vector.broadcast %cst_39 : f32 to vector<1x1024xf32>
    %120 = arith.addf %118, %119 : vector<1x1024xf32>
    %121 = arith.mulf %120, %113 : vector<1x1024xf32>
    %cst_40 = arith.constant -3.000000e+00 : f32
    %122 = vector.broadcast %cst_40 : f32 to vector<1x1024xf32>
    %123 = arith.subf %121, %122 : vector<1x1024xf32>
    %124 = tpu.iota {dimensions = array<i32: 0>} : vector<32x1024xi32>
    %125 = tpu.iota {dimensions = array<i32: 0>} : vector<32x1024xi32>
    %cst_41 = arith.constant 0.000000e+00 : f32
    %126 = vector.broadcast %cst_41 : f32 to vector<32x1024xf32>
    %cst_42 = arith.constant 0.000000e+00 : f32
    %127 = vector.broadcast %cst_42 : f32 to vector<32x1024xf32>
    %cst_43 = arith.constant -1.000000e+00 : f32
    %128 = vector.broadcast %cst_43 : f32 to vector<1x1024xf32>
    %129 = arith.addf %37, %128 : vector<1x1024xf32>
    %cst_44 = arith.constant 0.000000e+00 : f32
    %cst_45 = arith.constant 3.100000e+01 : f32
    %130 = vector.broadcast %cst_44 : f32 to vector<1x1024xf32>
    %131 = arith.maximumf %130, %129 : vector<1x1024xf32>
    %132 = vector.broadcast %cst_45 : f32 to vector<1x1024xf32>
    %133 = arith.minimumf %132, %131 : vector<1x1024xf32>
    %134 = arith.fptosi %133 : vector<1x1024xf32> to vector<1x1024xi32>
    %cst_46 = arith.constant -1.000000e+00 : f32
    %135 = vector.broadcast %cst_46 : f32 to vector<1x1024xf32>
    %136 = arith.addf %36, %135 : vector<1x1024xf32>
    %cst_47 = arith.constant 0.000000e+00 : f32
    %cst_48 = arith.constant 3.100000e+01 : f32
    %137 = vector.broadcast %cst_47 : f32 to vector<1x1024xf32>
    %138 = arith.maximumf %137, %136 : vector<1x1024xf32>
    %139 = vector.broadcast %cst_48 : f32 to vector<1x1024xf32>
    %140 = arith.minimumf %139, %138 : vector<1x1024xf32>
    %141 = arith.fptosi %140 : vector<1x1024xf32> to vector<1x1024xi32>
    %142 = vector.broadcast %134 : vector<1x1024xi32> to vector<32x1024xi32>
    %143 = arith.cmpi eq, %124, %142 : vector<32x1024xi32>
    %cst_49 = arith.constant 0.000000e+00 : f32
    %144 = vector.shape_cast %93 : vector<1x1024xf32> to vector<1x1024xf32>
    %145 = vector.broadcast %144 : vector<1x1024xf32> to vector<32x1024xf32>
    %146 = vector.broadcast %cst_49 : f32 to vector<32x1024xf32>
    %147 = arith.select %143, %145, %146 : vector<32x1024xi1>, vector<32x1024xf32>
    %148 = arith.addf %126, %147 : vector<32x1024xf32>
    %149 = vector.broadcast %141 : vector<1x1024xi32> to vector<32x1024xi32>
    %150 = arith.cmpi eq, %125, %149 : vector<32x1024xi32>
    %cst_50 = arith.constant 0.000000e+00 : f32
    %151 = vector.shape_cast %51 : vector<1x1024xf32> to vector<1x1024xf32>
    %152 = vector.broadcast %151 : vector<1x1024xf32> to vector<32x1024xf32>
    %153 = vector.broadcast %cst_50 : f32 to vector<32x1024xf32>
    %154 = arith.select %150, %152, %153 : vector<32x1024xi1>, vector<32x1024xf32>
    %155 = arith.addf %127, %154 : vector<32x1024xf32>
    %cst_51 = arith.constant 0.000000e+00 : f32
    %156 = vector.broadcast %cst_51 : f32 to vector<1x1024xf32>
    %157 = arith.addf %37, %156 : vector<1x1024xf32>
    %cst_52 = arith.constant 0.000000e+00 : f32
    %cst_53 = arith.constant 3.100000e+01 : f32
    %158 = vector.broadcast %cst_52 : f32 to vector<1x1024xf32>
    %159 = arith.maximumf %158, %157 : vector<1x1024xf32>
    %160 = vector.broadcast %cst_53 : f32 to vector<1x1024xf32>
    %161 = arith.minimumf %160, %159 : vector<1x1024xf32>
    %162 = arith.fptosi %161 : vector<1x1024xf32> to vector<1x1024xi32>
    %cst_54 = arith.constant 0.000000e+00 : f32
    %163 = vector.broadcast %cst_54 : f32 to vector<1x1024xf32>
    %164 = arith.addf %36, %163 : vector<1x1024xf32>
    %cst_55 = arith.constant 0.000000e+00 : f32
    %cst_56 = arith.constant 3.100000e+01 : f32
    %165 = vector.broadcast %cst_55 : f32 to vector<1x1024xf32>
    %166 = arith.maximumf %165, %164 : vector<1x1024xf32>
    %167 = vector.broadcast %cst_56 : f32 to vector<1x1024xf32>
    %168 = arith.minimumf %167, %166 : vector<1x1024xf32>
    %169 = arith.fptosi %168 : vector<1x1024xf32> to vector<1x1024xi32>
    %170 = vector.broadcast %162 : vector<1x1024xi32> to vector<32x1024xi32>
    %171 = arith.cmpi eq, %124, %170 : vector<32x1024xi32>
    %cst_57 = arith.constant 0.000000e+00 : f32
    %172 = vector.shape_cast %101 : vector<1x1024xf32> to vector<1x1024xf32>
    %173 = vector.broadcast %172 : vector<1x1024xf32> to vector<32x1024xf32>
    %174 = vector.broadcast %cst_57 : f32 to vector<32x1024xf32>
    %175 = arith.select %171, %173, %174 : vector<32x1024xi1>, vector<32x1024xf32>
    %176 = arith.addf %148, %175 : vector<32x1024xf32>
    %177 = vector.broadcast %169 : vector<1x1024xi32> to vector<32x1024xi32>
    %178 = arith.cmpi eq, %125, %177 : vector<32x1024xi32>
    %cst_58 = arith.constant 0.000000e+00 : f32
    %179 = vector.shape_cast %59 : vector<1x1024xf32> to vector<1x1024xf32>
    %180 = vector.broadcast %179 : vector<1x1024xf32> to vector<32x1024xf32>
    %181 = vector.broadcast %cst_58 : f32 to vector<32x1024xf32>
    %182 = arith.select %178, %180, %181 : vector<32x1024xi1>, vector<32x1024xf32>
    %183 = arith.addf %155, %182 : vector<32x1024xf32>
    %cst_59 = arith.constant 1.000000e+00 : f32
    %184 = vector.broadcast %cst_59 : f32 to vector<1x1024xf32>
    %185 = arith.addf %37, %184 : vector<1x1024xf32>
    %cst_60 = arith.constant 0.000000e+00 : f32
    %cst_61 = arith.constant 3.100000e+01 : f32
    %186 = vector.broadcast %cst_60 : f32 to vector<1x1024xf32>
    %187 = arith.maximumf %186, %185 : vector<1x1024xf32>
    %188 = vector.broadcast %cst_61 : f32 to vector<1x1024xf32>
    %189 = arith.minimumf %188, %187 : vector<1x1024xf32>
    %190 = arith.fptosi %189 : vector<1x1024xf32> to vector<1x1024xi32>
    %cst_62 = arith.constant 1.000000e+00 : f32
    %191 = vector.broadcast %cst_62 : f32 to vector<1x1024xf32>
    %192 = arith.addf %36, %191 : vector<1x1024xf32>
    %cst_63 = arith.constant 0.000000e+00 : f32
    %cst_64 = arith.constant 3.100000e+01 : f32
    %193 = vector.broadcast %cst_63 : f32 to vector<1x1024xf32>
    %194 = arith.maximumf %193, %192 : vector<1x1024xf32>
    %195 = vector.broadcast %cst_64 : f32 to vector<1x1024xf32>
    %196 = arith.minimumf %195, %194 : vector<1x1024xf32>
    %197 = arith.fptosi %196 : vector<1x1024xf32> to vector<1x1024xi32>
    %198 = vector.broadcast %190 : vector<1x1024xi32> to vector<32x1024xi32>
    %199 = arith.cmpi eq, %124, %198 : vector<32x1024xi32>
    %cst_65 = arith.constant 0.000000e+00 : f32
    %200 = vector.shape_cast %111 : vector<1x1024xf32> to vector<1x1024xf32>
    %201 = vector.broadcast %200 : vector<1x1024xf32> to vector<32x1024xf32>
    %202 = vector.broadcast %cst_65 : f32 to vector<32x1024xf32>
    %203 = arith.select %199, %201, %202 : vector<32x1024xi1>, vector<32x1024xf32>
    %204 = arith.addf %176, %203 : vector<32x1024xf32>
    %205 = vector.broadcast %197 : vector<1x1024xi32> to vector<32x1024xi32>
    %206 = arith.cmpi eq, %125, %205 : vector<32x1024xi32>
    %cst_66 = arith.constant 0.000000e+00 : f32
    %207 = vector.shape_cast %69 : vector<1x1024xf32> to vector<1x1024xf32>
    %208 = vector.broadcast %207 : vector<1x1024xf32> to vector<32x1024xf32>
    %209 = vector.broadcast %cst_66 : f32 to vector<32x1024xf32>
    %210 = arith.select %206, %208, %209 : vector<32x1024xi1>, vector<32x1024xf32>
    %211 = arith.addf %183, %210 : vector<32x1024xf32>
    %cst_67 = arith.constant 2.000000e+00 : f32
    %212 = vector.broadcast %cst_67 : f32 to vector<1x1024xf32>
    %213 = arith.addf %37, %212 : vector<1x1024xf32>
    %cst_68 = arith.constant 0.000000e+00 : f32
    %cst_69 = arith.constant 3.100000e+01 : f32
    %214 = vector.broadcast %cst_68 : f32 to vector<1x1024xf32>
    %215 = arith.maximumf %214, %213 : vector<1x1024xf32>
    %216 = vector.broadcast %cst_69 : f32 to vector<1x1024xf32>
    %217 = arith.minimumf %216, %215 : vector<1x1024xf32>
    %218 = arith.fptosi %217 : vector<1x1024xf32> to vector<1x1024xi32>
    %cst_70 = arith.constant 2.000000e+00 : f32
    %219 = vector.broadcast %cst_70 : f32 to vector<1x1024xf32>
    %220 = arith.addf %36, %219 : vector<1x1024xf32>
    %cst_71 = arith.constant 0.000000e+00 : f32
    %cst_72 = arith.constant 3.100000e+01 : f32
    %221 = vector.broadcast %cst_71 : f32 to vector<1x1024xf32>
    %222 = arith.maximumf %221, %220 : vector<1x1024xf32>
    %223 = vector.broadcast %cst_72 : f32 to vector<1x1024xf32>
    %224 = arith.minimumf %223, %222 : vector<1x1024xf32>
    %225 = arith.fptosi %224 : vector<1x1024xf32> to vector<1x1024xi32>
    %226 = vector.broadcast %218 : vector<1x1024xi32> to vector<32x1024xi32>
    %227 = arith.cmpi eq, %124, %226 : vector<32x1024xi32>
    %cst_73 = arith.constant 0.000000e+00 : f32
    %228 = vector.shape_cast %123 : vector<1x1024xf32> to vector<1x1024xf32>
    %229 = vector.broadcast %228 : vector<1x1024xf32> to vector<32x1024xf32>
    %230 = vector.broadcast %cst_73 : f32 to vector<32x1024xf32>
    %231 = arith.select %227, %229, %230 : vector<32x1024xi1>, vector<32x1024xf32>
    %232 = arith.addf %204, %231 : vector<32x1024xf32>
    %233 = vector.broadcast %225 : vector<1x1024xi32> to vector<32x1024xi32>
    %234 = arith.cmpi eq, %125, %233 : vector<32x1024xi32>
    %cst_74 = arith.constant 0.000000e+00 : f32
    %235 = vector.shape_cast %81 : vector<1x1024xf32> to vector<1x1024xf32>
    %236 = vector.broadcast %235 : vector<1x1024xf32> to vector<32x1024xf32>
    %237 = vector.broadcast %cst_74 : f32 to vector<32x1024xf32>
    %238 = arith.select %234, %236, %237 : vector<32x1024xi1>, vector<32x1024xf32>
    %239 = arith.addf %211, %238 : vector<32x1024xf32>
    %c0_75 = arith.constant 0 : index
    %c0_76 = arith.constant 0 : index
    %c0_77 = arith.constant 0 : index
    %240 = vector.load %arg5[%c0_75, %c0_76, %c0_77] : memref<1x64x32xbf16, #tpu.memory_space<vmem>>, vector<1x64x32xbf16>
    %241 = vector.shape_cast %240 : vector<1x64x32xbf16> to vector<64x32xbf16>
    %242 = arith.truncf %239 : vector<32x1024xf32> to vector<32x1024xbf16>
    %cst_78 = arith.constant dense<0.000000e+00> : vector<64x1024xf32>
    %243 = tpu.matmul %241, %242, %cst_78 {dimension_numbers = #tpu.dot_dimension_numbers<[1], [0], [0], [1], [0, 0, 1, 1], [], []>} : vector<64x32xbf16>, vector<32x1024xbf16>, vector<64x1024xf32> -> vector<64x1024xf32>
    %244 = vector.extract_strided_slice %243 {offsets = [0, 0], sizes = [32, 1024], strides = [1, 1]} : vector<64x1024xf32> to vector<32x1024xf32>
    %245 = arith.mulf %244, %232 : vector<32x1024xf32>
    %cst_79 = arith.constant dense<0.000000e+00> : vector<1024xf32>
    %246 = vector.multi_reduction <add>, %245, %cst_79 [0] : vector<32x1024xf32> to vector<1024xf32>
    %247 = vector.shape_cast %246 : vector<1024xf32> to vector<1x1024xf32>
    %248 = arith.truncf %247 : vector<1x1024xf32> to vector<1x1024xbf16>
    %c0_80 = arith.constant 0 : index
    %c0_81 = arith.constant 0 : index
    %c0_82 = arith.constant 0 : index
    %249 = vector.load %arg6[%c0_80, %c0_81, %c0_82] : memref<1x2x1024xbf16, #tpu.memory_space<vmem>>, vector<1x1x1024xbf16>
    %250 = vector.shape_cast %249 : vector<1x1x1024xbf16> to vector<1x1024xbf16>
    %251 = vector.shape_cast %248 : vector<1x1024xbf16> to vector<1x1x1024xbf16>
    tpu.vector_store %arg6[%c0_80, %c0_81, %c0_82], %251 {strides = array<i32>} : memref<1x2x1024xbf16, #tpu.memory_space<vmem>>, vector<1x1x1024xbf16>,
    %252 = vector.extract_strided_slice %243 {offsets = [32, 0], sizes = [32, 1024], strides = [1, 1]} : vector<64x1024xf32> to vector<32x1024xf32>
    %253 = arith.mulf %252, %232 : vector<32x1024xf32>
    %cst_83 = arith.constant dense<0.000000e+00> : vector<1024xf32>
    %254 = vector.multi_reduction <add>, %253, %cst_83 [0] : vector<32x1024xf32> to vector<1024xf32>
    %255 = vector.shape_cast %254 : vector<1024xf32> to vector<1x1024xf32>
    %256 = arith.truncf %255 : vector<1x1024xf32> to vector<1x1024xbf16>
    %c0_84 = arith.constant 0 : index
    %c1_85 = arith.constant 1 : index
    %c0_86 = arith.constant 0 : index
    %257 = vector.load %arg6[%c0_84, %c1_85, %c0_86] : memref<1x2x1024xbf16, #tpu.memory_space<vmem>>, vector<1x1x1024xbf16>
    %258 = vector.shape_cast %257 : vector<1x1x1024xbf16> to vector<1x1024xbf16>
    %259 = vector.shape_cast %256 : vector<1x1024xbf16> to vector<1x1x1024xbf16>
    tpu.vector_store %arg6[%c0_84, %c1_85, %c0_86], %259 {strides = array<i32>} : memref<1x2x1024xbf16, #tpu.memory_space<vmem>>, vector<1x1x1024xbf16>,
    return
  }
  func.func @transform_0(%arg0: i32, %arg1: i32) -> (i32, i32) {
    %c0_i32 = arith.constant 0 : i32
    %c0_i32_0 = arith.constant 0 : i32
    %c0_i32_1 = arith.constant 0 : i32
    return %c0_i32, %c0_i32_0 : i32, i32
  }
  func.func @transform_1(%arg0: i32, %arg1: i32) -> (i32, i32) {
    %c0_i32 = arith.constant 0 : i32
    %c0_i32_0 = arith.constant 0 : i32
    return %c0_i32, %arg1 : i32, i32
  }
  func.func @transform_2(%arg0: i32, %arg1: i32) -> (i32, i32) {
    %c0_i32 = arith.constant 0 : i32
    %c0_i32_0 = arith.constant 0 : i32
    return %c0_i32, %arg1 : i32, i32
  }
  func.func @transform_3(%arg0: i32, %arg1: i32) -> (i32, i32, i32) {
    %c0_i32 = arith.constant 0 : i32
    %c0_i32_0 = arith.constant 0 : i32
    %c0_i32_1 = arith.constant 0 : i32
    return %arg0, %c0_i32, %c0_i32_0 : i32, i32, i32
  }
  func.func @transform_4(%arg0: i32, %arg1: i32) -> (i32, i32, i32) {
    %c0_i32 = arith.constant 0 : i32
    %c0_i32_0 = arith.constant 0 : i32
    return %arg0, %c0_i32, %arg1 : i32, i32, i32
  }
}

</mosaic_0001>

<llo_original>
// kernel: stacked_stn_forward.10
$region0: #{stacked_stn_forward.10}
  #allocation0 [shape = 'u32[]', space=smem, size = 0x4, offset = 0x4, fixed_abs, tag = 'smem constant byte address 0x4 - core index']
  #allocation1 [shape = 'u32[144,128]{1,0:T(1,128)}', space=vmem, size = 0x12000, scoped, tag = 'internal scratch']
  %s0 = inlined_call_operand.vmem [shape: f32[2,512], index: 0, kind: input, shape index: {}]
  %s1 = inlined_call_operand.vmem [shape: bf16[512,256], index: 1, kind: input, shape index: {}]
  %s2 = inlined_call_operand.vmem [shape: f32[1,256], index: 2, kind: input, shape index: {}]
  %s3 = inlined_call_operand.vmem [shape: f32[256,128], index: 3, kind: input, shape index: {}]
  %s4 = inlined_call_operand.vmem [shape: f32[1,128], index: 4, kind: input, shape index: {}]
  %s5 = inlined_call_operand.vmem [shape: f32[128,128], index: 5, kind: input, shape index: {}]
  %s6 = inlined_call_operand.vmem [shape: f32[1,128], index: 6, kind: input, shape index: {}]
  %s7 = inlined_call_operand.vmem [shape: f32[128,128], index: 7, kind: input, shape index: {}]
  %s8 = inlined_call_operand.vmem [shape: f32[1,128], index: 8, kind: input, shape index: {}]
  %s9 = inlined_call_operand.vmem [shape: f32[1,128], index: 9, kind: input, shape index: {}]
  %s10 = inlined_call_operand.vmem [shape: f32[2,128], index: 10, kind: output, shape index: {}]
  %s11 = sld [smem:[#allocation0]]
  $region50: #{stacked_stn_forward.10} parent=0
    _
  %s13 = ssub.s32 1, %s11
  %s14 = scalar_select 0, %s13, %s11
  // Predicated region
  $region2: #{stacked_stn_forward.10} parent=0 // pred_check
    _
  $region3: #{stacked_stn_forward.10} parent=0 // pred_check_branch
    %16 = sbr.rel (0) target = $region5
  $region4: #{stacked_stn_forward.10} parent=0 // pred_region
    _
  $region5: #{stacked_stn_forward.10} parent=0 // pred_fallthru
    _
  // Predicated region
  $region6: #{stacked_stn_forward.10} parent=0 // pred_check
    _
  $region7: #{stacked_stn_forward.10} parent=0 // pred_check_branch
    %18 = sbr.rel (0) target = $region9
  $region8: #{stacked_stn_forward.10} parent=0 // pred_region
    _
  $region9: #{stacked_stn_forward.10} parent=0 // pred_fallthru
    _
  // Predicated region
  $region10: #{stacked_stn_forward.10} parent=0 // pred_check
    _
  $region11: #{stacked_stn_forward.10} parent=0 // pred_check_branch
    %20 = sbr.rel (0) target = $region13
  $region12: #{stacked_stn_forward.10} parent=0 // pred_region
    _
  $region13: #{stacked_stn_forward.10} parent=0 // pred_fallthru
    _
  // Predicated region
  $region14: #{stacked_stn_forward.10} parent=0 // pred_check
    _
  $region15: #{stacked_stn_forward.10} parent=0 // pred_check_branch
    %22 = sbr.rel (0) target = $region17
  $region16: #{stacked_stn_forward.10} parent=0 // pred_region
    _
  $region17: #{stacked_stn_forward.10} parent=0 // pred_fallthru
    _
  // Predicated region
  $region18: #{stacked_stn_forward.10} parent=0 // pred_check
    _
  $region19: #{stacked_stn_forward.10} parent=0 // pred_check_branch
    %24 = sbr.rel (0) target = $region21
  $region20: #{stacked_stn_forward.10} parent=0 // pred_region
    _
  $region21: #{stacked_stn_forward.10} parent=0 // pred_fallthru
    _
  // Predicated region
  $region22: #{stacked_stn_forward.10} parent=0 // pred_check
    _
  $region23: #{stacked_stn_forward.10} parent=0 // pred_check_branch
    %26 = sbr.rel (0) target = $region25
  $region24: #{stacked_stn_forward.10} parent=0 // pred_region
    _
  $region25: #{stacked_stn_forward.10} parent=0 // pred_fallthru
    _
  // Predicated region
  $region26: #{stacked_stn_forward.10} parent=0 // pred_check
    _
  $region27: #{stacked_stn_forward.10} parent=0 // pred_check_branch
    %28 = sbr.rel (0) target = $region29
  $region28: #{stacked_stn_forward.10} parent=0 // pred_region
    _
  $region29: #{stacked_stn_forward.10} parent=0 // pred_fallthru
    _
  // Predicated region
  $region30: #{stacked_stn_forward.10} parent=0 // pred_check
    _
  $region31: #{stacked_stn_forward.10} parent=0 // pred_check_branch
    %30 = sbr.rel (0) target = $region33
  $region32: #{stacked_stn_forward.10} parent=0 // pred_region
    _
  $region33: #{stacked_stn_forward.10} parent=0 // pred_fallthru
    _
  // Predicated region
  $region34: #{stacked_stn_forward.10} parent=0 // pred_check
    _
  $region35: #{stacked_stn_forward.10} parent=0 // pred_check_branch
    %32 = sbr.rel (0) target = $region37
  $region36: #{stacked_stn_forward.10} parent=0 // pred_region
    _
  $region37: #{stacked_stn_forward.10} parent=0 // pred_fallthru
    _
  // Predicated region
  $region38: #{stacked_stn_forward.10} parent=0 // pred_check
    _
  $region39: #{stacked_stn_forward.10} parent=0 // pred_check_branch
    %34 = sbr.rel (0) target = $region41
  $region40: #{stacked_stn_forward.10} parent=0 // pred_region
    _
  $region41: #{stacked_stn_forward.10} parent=0 // pred_fallthru
    _
  %v35 = vld [vmem:[%s0] sm:$0xff]
  %v37 = vcombine.high %v35, %v35
  %v39 = vunpack.c.l.s4 1983009808
  %v40 = vunpack.c.0.s8 %v39
  %v41 = vlaneseq
  %v42 = vshrl.u32 %v41, 7
  %v43 = vsub.s32 %v40, %v42
  %v44 = vrot.slane %v35, %v43
  %v46 = vunpack.c.l.s4 1983009808
  %v47 = vunpack.c.0.s8 %v46
  %v48 = vlaneseq
  %v49 = vshrl.u32 %v48, 7
  %v50 = vsub.s32 %v47, %v49
  %v51 = vrot.slane %v37, %v50
  %v52 = vcombine.high %v44, %v44
  %v53 = vcombine.high %v51, %v51
  %v58 = vpack.c.bf16 %v44, %v44
  %v59 = vpack.c.bf16 %v52, %v52
  %v60 = vpack.c.bf16 %v51, %v51
  %v61 = vpack.c.bf16 %v53, %v53
  %v62 = vld [vmem:[%s1] sm:$0xff]
  %v63 = vld [vmem:[%s1 + $0x8] sm:$0xff]
  %v64 = vld [vmem:[%s1 + $0x10] sm:$0xff]
  %v65 = vld [vmem:[%s1 + $0x18] sm:$0xff]
  %v66 = vld [vmem:[%s1 + $0x20] sm:$0xff]
  %v67 = vld [vmem:[%s1 + $0x28] sm:$0xff]
  %v68 = vld [vmem:[%s1 + $0x30] sm:$0xff]
  %v69 = vld [vmem:[%s1 + $0x38] sm:$0xff]
  %v70 = vld [vmem:[%s1 + $0x40] sm:$0xff]
  %v71 = vld [vmem:[%s1 + $0x48] sm:$0xff]
  %v72 = vld [vmem:[%s1 + $0x50] sm:$0xff]
  %v73 = vld [vmem:[%s1 + $0x58] sm:$0xff]
  %v74 = vld [vmem:[%s1 + $0x60] sm:$0xff]
  %v75 = vld [vmem:[%s1 + $0x68] sm:$0xff]
  %v76 = vld [vmem:[%s1 + $0x70] sm:$0xff]
  %v77 = vld [vmem:[%s1 + $0x78] sm:$0xff]
  %v78 = vld [vmem:[%s1 + $0x80] sm:$0xff]
  %v79 = vld [vmem:[%s1 + $0x88] sm:$0xff]
  %v80 = vld [vmem:[%s1 + $0x90] sm:$0xff]
  %v81 = vld [vmem:[%s1 + $0x98] sm:$0xff]
  %v82 = vld [vmem:[%s1 + $0xa0] sm:$0xff]
  %v83 = vld [vmem:[%s1 + $0xa8] sm:$0xff]
  %v84 = vld [vmem:[%s1 + $0xb0] sm:$0xff]
  %v85 = vld [vmem:[%s1 + $0xb8] sm:$0xff]
  %v86 = vld [vmem:[%s1 + $0xc0] sm:$0xff]
  %v87 = vld [vmem:[%s1 + $0xc8] sm:$0xff]
  %v88 = vld [vmem:[%s1 + $0xd0] sm:$0xff]
  %v89 = vld [vmem:[%s1 + $0xd8] sm:$0xff]
  %v90 = vld [vmem:[%s1 + $0xe0] sm:$0xff]
  %v91 = vld [vmem:[%s1 + $0xe8] sm:$0xff]
  %v92 = vld [vmem:[%s1 + $0xf0] sm:$0xff]
  %v93 = vld [vmem:[%s1 + $0xf8] sm:$0xff]
  %v94 = vld [vmem:[%s1 + $0x100] sm:$0xff]
  %v95 = vld [vmem:[%s1 + $0x108] sm:$0xff]
  %v96 = vld [vmem:[%s1 + $0x110] sm:$0xff]
  %v97 = vld [vmem:[%s1 + $0x118] sm:$0xff]
  %v98 = vld [vmem:[%s1 + $0x120] sm:$0xff]
  %v99 = vld [vmem:[%s1 + $0x128] sm:$0xff]
  %v100 = vld [vmem:[%s1 + $0x130] sm:$0xff]
  %v101 = vld [vmem:[%s1 + $0x138] sm:$0xff]
  %v102 = vld [vmem:[%s1 + $0x140] sm:$0xff]
  %v103 = vld [vmem:[%s1 + $0x148] sm:$0xff]
  %v104 = vld [vmem:[%s1 + $0x150] sm:$0xff]
  %v105 = vld [vmem:[%s1 + $0x158] sm:$0xff]
  %v106 = vld [vmem:[%s1 + $0x160] sm:$0xff]
  %v107 = vld [vmem:[%s1 + $0x168] sm:$0xff]
  %v108 = vld [vmem:[%s1 + $0x170] sm:$0xff]
  %v109 = vld [vmem:[%s1 + $0x178] sm:$0xff]
  %v110 = vld [vmem:[%s1 + $0x180] sm:$0xff]
  %v111 = vld [vmem:[%s1 + $0x188] sm:$0xff]
  %v112 = vld [vmem:[%s1 + $0x190] sm:$0xff]
  %v113 = vld [vmem:[%s1 + $0x198] sm:$0xff]
  %v114 = vld [vmem:[%s1 + $0x1a0] sm:$0xff]
  %v115 = vld [vmem:[%s1 + $0x1a8] sm:$0xff]
  %v116 = vld [vmem:[%s1 + $0x1b0] sm:$0xff]
  %v117 = vld [vmem:[%s1 + $0x1b8] sm:$0xff]
  %v118 = vld [vmem:[%s1 + $0x1c0] sm:$0xff]
  %v119 = vld [vmem:[%s1 + $0x1c8] sm:$0xff]
  %v120 = vld [vmem:[%s1 + $0x1d0] sm:$0xff]
  %v121 = vld [vmem:[%s1 + $0x1d8] sm:$0xff]
  %v122 = vld [vmem:[%s1 + $0x1e0] sm:$0xff]
  %v123 = vld [vmem:[%s1 + $0x1e8] sm:$0xff]
  %v124 = vld [vmem:[%s1 + $0x1f0] sm:$0xff]
  %v125 = vld [vmem:[%s1 + $0x1f8] sm:$0xff]
  %v126 = vld [vmem:[%s2] sm:$0x3]
  %v128 = vlaneseq
  %v129 = vshrl.u32 %v128, 7
  %v130 = vsub.s32 0, %v129
  %v131 = vrot.slane %v126, %v130
  %v132 = vlaneseq
  %v133 = vshrl.u32 %v132, 7
  %v134 = vsub.s32 1, %v133
  %v135 = vrot.slane %v126, %v134
  %v202 = vunpack.c.l.b16 %v62
  %v203 = vunpack.c.h.b16 %v62
  %v204 = vunpack.c.l.b16 %v63
  %v205 = vunpack.c.h.b16 %v63
  %v206 = vunpack.c.l.b16 %v64
  %v207 = vunpack.c.h.b16 %v64
  %v208 = vunpack.c.l.b16 %v65
  %v209 = vunpack.c.h.b16 %v65
  %v210 = vunpack.c.l.b16 %v66
  %v211 = vunpack.c.h.b16 %v66
  %v212 = vunpack.c.l.b16 %v67
  %v213 = vunpack.c.h.b16 %v67
  %v214 = vunpack.c.l.b16 %v68
  %v215 = vunpack.c.h.b16 %v68
  %v216 = vunpack.c.l.b16 %v69
  %v217 = vunpack.c.h.b16 %v69
  %v218 = vunpack.c.l.b16 %v70
  %v219 = vunpack.c.h.b16 %v70
  %v220 = vunpack.c.l.b16 %v71
  %v221 = vunpack.c.h.b16 %v71
  %v222 = vunpack.c.l.b16 %v72
  %v223 = vunpack.c.h.b16 %v72
  %v224 = vunpack.c.l.b16 %v73
  %v225 = vunpack.c.h.b16 %v73
  %v226 = vunpack.c.l.b16 %v74
  %v227 = vunpack.c.h.b16 %v74
  %v228 = vunpack.c.l.b16 %v75
  %v229 = vunpack.c.h.b16 %v75
  %v230 = vunpack.c.l.b16 %v76
  %v231 = vunpack.c.h.b16 %v76
  %v232 = vunpack.c.l.b16 %v77
  %v233 = vunpack.c.h.b16 %v77
  %v234 = vunpack.c.l.b16 %v78
  %v235 = vunpack.c.h.b16 %v78
  %v236 = vunpack.c.l.b16 %v79
  %v237 = vunpack.c.h.b16 %v79
  %v238 = vunpack.c.l.b16 %v80
  %v239 = vunpack.c.h.b16 %v80
  %v240 = vunpack.c.l.b16 %v81
  %v241 = vunpack.c.h.b16 %v81
  %v242 = vunpack.c.l.b16 %v82
  %v243 = vunpack.c.h.b16 %v82
  %v244 = vunpack.c.l.b16 %v83
  %v245 = vunpack.c.h.b16 %v83
  %v246 = vunpack.c.l.b16 %v84
  %v247 = vunpack.c.h.b16 %v84
  %v248 = vunpack.c.l.b16 %v85
  %v249 = vunpack.c.h.b16 %v85
  %v250 = vunpack.c.l.b16 %v86
  %v251 = vunpack.c.h.b16 %v86
  %v252 = vunpack.c.l.b16 %v87
  %v253 = vunpack.c.h.b16 %v87
  %v254 = vunpack.c.l.b16 %v88
  %v255 = vunpack.c.h.b16 %v88
  %v256 = vunpack.c.l.b16 %v89
  %v257 = vunpack.c.h.b16 %v89
  %v258 = vunpack.c.l.b16 %v90
  %v259 = vunpack.c.h.b16 %v90
  %v260 = vunpack.c.l.b16 %v91
  %v261 = vunpack.c.h.b16 %v91
  %v262 = vunpack.c.l.b16 %v92
  %v263 = vunpack.c.h.b16 %v92
  %v264 = vunpack.c.l.b16 %v93
  %v265 = vunpack.c.h.b16 %v93
  %v266 = vunpack.c.l.b16 %v94
  %v267 = vunpack.c.h.b16 %v94
  %v268 = vunpack.c.l.b16 %v95
  %v269 = vunpack.c.h.b16 %v95
  %v270 = vunpack.c.l.b16 %v96
  %v271 = vunpack.c.h.b16 %v96
  %v272 = vunpack.c.l.b16 %v97
  %v273 = vunpack.c.h.b16 %v97
  %v274 = vunpack.c.l.b16 %v98
  %v275 = vunpack.c.h.b16 %v98
  %v276 = vunpack.c.l.b16 %v99
  %v277 = vunpack.c.h.b16 %v99
  %v278 = vunpack.c.l.b16 %v100
  %v279 = vunpack.c.h.b16 %v100
  %v280 = vunpack.c.l.b16 %v101
  %v281 = vunpack.c.h.b16 %v101
  %v282 = vunpack.c.l.b16 %v102
  %v283 = vunpack.c.h.b16 %v102
  %v284 = vunpack.c.l.b16 %v103
  %v285 = vunpack.c.h.b16 %v103
  %v286 = vunpack.c.l.b16 %v104
  %v287 = vunpack.c.h.b16 %v104
  %v288 = vunpack.c.l.b16 %v105
  %v289 = vunpack.c.h.b16 %v105
  %v290 = vunpack.c.l.b16 %v106
  %v291 = vunpack.c.h.b16 %v106
  %v292 = vunpack.c.l.b16 %v107
  %v293 = vunpack.c.h.b16 %v107
  %v294 = vunpack.c.l.b16 %v108
  %v295 = vunpack.c.h.b16 %v108
  %v296 = vunpack.c.l.b16 %v109
  %v297 = vunpack.c.h.b16 %v109
  %v298 = vunpack.c.l.b16 %v110
  %v299 = vunpack.c.h.b16 %v110
  %v300 = vunpack.c.l.b16 %v111
  %v301 = vunpack.c.h.b16 %v111
  %v302 = vunpack.c.l.b16 %v112
  %v303 = vunpack.c.h.b16 %v112
  %v304 = vunpack.c.l.b16 %v113
  %v305 = vunpack.c.h.b16 %v113
  %v306 = vunpack.c.l.b16 %v114
  %v307 = vunpack.c.h.b16 %v114
  %v308 = vunpack.c.l.b16 %v115
  %v309 = vunpack.c.h.b16 %v115
  %v310 = vunpack.c.l.b16 %v116
  %v311 = vunpack.c.h.b16 %v116
  %v312 = vunpack.c.l.b16 %v117
  %v313 = vunpack.c.h.b16 %v117
  %v314 = vunpack.c.l.b16 %v118
  %v315 = vunpack.c.h.b16 %v118
  %v316 = vunpack.c.l.b16 %v119
  %v317 = vunpack.c.h.b16 %v119
  %v318 = vunpack.c.l.b16 %v120
  %v319 = vunpack.c.h.b16 %v120
  %v320 = vunpack.c.l.b16 %v121
  %v321 = vunpack.c.h.b16 %v121
  %v322 = vunpack.c.l.b16 %v122
  %v323 = vunpack.c.h.b16 %v122
  %v324 = vunpack.c.l.b16 %v123
  %v325 = vunpack.c.h.b16 %v123
  %v326 = vunpack.c.l.b16 %v124
  %v327 = vunpack.c.h.b16 %v124
  %v328 = vunpack.c.l.b16 %v125
  %v329 = vunpack.c.h.b16 %v125
  %v330 = vpack.c.b16 %v204, %v202
  %v331 = vpack.c.b16 %v205, %v203
  %v332 = vpack.c.b16 %v208, %v206
  %v333 = vpack.c.b16 %v209, %v207
  %v334 = vpack.c.b16 %v212, %v210
  %v335 = vpack.c.b16 %v213, %v211
  %v336 = vpack.c.b16 %v216, %v214
  %v337 = vpack.c.b16 %v217, %v215
  %v338 = vpack.c.b16 %v220, %v218
  %v339 = vpack.c.b16 %v221, %v219
  %v340 = vpack.c.b16 %v224, %v222
  %v341 = vpack.c.b16 %v225, %v223
  %v342 = vpack.c.b16 %v228, %v226
  %v343 = vpack.c.b16 %v229, %v227
  %v344 = vpack.c.b16 %v232, %v230
  %v345 = vpack.c.b16 %v233, %v231
  %v346 = vpack.c.b16 %v236, %v234
  %v347 = vpack.c.b16 %v237, %v235
  %v348 = vpack.c.b16 %v240, %v238
  %v349 = vpack.c.b16 %v241, %v239
  %v350 = vpack.c.b16 %v244, %v242
  %v351 = vpack.c.b16 %v245, %v243
  %v352 = vpack.c.b16 %v248, %v246
  %v353 = vpack.c.b16 %v249, %v247
  %v354 = vpack.c.b16 %v252, %v250
  %v355 = vpack.c.b16 %v253, %v251
  %v356 = vpack.c.b16 %v256, %v254
  %v357 = vpack.c.b16 %v257, %v255
  %v358 = vpack.c.b16 %v260, %v258
  %v359 = vpack.c.b16 %v261, %v259
  %v360 = vpack.c.b16 %v264, %v262
  %v361 = vpack.c.b16 %v265, %v263
  %v362 = vpack.c.b16 %v268, %v266
  %v363 = vpack.c.b16 %v269, %v267
  %v364 = vpack.c.b16 %v272, %v270
  %v365 = vpack.c.b16 %v273, %v271
  %v366 = vpack.c.b16 %v276, %v274
  %v367 = vpack.c.b16 %v277, %v275
  %v368 = vpack.c.b16 %v280, %v278
  %v369 = vpack.c.b16 %v281, %v279
  %v370 = vpack.c.b16 %v284, %v282
  %v371 = vpack.c.b16 %v285, %v283
  %v372 = vpack.c.b16 %v288, %v286
  %v373 = vpack.c.b16 %v289, %v287
  %v374 = vpack.c.b16 %v292, %v290
  %v375 = vpack.c.b16 %v293, %v291
  %v376 = vpack.c.b16 %v296, %v294
  %v377 = vpack.c.b16 %v297, %v295
  %v378 = vpack.c.b16 %v300, %v298
  %v379 = vpack.c.b16 %v301, %v299
  %v380 = vpack.c.b16 %v304, %v302
  %v381 = vpack.c.b16 %v305, %v303
  %v382 = vpack.c.b16 %v308, %v306
  %v383 = vpack.c.b16 %v309, %v307
  %v384 = vpack.c.b16 %v312, %v310
  %v385 = vpack.c.b16 %v313, %v311
  %v386 = vpack.c.b16 %v316, %v314
  %v387 = vpack.c.b16 %v317, %v315
  %v388 = vpack.c.b16 %v320, %v318
  %v389 = vpack.c.b16 %v321, %v319
  %v390 = vpack.c.b16 %v324, %v322
  %v391 = vpack.c.b16 %v325, %v323
  %v392 = vpack.c.b16 %v328, %v326
  %v393 = vpack.c.b16 %v329, %v327
  %458 = vmatprep.subr.bf16.mxu0 %v331
  %459 = vmatpush1.bf16.msra.mxu0 %v330
  %460 = vmatprep.subr.bf16.mxu0 %v333
  %461 = vmatpush1.bf16.msra.mxu0 %v332
  %462 = vmatprep.subr.bf16.mxu0 %v335
  %463 = vmatpush1.bf16.msra.mxu0 %v334
  %464 = vmatprep.subr.bf16.mxu0 %v337
  %465 = vmatpush1.bf16.msra.mxu0 %v336
  %466 = vmatprep.subr.bf16.mxu0 %v339
  %467 = vmatpush1.bf16.msra.mxu0 %v338
  %468 = vmatprep.subr.bf16.mxu0 %v341
  %469 = vmatpush1.bf16.msra.mxu0 %v340
  %470 = vmatprep.subr.bf16.mxu0 %v343
  %471 = vmatpush1.bf16.msra.mxu0 %v342
  %472 = vmatprep.subr.bf16.mxu0 %v345
  %473 = vmatpush1.bf16.msra.mxu0 %v344
  %474 = vmatprep.subr.bf16.mxu0 %v347
  %475 = vmatpush1.bf16.msra.mxu0 %v346
  %476 = vmatprep.subr.bf16.mxu0 %v349
  %477 = vmatpush1.bf16.msra.mxu0 %v348
  %478 = vmatprep.subr.bf16.mxu0 %v351
  %479 = vmatpush1.bf16.msra.mxu0 %v350
  %480 = vmatprep.subr.bf16.mxu0 %v353
  %481 = vmatpush1.bf16.msra.mxu0 %v352
  %482 = vmatprep.subr.bf16.mxu0 %v355
  %483 = vmatpush1.bf16.msra.mxu0 %v354
  %484 = vmatprep.subr.bf16.mxu0 %v357
  %485 = vmatpush1.bf16.msra.mxu0 %v356
  %486 = vmatprep.subr.bf16.mxu0 %v359
  %487 = vmatpush1.bf16.msra.mxu0 %v358
  %488 = vmatprep.subr.bf16.mxu0 %v361
  %489 = vmatpush1.bf16.msra.mxu0 %v360
  %490 = vmatprep.mubr.bf16.mxu0 %v59
  %491 = vmatmul.mubr.bf16.gmra.mrb[0].mxu0 %v58
  %v492 = vpop.f32.mrb[0].mxu0
  %v493 = vadd.f32 %v131, %v492
  %v494 = vpop.f32.mrb[0].mxu0
  %v495 = vadd.f32 %v135, %v494
  %v496 = vpop.f32.mrb[0].mxu0
  %v497 = vpop.f32.mrb[0].mxu0
  %498 = vdwg.mxu0
  %499 = vmatprep.subr.bf16.mxu0 %v363
  %500 = vmatpush1.bf16.msra.mxu0 %v362
  %501 = vmatprep.subr.bf16.mxu0 %v365
  %502 = vmatpush1.bf16.msra.mxu0 %v364
  %503 = vmatprep.subr.bf16.mxu0 %v367
  %504 = vmatpush1.bf16.msra.mxu0 %v366
  %505 = vmatprep.subr.bf16.mxu0 %v369
  %506 = vmatpush1.bf16.msra.mxu0 %v368
  %507 = vmatprep.subr.bf16.mxu0 %v371
  %508 = vmatpush1.bf16.msra.mxu0 %v370
  %509 = vmatprep.subr.bf16.mxu0 %v373
  %510 = vmatpush1.bf16.msra.mxu0 %v372
  %511 = vmatprep.subr.bf16.mxu0 %v375
  %512 = vmatpush1.bf16.msra.mxu0 %v374
  %513 = vmatprep.subr.bf16.mxu0 %v377
  %514 = vmatpush1.bf16.msra.mxu0 %v376
  %515 = vmatprep.subr.bf16.mxu0 %v379
  %516 = vmatpush1.bf16.msra.mxu0 %v378
  %517 = vmatprep.subr.bf16.mxu0 %v381
  %518 = vmatpush1.bf16.msra.mxu0 %v380
  %519 = vmatprep.subr.bf16.mxu0 %v383
  %520 = vmatpush1.bf16.msra.mxu0 %v382
  %521 = vmatprep.subr.bf16.mxu0 %v385
  %522 = vmatpush1.bf16.msra.mxu0 %v384
  %523 = vmatprep.subr.bf16.mxu0 %v387
  %524 = vmatpush1.bf16.msra.mxu0 %v386
  %525 = vmatprep.subr.bf16.mxu0 %v389
  %526 = vmatpush1.bf16.msra.mxu0 %v388
  %527 = vmatprep.subr.bf16.mxu0 %v391
  %528 = vmatpush1.bf16.msra.mxu0 %v390
  %529 = vmatprep.subr.bf16.mxu0 %v393
  %530 = vmatpush1.bf16.msra.mxu0 %v392
  %531 = vmatprep.mubr.bf16.mxu0 %v61
  %532 = vmatmul.mubr.bf16.gmra.mrb[0].mxu0 %v60
  %v533 = vpop.f32.mrb[0].mxu0
  %v534 = vadd.f32 %v493, %v533
  %v535 = vpop.f32.mrb[0].mxu0
  %v536 = vadd.f32 %v495, %v535
  %v537 = vpop.f32.mrb[0].mxu0
  %v538 = vpop.f32.mrb[0].mxu0
  %539 = vdwg.mxu0
  %v540 = vmax.f32 %v534, 0.0
  %v541 = vmax.f32 %v536, 0.0
  %v542 = vld [vmem:[%s3] sm:$0xff]
  %v543 = vld [vmem:[%s3 + $0x8] sm:$0xff]
  %v544 = vld [vmem:[%s3 + $0x10] sm:$0xff]
  %v545 = vld [vmem:[%s3 + $0x18] sm:$0xff]
  %v546 = vld [vmem:[%s3 + $0x20] sm:$0xff]
  %v547 = vld [vmem:[%s3 + $0x28] sm:$0xff]
  %v548 = vld [vmem:[%s3 + $0x30] sm:$0xff]
  %v549 = vld [vmem:[%s3 + $0x38] sm:$0xff]
  %v550 = vld [vmem:[%s3 + $0x40] sm:$0xff]
  %v551 = vld [vmem:[%s3 + $0x48] sm:$0xff]
  %v552 = vld [vmem:[%s3 + $0x50] sm:$0xff]
  %v553 = vld [vmem:[%s3 + $0x58] sm:$0xff]
  %v554 = vld [vmem:[%s3 + $0x60] sm:$0xff]
  %v555 = vld [vmem:[%s3 + $0x68] sm:$0xff]
  %v556 = vld [vmem:[%s3 + $0x70] sm:$0xff]
  %v557 = vld [vmem:[%s3 + $0x78] sm:$0xff]
  %v558 = vld [vmem:[%s3 + $0x80] sm:$0xff]
  %v559 = vld [vmem:[%s3 + $0x88] sm:$0xff]
  %v560 = vld [vmem:[%s3 + $0x90] sm:$0xff]
  %v561 = vld [vmem:[%s3 + $0x98] sm:$0xff]
  %v562 = vld [vmem:[%s3 + $0xa0] sm:$0xff]
  %v563 = vld [vmem:[%s3 + $0xa8] sm:$0xff]
  %v564 = vld [vmem:[%s3 + $0xb0] sm:$0xff]
  %v565 = vld [vmem:[%s3 + $0xb8] sm:$0xff]
  %v566 = vld [vmem:[%s3 + $0xc0] sm:$0xff]
  %v567 = vld [vmem:[%s3 + $0xc8] sm:$0xff]
  %v568 = vld [vmem:[%s3 + $0xd0] sm:$0xff]
  %v569 = vld [vmem:[%s3 + $0xd8] sm:$0xff]
  %v570 = vld [vmem:[%s3 + $0xe0] sm:$0xff]
  %v571 = vld [vmem:[%s3 + $0xe8] sm:$0xff]
  %v572 = vld [vmem:[%s3 + $0xf0] sm:$0xff]
  %v573 = vld [vmem:[%s3 + $0xf8] sm:$0xff]
  %v574 = vld [vmem:[%s4] sm:$0x1]
  %v576 = vlaneseq
  %v577 = vshrl.u32 %v576, 7
  %v578 = vsub.s32 0, %v577
  %v579 = vrot.slane %v574, %v578
  %581 = vmatprep.subr.mxu0 0.0
  %582 = vmatpush1.msra.mxu0 %v542
  %583 = vmatprep.subr.mxu0 0.0
  %584 = vmatpush1.msra.mxu0 %v543
  %585 = vmatprep.subr.mxu0 0.0
  %586 = vmatpush1.msra.mxu0 %v544
  %587 = vmatprep.subr.mxu0 0.0
  %588 = vmatpush1.msra.mxu0 %v545
  %589 = vmatprep.subr.mxu0 0.0
  %590 = vmatpush1.msra.mxu0 %v546
  %591 = vmatprep.subr.mxu0 0.0
  %592 = vmatpush1.msra.mxu0 %v547
  %593 = vmatprep.subr.mxu0 0.0
  %594 = vmatpush1.msra.mxu0 %v548
  %595 = vmatprep.subr.mxu0 0.0
  %596 = vmatpush1.msra.mxu0 %v549
  %597 = vmatprep.subr.mxu0 0.0
  %598 = vmatpush1.msra.mxu0 %v550
  %599 = vmatprep.subr.mxu0 0.0
  %600 = vmatpush1.msra.mxu0 %v551
  %601 = vmatprep.subr.mxu0 0.0
  %602 = vmatpush1.msra.mxu0 %v552
  %603 = vmatprep.subr.mxu0 0.0
  %604 = vmatpush1.msra.mxu0 %v553
  %605 = vmatprep.subr.mxu0 0.0
  %606 = vmatpush1.msra.mxu0 %v554
  %607 = vmatprep.subr.mxu0 0.0
  %608 = vmatpush1.msra.mxu0 %v555
  %609 = vmatprep.subr.mxu0 0.0
  %610 = vmatpush1.msra.mxu0 %v556
  %611 = vmatprep.subr.mxu0 0.0
  %612 = vmatpush1.msra.mxu0 %v557
  %613 = vmatprep.subr.mxu0 0.0
  %614 = vmatpush1.msra.mxu0 %v558
  %615 = vmatprep.subr.mxu0 0.0
  %616 = vmatpush1.msra.mxu0 %v559
  %617 = vmatprep.subr.mxu0 0.0
  %618 = vmatpush1.msra.mxu0 %v560
  %619 = vmatprep.subr.mxu0 0.0
  %620 = vmatpush1.msra.mxu0 %v561
  %621 = vmatprep.subr.mxu0 0.0
  %622 = vmatpush1.msra.mxu0 %v562
  %623 = vmatprep.subr.mxu0 0.0
  %624 = vmatpush1.msra.mxu0 %v563
  %625 = vmatprep.subr.mxu0 0.0
  %626 = vmatpush1.msra.mxu0 %v564
  %627 = vmatprep.subr.mxu0 0.0
  %628 = vmatpush1.msra.mxu0 %v565
  %629 = vmatprep.subr.mxu0 0.0
  %630 = vmatpush1.msra.mxu0 %v566
  %631 = vmatprep.subr.mxu0 0.0
  %632 = vmatpush1.msra.mxu0 %v567
  %633 = vmatprep.subr.mxu0 0.0
  %634 = vmatpush1.msra.mxu0 %v568
  %635 = vmatprep.subr.mxu0 0.0
  %636 = vmatpush1.msra.mxu0 %v569
  %637 = vmatprep.subr.mxu0 0.0
  %638 = vmatpush1.msra.mxu0 %v570
  %639 = vmatprep.subr.mxu0 0.0
  %640 = vmatpush1.msra.mxu0 %v571
  %641 = vmatprep.subr.mxu0 0.0
  %642 = vmatpush1.msra.mxu0 %v572
  %643 = vmatprep.subr.mxu0 0.0
  %644 = vmatpush1.msra.mxu0 %v573
  %645 = vmatprep.mubr.f32.mxu0 %v541
  %646 = vmatmul.mubr.f32.gmra.mrb[0].mxu0 %v540
  %v647 = vpop.f32.mrb[0].mxu0
  %v648 = vadd.f32 %v579, %v647
  %v649 = vpop.f32.mrb[0].mxu0
  %650 = vdwg.mxu0
  %v651 = vmax.f32 %v648, 0.0
  %v652 = vld [vmem:[%s5] sm:$0xff]
  %v653 = vld [vmem:[%s5 + $0x8] sm:$0xff]
  %v654 = vld [vmem:[%s5 + $0x10] sm:$0xff]
  %v655 = vld [vmem:[%s5 + $0x18] sm:$0xff]
  %v656 = vld [vmem:[%s5 + $0x20] sm:$0xff]
  %v657 = vld [vmem:[%s5 + $0x28] sm:$0xff]
  %v658 = vld [vmem:[%s5 + $0x30] sm:$0xff]
  %v659 = vld [vmem:[%s5 + $0x38] sm:$0xff]
  %v660 = vld [vmem:[%s5 + $0x40] sm:$0xff]
  %v661 = vld [vmem:[%s5 + $0x48] sm:$0xff]
  %v662 = vld [vmem:[%s5 + $0x50] sm:$0xff]
  %v663 = vld [vmem:[%s5 + $0x58] sm:$0xff]
  %v664 = vld [vmem:[%s5 + $0x60] sm:$0xff]
  %v665 = vld [vmem:[%s5 + $0x68] sm:$0xff]
  %v666 = vld [vmem:[%s5 + $0x70] sm:$0xff]
  %v667 = vld [vmem:[%s5 + $0x78] sm:$0xff]
  %v668 = vld [vmem:[%s6] sm:$0x1]
  %v670 = vlaneseq
  %v671 = vshrl.u32 %v670, 7
  %v672 = vsub.s32 0, %v671
  %v673 = vrot.slane %v668, %v672
  %675 = vmatprep.subr.mxu0 0.0
  %676 = vmatpush1.msra.mxu0 %v652
  %677 = vmatprep.subr.mxu0 0.0
  %678 = vmatpush1.msra.mxu0 %v653
  %679 = vmatprep.subr.mxu0 0.0
  %680 = vmatpush1.msra.mxu0 %v654
  %681 = vmatprep.subr.mxu0 0.0
  %682 = vmatpush1.msra.mxu0 %v655
  %683 = vmatprep.subr.mxu0 0.0
  %684 = vmatpush1.msra.mxu0 %v656
  %685 = vmatprep.subr.mxu0 0.0
  %686 = vmatpush1.msra.mxu0 %v657
  %687 = vmatprep.subr.mxu0 0.0
  %688 = vmatpush1.msra.mxu0 %v658
  %689 = vmatprep.subr.mxu0 0.0
  %690 = vmatpush1.msra.mxu0 %v659
  %691 = vmatprep.subr.mxu0 0.0
  %692 = vmatpush1.msra.mxu0 %v660
  %693 = vmatprep.subr.mxu0 0.0
  %694 = vmatpush1.msra.mxu0 %v661
  %695 = vmatprep.subr.mxu0 0.0
  %696 = vmatpush1.msra.mxu0 %v662
  %697 = vmatprep.subr.mxu0 0.0
  %698 = vmatpush1.msra.mxu0 %v663
  %699 = vmatprep.subr.mxu0 0.0
  %700 = vmatpush1.msra.mxu0 %v664
  %701 = vmatprep.subr.mxu0 0.0
  %702 = vmatpush1.msra.mxu0 %v665
  %703 = vmatprep.subr.mxu0 0.0
  %704 = vmatpush1.msra.mxu0 %v666
  %705 = vmatprep.subr.mxu0 0.0
  %706 = vmatpush1.msra.mxu0 %v667
  %707 = vmatprep.subr.mxu0 0.0
  %708 = vmatpush1.msra.mxu0 0.0
  %709 = vmatprep.subr.mxu0 0.0
  %710 = vmatpush1.msra.mxu0 0.0
  %711 = vmatprep.subr.mxu0 0.0
  %712 = vmatpush1.msra.mxu0 0.0
  %713 = vmatprep.subr.mxu0 0.0
  %714 = vmatpush1.msra.mxu0 0.0
  %715 = vmatprep.subr.mxu0 0.0
  %716 = vmatpush1.msra.mxu0 0.0
  %717 = vmatprep.subr.mxu0 0.0
  %718 = vmatpush1.msra.mxu0 0.0
  %719 = vmatprep.subr.mxu0 0.0
  %720 = vmatpush1.msra.mxu0 0.0
  %721 = vmatprep.subr.mxu0 0.0
  %722 = vmatpush1.msra.mxu0 0.0
  %723 = vmatprep.subr.mxu0 0.0
  %724 = vmatpush1.msra.mxu0 0.0
  %725 = vmatprep.subr.mxu0 0.0
  %726 = vmatpush1.msra.mxu0 0.0
  %727 = vmatprep.subr.mxu0 0.0
  %728 = vmatpush1.msra.mxu0 0.0
  %729 = vmatprep.subr.mxu0 0.0
  %730 = vmatpush1.msra.mxu0 0.0
  %731 = vmatprep.subr.mxu0 0.0
  %732 = vmatpush1.msra.mxu0 0.0
  %733 = vmatprep.subr.mxu0 0.0
  %734 = vmatpush1.msra.mxu0 0.0
  %735 = vmatprep.subr.mxu0 0.0
  %736 = vmatpush1.msra.mxu0 0.0
  %737 = vmatprep.subr.mxu0 0.0
  %738 = vmatpush1.msra.mxu0 0.0
  %739 = vmatprep.mubr.f32.mxu0 0.0
  %740 = vmatmul.mubr.f32.gmra.mrb[0].mxu0 %v651
  %v741 = vpop.f32.mrb[0].mxu0
  %v742 = vadd.f32 %v673, %v741
  %v743 = vpop.f32.mrb[0].mxu0
  %744 = vdwg.mxu0
  %v745 = vsub.f32 0.0, %v742
  %v746 = vmul.f32 %v745, 1.442695
  %v747 = vpow.pop %v746
  %v748 = vadd.f32 %v747, 1.0
  %v749 = vrcp.pop %v748
  %v750 = vmul.f32 1.0, %v749
  %v751 = vld [vmem:[%s7] sm:$0xff]
  %v752 = vld [vmem:[%s7 + $0x8] sm:$0xff]
  %v753 = vld [vmem:[%s7 + $0x10] sm:$0xff]
  %v754 = vld [vmem:[%s7 + $0x18] sm:$0xff]
  %v755 = vld [vmem:[%s7 + $0x20] sm:$0xff]
  %v756 = vld [vmem:[%s7 + $0x28] sm:$0xff]
  %v757 = vld [vmem:[%s7 + $0x30] sm:$0xff]
  %v758 = vld [vmem:[%s7 + $0x38] sm:$0xff]
  %v759 = vld [vmem:[%s7 + $0x40] sm:$0xff]
  %v760 = vld [vmem:[%s7 + $0x48] sm:$0xff]
  %v761 = vld [vmem:[%s7 + $0x50] sm:$0xff]
  %v762 = vld [vmem:[%s7 + $0x58] sm:$0xff]
  %v763 = vld [vmem:[%s7 + $0x60] sm:$0xff]
  %v764 = vld [vmem:[%s7 + $0x68] sm:$0xff]
  %v765 = vld [vmem:[%s7 + $0x70] sm:$0xff]
  %v766 = vld [vmem:[%s7 + $0x78] sm:$0xff]
  %v767 = vld [vmem:[%s8] sm:$0x1]
  %v769 = vlaneseq
  %v770 = vshrl.u32 %v769, 7
  %v771 = vsub.s32 0, %v770
  %v772 = vrot.slane %v767, %v771
  %774 = vmatprep.subr.mxu0 0.0
  %775 = vmatpush1.msra.mxu0 %v751
  %776 = vmatprep.subr.mxu0 0.0
  %777 = vmatpush1.msra.mxu0 %v752
  %778 = vmatprep.subr.mxu0 0.0
  %779 = vmatpush1.msra.mxu0 %v753
  %780 = vmatprep.subr.mxu0 0.0
  %781 = vmatpush1.msra.mxu0 %v754
  %782 = vmatprep.subr.mxu0 0.0
  %783 = vmatpush1.msra.mxu0 %v755
  %784 = vmatprep.subr.mxu0 0.0
  %785 = vmatpush1.msra.mxu0 %v756
  %786 = vmatprep.subr.mxu0 0.0
  %787 = vmatpush1.msra.mxu0 %v757
  %788 = vmatprep.subr.mxu0 0.0
  %789 = vmatpush1.msra.mxu0 %v758
  %790 = vmatprep.subr.mxu0 0.0
  %791 = vmatpush1.msra.mxu0 %v759
  %792 = vmatprep.subr.mxu0 0.0
  %793 = vmatpush1.msra.mxu0 %v760
  %794 = vmatprep.subr.mxu0 0.0
  %795 = vmatpush1.msra.mxu0 %v761
  %796 = vmatprep.subr.mxu0 0.0
  %797 = vmatpush1.msra.mxu0 %v762
  %798 = vmatprep.subr.mxu0 0.0
  %799 = vmatpush1.msra.mxu0 %v763
  %800 = vmatprep.subr.mxu0 0.0
  %801 = vmatpush1.msra.mxu0 %v764
  %802 = vmatprep.subr.mxu0 0.0
  %803 = vmatpush1.msra.mxu0 %v765
  %804 = vmatprep.subr.mxu0 0.0
  %805 = vmatpush1.msra.mxu0 %v766
  %806 = vmatprep.subr.mxu0 0.0
  %807 = vmatpush1.msra.mxu0 0.0
  %808 = vmatprep.subr.mxu0 0.0
  %809 = vmatpush1.msra.mxu0 0.0
  %810 = vmatprep.subr.mxu0 0.0
  %811 = vmatpush1.msra.mxu0 0.0
  %812 = vmatprep.subr.mxu0 0.0
  %813 = vmatpush1.msra.mxu0 0.0
  %814 = vmatprep.subr.mxu0 0.0
  %815 = vmatpush1.msra.mxu0 0.0
  %816 = vmatprep.subr.mxu0 0.0
  %817 = vmatpush1.msra.mxu0 0.0
  %818 = vmatprep.subr.mxu0 0.0
  %819 = vmatpush1.msra.mxu0 0.0
  %820 = vmatprep.subr.mxu0 0.0
  %821 = vmatpush1.msra.mxu0 0.0
  %822 = vmatprep.subr.mxu0 0.0
  %823 = vmatpush1.msra.mxu0 0.0
  %824 = vmatprep.subr.mxu0 0.0
  %825 = vmatpush1.msra.mxu0 0.0
  %826 = vmatprep.subr.mxu0 0.0
  %827 = vmatpush1.msra.mxu0 0.0
  %828 = vmatprep.subr.mxu0 0.0
  %829 = vmatpush1.msra.mxu0 0.0
  %830 = vmatprep.subr.mxu0 0.0
  %831 = vmatpush1.msra.mxu0 0.0
  %832 = vmatprep.subr.mxu0 0.0
  %833 = vmatpush1.msra.mxu0 0.0
  %834 = vmatprep.subr.mxu0 0.0
  %835 = vmatpush1.msra.mxu0 0.0
  %836 = vmatprep.subr.mxu0 0.0
  %837 = vmatpush1.msra.mxu0 0.0
  %838 = vmatprep.mubr.f32.mxu0 0.0
  %839 = vmatmul.mubr.f32.gmra.mrb[0].mxu0 %v750
  %v840 = vpop.f32.mrb[0].mxu0
  %v841 = vadd.f32 %v772, %v840
  %v842 = vpop.f32.mrb[0].mxu0
  %843 = vdwg.mxu0
  %v844 = vld [vmem:[%s9] sm:$0x1]
  %v846 = vlaneseq
  %v847 = vshrl.u32 %v846, 7
  %v848 = vsub.s32 0, %v847
  %v849 = vrot.slane %v844, %v848
  %v851 = vadd.f32 %v841, %v849
  %852 = vst [vmem:[%s10] sm:$0x3] %v851
  // Predicated region
  $region42: #{stacked_stn_forward.10} parent=0 // pred_check
    _
  $region43: #{stacked_stn_forward.10} parent=0 // pred_check_branch
    %854 = sbr.rel (0) target = $region45
  $region44: #{stacked_stn_forward.10} parent=0 // pred_region
    _
  $region45: #{stacked_stn_forward.10} parent=0 // pred_fallthru
    _
  // Predicated region
  $region46: #{stacked_stn_forward.10} parent=0 // pred_check
    _
  $region47: #{stacked_stn_forward.10} parent=0 // pred_check_branch
    %856 = sbr.rel (0) target = $region49
  $region48: #{stacked_stn_forward.10} parent=0 // pred_region
    _
  $region49: #{stacked_stn_forward.10} parent=0 // pred_fallthru
    _

// kernel: stacked_stn_forward.9
$region0: #{stacked_stn_forward.9}
  #allocation0 [shape = 'u32[]', space=smem, size = 0x4, offset = 0x4, fixed_abs, tag = 'smem constant byte address 0x4 - core index']
  #allocation1 [shape = 'u32[144,128]{1,0:T(1,128)}', space=vmem, size = 0x12000, scoped, tag = 'internal scratch']
  %s0 = inlined_call_operand.vmem [shape: bf16[8,1024], index: 0, kind: input, shape index: {}]
  %s1 = inlined_call_operand.vmem [shape: bf16[1024,128], index: 1, kind: input, shape index: {}]
  %s2 = inlined_call_operand.vmem [shape: f32[8,128], index: 2, kind: output, shape index: {}]
  %s3 = sld [smem:[#allocation0]]
  $region22: #{stacked_stn_forward.9} parent=0
    _
  %s5 = ssub.s32 1, %s3
  %s6 = scalar_select 0, %s5, %s3
  // Predicated region
  $region2: #{stacked_stn_forward.9} parent=0 // pred_check
    _
  $region3: #{stacked_stn_forward.9} parent=0 // pred_check_branch
    %8 = sbr.rel (0) target = $region5
  $region4: #{stacked_stn_forward.9} parent=0 // pred_region
    _
  $region5: #{stacked_stn_forward.9} parent=0 // pred_fallthru
    _
  // Predicated region
  $region6: #{stacked_stn_forward.9} parent=0 // pred_check
    _
  $region7: #{stacked_stn_forward.9} parent=0 // pred_check_branch
    %10 = sbr.rel (0) target = $region9
  $region8: #{stacked_stn_forward.9} parent=0 // pred_region
    _
  $region9: #{stacked_stn_forward.9} parent=0 // pred_fallthru
    _
  %p12 = scmp.eq.s32.totalorder 0, 0
  // Predicated region
  $region10: #{stacked_stn_forward.9} parent=0 // pred_check
    %p13 = pneg %p12
  $region11: #{stacked_stn_forward.9} parent=0 // pred_check_branch
    %15 = sbr.rel (%p13) target = $region13
  $region12: #{stacked_stn_forward.9} parent=0 // pred_region
    %16 = vst [vmem:[%s2] sm:$0xff] 0.0
  $region13: #{stacked_stn_forward.9} parent=0 // pred_fallthru
    _
  %v17 = vld [vmem:[%s2] sm:$0xff]
  %v18 = vld [vmem:[%s0] sm:$0xff]
  %v19 = vld [vmem:[%s0 + $0x8] sm:$0xff]
  %v20 = vld [vmem:[%s0 + $0x10] sm:$0xff]
  %v21 = vld [vmem:[%s0 + $0x18] sm:$0xff]
  %v22 = vld [vmem:[%s1] sm:$0xf]
  %v23 = vld [vmem:[%s1 + $0x4] sm:$0xf]
  %v24 = vld [vmem:[%s1 + $0x8] sm:$0xf]
  %v25 = vld [vmem:[%s1 + $0xc] sm:$0xf]
  %v26 = vld [vmem:[%s1 + $0x10] sm:$0xf]
  %v27 = vld [vmem:[%s1 + $0x14] sm:$0xf]
  %v28 = vld [vmem:[%s1 + $0x18] sm:$0xf]
  %v29 = vld [vmem:[%s1 + $0x1c] sm:$0xf]
  %v30 = vld [vmem:[%s1 + $0x20] sm:$0xf]
  %v31 = vld [vmem:[%s1 + $0x24] sm:$0xf]
  %v32 = vld [vmem:[%s1 + $0x28] sm:$0xf]
  %v33 = vld [vmem:[%s1 + $0x2c] sm:$0xf]
  %v34 = vld [vmem:[%s1 + $0x30] sm:$0xf]
  %v35 = vld [vmem:[%s1 + $0x34] sm:$0xf]
  %v36 = vld [vmem:[%s1 + $0x38] sm:$0xf]
  %v37 = vld [vmem:[%s1 + $0x3c] sm:$0xf]
  %v38 = vld [vmem:[%s1 + $0x40] sm:$0xf]
  %v39 = vld [vmem:[%s1 + $0x44] sm:$0xf]
  %v40 = vld [vmem:[%s1 + $0x48] sm:$0xf]
  %v41 = vld [vmem:[%s1 + $0x4c] sm:$0xf]
  %v42 = vld [vmem:[%s1 + $0x50] sm:$0xf]
  %v43 = vld [vmem:[%s1 + $0x54] sm:$0xf]
  %v44 = vld [vmem:[%s1 + $0x58] sm:$0xf]
  %v45 = vld [vmem:[%s1 + $0x5c] sm:$0xf]
  %v46 = vld [vmem:[%s1 + $0x60] sm:$0xf]
  %v47 = vld [vmem:[%s1 + $0x64] sm:$0xf]
  %v48 = vld [vmem:[%s1 + $0x68] sm:$0xf]
  %v49 = vld [vmem:[%s1 + $0x6c] sm:$0xf]
  %v50 = vld [vmem:[%s1 + $0x70] sm:$0xf]
  %v51 = vld [vmem:[%s1 + $0x74] sm:$0xf]
  %v52 = vld [vmem:[%s1 + $0x78] sm:$0xf]
  %v53 = vld [vmem:[%s1 + $0x7c] sm:$0xf]
  %v54 = vld [vmem:[%s1 + $0x80] sm:$0xf]
  %v55 = vld [vmem:[%s1 + $0x84] sm:$0xf]
  %v56 = vld [vmem:[%s1 + $0x88] sm:$0xf]
  %v57 = vld [vmem:[%s1 + $0x8c] sm:$0xf]
  %v58 = vld [vmem:[%s1 + $0x90] sm:$0xf]
  %v59 = vld [vmem:[%s1 + $0x94] sm:$0xf]
  %v60 = vld [vmem:[%s1 + $0x98] sm:$0xf]
  %v61 = vld [vmem:[%s1 + $0x9c] sm:$0xf]
  %v62 = vld [vmem:[%s1 + $0xa0] sm:$0xf]
  %v63 = vld [vmem:[%s1 + $0xa4] sm:$0xf]
  %v64 = vld [vmem:[%s1 + $0xa8] sm:$0xf]
  %v65 = vld [vmem:[%s1 + $0xac] sm:$0xf]
  %v66 = vld [vmem:[%s1 + $0xb0] sm:$0xf]
  %v67 = vld [vmem:[%s1 + $0xb4] sm:$0xf]
  %v68 = vld [vmem:[%s1 + $0xb8] sm:$0xf]
  %v69 = vld [vmem:[%s1 + $0xbc] sm:$0xf]
  %v70 = vld [vmem:[%s1 + $0xc0] sm:$0xf]
  %v71 = vld [vmem:[%s1 + $0xc4] sm:$0xf]
  %v72 = vld [vmem:[%s1 + $0xc8] sm:$0xf]
  %v73 = vld [vmem:[%s1 + $0xcc] sm:$0xf]
  %v74 = vld [vmem:[%s1 + $0xd0] sm:$0xf]
  %v75 = vld [vmem:[%s1 + $0xd4] sm:$0xf]
  %v76 = vld [vmem:[%s1 + $0xd8] sm:$0xf]
  %v77 = vld [vmem:[%s1 + $0xdc] sm:$0xf]
  %v78 = vld [vmem:[%s1 + $0xe0] sm:$0xf]
  %v79 = vld [vmem:[%s1 + $0xe4] sm:$0xf]
  %v80 = vld [vmem:[%s1 + $0xe8] sm:$0xf]
  %v81 = vld [vmem:[%s1 + $0xec] sm:$0xf]
  %v82 = vld [vmem:[%s1 + $0xf0] sm:$0xf]
  %v83 = vld [vmem:[%s1 + $0xf4] sm:$0xf]
  %v84 = vld [vmem:[%s1 + $0xf8] sm:$0xf]
  %v85 = vld [vmem:[%s1 + $0xfc] sm:$0xf]
  %v86 = vld [vmem:[%s1 + $0x100] sm:$0xf]
  %v87 = vld [vmem:[%s1 + $0x104] sm:$0xf]
  %v88 = vld [vmem:[%s1 + $0x108] sm:$0xf]
  %v89 = vld [vmem:[%s1 + $0x10c] sm:$0xf]
  %v90 = vld [vmem:[%s1 + $0x110] sm:$0xf]
  %v91 = vld [vmem:[%s1 + $0x114] sm:$0xf]
  %v92 = vld [vmem:[%s1 + $0x118] sm:$0xf]
  %v93 = vld [vmem:[%s1 + $0x11c] sm:$0xf]
  %v94 = vld [vmem:[%s1 + $0x120] sm:$0xf]
  %v95 = vld [vmem:[%s1 + $0x124] sm:$0xf]
  %v96 = vld [vmem:[%s1 + $0x128] sm:$0xf]
  %v97 = vld [vmem:[%s1 + $0x12c] sm:$0xf]
  %v98 = vld [vmem:[%s1 + $0x130] sm:$0xf]
  %v99 = vld [vmem:[%s1 + $0x134] sm:$0xf]
  %v100 = vld [vmem:[%s1 + $0x138] sm:$0xf]
  %v101 = vld [vmem:[%s1 + $0x13c] sm:$0xf]
  %v102 = vld [vmem:[%s1 + $0x140] sm:$0xf]
  %v103 = vld [vmem:[%s1 + $0x144] sm:$0xf]
  %v104 = vld [vmem:[%s1 + $0x148] sm:$0xf]
  %v105 = vld [vmem:[%s1 + $0x14c] sm:$0xf]
  %v106 = vld [vmem:[%s1 + $0x150] sm:$0xf]
  %v107 = vld [vmem:[%s1 + $0x154] sm:$0xf]
  %v108 = vld [vmem:[%s1 + $0x158] sm:$0xf]
  %v109 = vld [vmem:[%s1 + $0x15c] sm:$0xf]
  %v110 = vld [vmem:[%s1 + $0x160] sm:$0xf]
  %v111 = vld [vmem:[%s1 + $0x164] sm:$0xf]
  %v112 = vld [vmem:[%s1 + $0x168] sm:$0xf]
  %v113 = vld [vmem:[%s1 + $0x16c] sm:$0xf]
  %v114 = vld [vmem:[%s1 + $0x170] sm:$0xf]
  %v115 = vld [vmem:[%s1 + $0x174] sm:$0xf]
  %v116 = vld [vmem:[%s1 + $0x178] sm:$0xf]
  %v117 = vld [vmem:[%s1 + $0x17c] sm:$0xf]
  %v118 = vld [vmem:[%s1 + $0x180] sm:$0xf]
  %v119 = vld [vmem:[%s1 + $0x184] sm:$0xf]
  %v120 = vld [vmem:[%s1 + $0x188] sm:$0xf]
  %v121 = vld [vmem:[%s1 + $0x18c] sm:$0xf]
  %v122 = vld [vmem:[%s1 + $0x190] sm:$0xf]
  %v123 = vld [vmem:[%s1 + $0x194] sm:$0xf]
  %v124 = vld [vmem:[%s1 + $0x198] sm:$0xf]
  %v125 = vld [vmem:[%s1 + $0x19c] sm:$0xf]
  %v126 = vld [vmem:[%s1 + $0x1a0] sm:$0xf]
  %v127 = vld [vmem:[%s1 + $0x1a4] sm:$0xf]
  %v128 = vld [vmem:[%s1 + $0x1a8] sm:$0xf]
  %v129 = vld [vmem:[%s1 + $0x1ac] sm:$0xf]
  %v130 = vld [vmem:[%s1 + $0x1b0] sm:$0xf]
  %v131 = vld [vmem:[%s1 + $0x1b4] sm:$0xf]
  %v132 = vld [vmem:[%s1 + $0x1b8] sm:$0xf]
  %v133 = vld [vmem:[%s1 + $0x1bc] sm:$0xf]
  %v134 = vld [vmem:[%s1 + $0x1c0] sm:$0xf]
  %v135 = vld [vmem:[%s1 + $0x1c4] sm:$0xf]
  %v136 = vld [vmem:[%s1 + $0x1c8] sm:$0xf]
  %v137 = vld [vmem:[%s1 + $0x1cc] sm:$0xf]
  %v138 = vld [vmem:[%s1 + $0x1d0] sm:$0xf]
  %v139 = vld [vmem:[%s1 + $0x1d4] sm:$0xf]
  %v140 = vld [vmem:[%s1 + $0x1d8] sm:$0xf]
  %v141 = vld [vmem:[%s1 + $0x1dc] sm:$0xf]
  %v142 = vld [vmem:[%s1 + $0x1e0] sm:$0xf]
  %v143 = vld [vmem:[%s1 + $0x1e4] sm:$0xf]
  %v144 = vld [vmem:[%s1 + $0x1e8] sm:$0xf]
  %v145 = vld [vmem:[%s1 + $0x1ec] sm:$0xf]
  %v146 = vld [vmem:[%s1 + $0x1f0] sm:$0xf]
  %v147 = vld [vmem:[%s1 + $0x1f4] sm:$0xf]
  %v148 = vld [vmem:[%s1 + $0x1f8] sm:$0xf]
  %v149 = vld [vmem:[%s1 + $0x1fc] sm:$0xf]
  %v154 = vunpack.c.l.b16 %v18
  %v155 = vunpack.c.h.b16 %v18
  %v156 = vunpack.c.l.b16 %v19
  %v157 = vunpack.c.h.b16 %v19
  %v158 = vunpack.c.l.b16 %v20
  %v159 = vunpack.c.h.b16 %v20
  %v160 = vunpack.c.l.b16 %v21
  %v161 = vunpack.c.h.b16 %v21
  %v162 = vpack.c.b16 %v154, %v154
  %v163 = vpack.c.b16 %v155, %v155
  %v164 = vpack.c.b16 %v156, %v156
  %v165 = vpack.c.b16 %v157, %v157
  %v166 = vpack.c.b16 %v158, %v158
  %v167 = vpack.c.b16 %v159, %v159
  %v168 = vpack.c.b16 %v160, %v160
  %v169 = vpack.c.b16 %v161, %v161
  %v306 = vunpack.c.l.b16 %v22
  %v307 = vunpack.c.l.b16 %v23
  %v308 = vunpack.c.l.b16 %v24
  %v309 = vunpack.c.l.b16 %v25
  %v310 = vunpack.c.l.b16 %v26
  %v311 = vunpack.c.l.b16 %v27
  %v312 = vunpack.c.l.b16 %v28
  %v313 = vunpack.c.l.b16 %v29
  %v314 = vunpack.c.l.b16 %v30
  %v315 = vunpack.c.l.b16 %v31
  %v316 = vunpack.c.l.b16 %v32
  %v317 = vunpack.c.l.b16 %v33
  %v318 = vunpack.c.l.b16 %v34
  %v319 = vunpack.c.l.b16 %v35
  %v320 = vunpack.c.l.b16 %v36
  %v321 = vunpack.c.l.b16 %v37
  %v322 = vunpack.c.l.b16 %v38
  %v323 = vunpack.c.l.b16 %v39
  %v324 = vunpack.c.l.b16 %v40
  %v325 = vunpack.c.l.b16 %v41
  %v326 = vunpack.c.l.b16 %v42
  %v327 = vunpack.c.l.b16 %v43
  %v328 = vunpack.c.l.b16 %v44
  %v329 = vunpack.c.l.b16 %v45
  %v330 = vunpack.c.l.b16 %v46
  %v331 = vunpack.c.l.b16 %v47
  %v332 = vunpack.c.l.b16 %v48
  %v333 = vunpack.c.l.b16 %v49
  %v334 = vunpack.c.l.b16 %v50
  %v335 = vunpack.c.l.b16 %v51
  %v336 = vunpack.c.l.b16 %v52
  %v337 = vunpack.c.l.b16 %v53
  %v338 = vunpack.c.l.b16 %v54
  %v339 = vunpack.c.l.b16 %v55
  %v340 = vunpack.c.l.b16 %v56
  %v341 = vunpack.c.l.b16 %v57
  %v342 = vunpack.c.l.b16 %v58
  %v343 = vunpack.c.l.b16 %v59
  %v344 = vunpack.c.l.b16 %v60
  %v345 = vunpack.c.l.b16 %v61
  %v346 = vunpack.c.l.b16 %v62
  %v347 = vunpack.c.l.b16 %v63
  %v348 = vunpack.c.l.b16 %v64
  %v349 = vunpack.c.l.b16 %v65
  %v350 = vunpack.c.l.b16 %v66
  %v351 = vunpack.c.l.b16 %v67
  %v352 = vunpack.c.l.b16 %v68
  %v353 = vunpack.c.l.b16 %v69
  %v354 = vunpack.c.l.b16 %v70
  %v355 = vunpack.c.l.b16 %v71
  %v356 = vunpack.c.l.b16 %v72
  %v357 = vunpack.c.l.b16 %v73
  %v358 = vunpack.c.l.b16 %v74
  %v359 = vunpack.c.l.b16 %v75
  %v360 = vunpack.c.l.b16 %v76
  %v361 = vunpack.c.l.b16 %v77
  %v362 = vunpack.c.l.b16 %v78
  %v363 = vunpack.c.l.b16 %v79
  %v364 = vunpack.c.l.b16 %v80
  %v365 = vunpack.c.l.b16 %v81
  %v366 = vunpack.c.l.b16 %v82
  %v367 = vunpack.c.l.b16 %v83
  %v368 = vunpack.c.l.b16 %v84
  %v369 = vunpack.c.l.b16 %v85
  %v370 = vunpack.c.l.b16 %v86
  %v371 = vunpack.c.l.b16 %v87
  %v372 = vunpack.c.l.b16 %v88
  %v373 = vunpack.c.l.b16 %v89
  %v374 = vunpack.c.l.b16 %v90
  %v375 = vunpack.c.l.b16 %v91
  %v376 = vunpack.c.l.b16 %v92
  %v377 = vunpack.c.l.b16 %v93
  %v378 = vunpack.c.l.b16 %v94
  %v379 = vunpack.c.l.b16 %v95
  %v380 = vunpack.c.l.b16 %v96
  %v381 = vunpack.c.l.b16 %v97
  %v382 = vunpack.c.l.b16 %v98
  %v383 = vunpack.c.l.b16 %v99
  %v384 = vunpack.c.l.b16 %v100
  %v385 = vunpack.c.l.b16 %v101
  %v386 = vunpack.c.l.b16 %v102
  %v387 = vunpack.c.l.b16 %v103
  %v388 = vunpack.c.l.b16 %v104
  %v389 = vunpack.c.l.b16 %v105
  %v390 = vunpack.c.l.b16 %v106
  %v391 = vunpack.c.l.b16 %v107
  %v392 = vunpack.c.l.b16 %v108
  %v393 = vunpack.c.l.b16 %v109
  %v394 = vunpack.c.l.b16 %v110
  %v395 = vunpack.c.l.b16 %v111
  %v396 = vunpack.c.l.b16 %v112
  %v397 = vunpack.c.l.b16 %v113
  %v398 = vunpack.c.l.b16 %v114
  %v399 = vunpack.c.l.b16 %v115
  %v400 = vunpack.c.l.b16 %v116
  %v401 = vunpack.c.l.b16 %v117
  %v402 = vunpack.c.l.b16 %v118
  %v403 = vunpack.c.l.b16 %v119
  %v404 = vunpack.c.l.b16 %v120
  %v405 = vunpack.c.l.b16 %v121
  %v406 = vunpack.c.l.b16 %v122
  %v407 = vunpack.c.l.b16 %v123
  %v408 = vunpack.c.l.b16 %v124
  %v409 = vunpack.c.l.b16 %v125
  %v410 = vunpack.c.l.b16 %v126
  %v411 = vunpack.c.l.b16 %v127
  %v412 = vunpack.c.l.b16 %v128
  %v413 = vunpack.c.l.b16 %v129
  %v414 = vunpack.c.l.b16 %v130
  %v415 = vunpack.c.l.b16 %v131
  %v416 = vunpack.c.l.b16 %v132
  %v417 = vunpack.c.l.b16 %v133
  %v418 = vunpack.c.l.b16 %v134
  %v419 = vunpack.c.l.b16 %v135
  %v420 = vunpack.c.l.b16 %v136
  %v421 = vunpack.c.l.b16 %v137
  %v422 = vunpack.c.l.b16 %v138
  %v423 = vunpack.c.l.b16 %v139
  %v424 = vunpack.c.l.b16 %v140
  %v425 = vunpack.c.l.b16 %v141
  %v426 = vunpack.c.l.b16 %v142
  %v427 = vunpack.c.l.b16 %v143
  %v428 = vunpack.c.l.b16 %v144
  %v429 = vunpack.c.l.b16 %v145
  %v430 = vunpack.c.l.b16 %v146
  %v431 = vunpack.c.l.b16 %v147
  %v432 = vunpack.c.l.b16 %v148
  %v433 = vunpack.c.l.b16 %v149
  %v434 = vpack.c.b16 %v307, %v306
  %v435 = vpack.c.b16 %v309, %v308
  %v436 = vpack.c.b16 %v311, %v310
  %v437 = vpack.c.b16 %v313, %v312
  %v438 = vpack.c.b16 %v315, %v314
  %v439 = vpack.c.b16 %v317, %v316
  %v440 = vpack.c.b16 %v319, %v318
  %v441 = vpack.c.b16 %v321, %v320
  %v442 = vpack.c.b16 %v323, %v322
  %v443 = vpack.c.b16 %v325, %v324
  %v444 = vpack.c.b16 %v327, %v326
  %v445 = vpack.c.b16 %v329, %v328
  %v446 = vpack.c.b16 %v331, %v330
  %v447 = vpack.c.b16 %v333, %v332
  %v448 = vpack.c.b16 %v335, %v334
  %v449 = vpack.c.b16 %v337, %v336
  %v450 = vpack.c.b16 %v339, %v338
  %v451 = vpack.c.b16 %v341, %v340
  %v452 = vpack.c.b16 %v343, %v342
  %v453 = vpack.c.b16 %v345, %v344
  %v454 = vpack.c.b16 %v347, %v346
  %v455 = vpack.c.b16 %v349, %v348
  %v456 = vpack.c.b16 %v351, %v350
  %v457 = vpack.c.b16 %v353, %v352
  %v458 = vpack.c.b16 %v355, %v354
  %v459 = vpack.c.b16 %v357, %v356
  %v460 = vpack.c.b16 %v359, %v358
  %v461 = vpack.c.b16 %v361, %v360
  %v462 = vpack.c.b16 %v363, %v362
  %v463 = vpack.c.b16 %v365, %v364
  %v464 = vpack.c.b16 %v367, %v366
  %v465 = vpack.c.b16 %v369, %v368
  %v466 = vpack.c.b16 %v371, %v370
  %v467 = vpack.c.b16 %v373, %v372
  %v468 = vpack.c.b16 %v375, %v374
  %v469 = vpack.c.b16 %v377, %v376
  %v470 = vpack.c.b16 %v379, %v378
  %v471 = vpack.c.b16 %v381, %v380
  %v472 = vpack.c.b16 %v383, %v382
  %v473 = vpack.c.b16 %v385, %v384
  %v474 = vpack.c.b16 %v387, %v386
  %v475 = vpack.c.b16 %v389, %v388
  %v476 = vpack.c.b16 %v391, %v390
  %v477 = vpack.c.b16 %v393, %v392
  %v478 = vpack.c.b16 %v395, %v394
  %v479 = vpack.c.b16 %v397, %v396
  %v480 = vpack.c.b16 %v399, %v398
  %v481 = vpack.c.b16 %v401, %v400
  %v482 = vpack.c.b16 %v403, %v402
  %v483 = vpack.c.b16 %v405, %v404
  %v484 = vpack.c.b16 %v407, %v406
  %v485 = vpack.c.b16 %v409, %v408
  %v486 = vpack.c.b16 %v411, %v410
  %v487 = vpack.c.b16 %v413, %v412
  %v488 = vpack.c.b16 %v415, %v414
  %v489 = vpack.c.b16 %v417, %v416
  %v490 = vpack.c.b16 %v419, %v418
  %v491 = vpack.c.b16 %v421, %v420
  %v492 = vpack.c.b16 %v423, %v422
  %v493 = vpack.c.b16 %v425, %v424
  %v494 = vpack.c.b16 %v427, %v426
  %v495 = vpack.c.b16 %v429, %v428
  %v496 = vpack.c.b16 %v431, %v430
  %v497 = vpack.c.b16 %v433, %v432
  %562 = vmatprep.subr.bf16.mxu0 0
  %563 = vmatpush1.bf16.msra.mxu0 %v434
  %564 = vmatprep.subr.bf16.mxu0 0
  %565 = vmatpush1.bf16.msra.mxu0 %v435
  %566 = vmatprep.subr.bf16.mxu0 0
  %567 = vmatpush1.bf16.msra.mxu0 %v436
  %568 = vmatprep.subr.bf16.mxu0 0
  %569 = vmatpush1.bf16.msra.mxu0 %v437
  %570 = vmatprep.subr.bf16.mxu0 0
  %571 = vmatpush1.bf16.msra.mxu0 %v438
  %572 = vmatprep.subr.bf16.mxu0 0
  %573 = vmatpush1.bf16.msra.mxu0 %v439
  %574 = vmatprep.subr.bf16.mxu0 0
  %575 = vmatpush1.bf16.msra.mxu0 %v440
  %576 = vmatprep.subr.bf16.mxu0 0
  %577 = vmatpush1.bf16.msra.mxu0 %v441
  %578 = vmatprep.subr.bf16.mxu0 0
  %579 = vmatpush1.bf16.msra.mxu0 %v442
  %580 = vmatprep.subr.bf16.mxu0 0
  %581 = vmatpush1.bf16.msra.mxu0 %v443
  %582 = vmatprep.subr.bf16.mxu0 0
  %583 = vmatpush1.bf16.msra.mxu0 %v444
  %584 = vmatprep.subr.bf16.mxu0 0
  %585 = vmatpush1.bf16.msra.mxu0 %v445
  %586 = vmatprep.subr.bf16.mxu0 0
  %587 = vmatpush1.bf16.msra.mxu0 %v446
  %588 = vmatprep.subr.bf16.mxu0 0
  %589 = vmatpush1.bf16.msra.mxu0 %v447
  %590 = vmatprep.subr.bf16.mxu0 0
  %591 = vmatpush1.bf16.msra.mxu0 %v448
  %592 = vmatprep.subr.bf16.mxu0 0
  %593 = vmatpush1.bf16.msra.mxu0 %v449
  %594 = vmatprep.mubr.bf16.mxu0 %v163
  %595 = vmatmul.mubr.bf16.gmra.mrb[0].mxu0 %v162
  %v596 = vpop.f32.mrb[0].mxu0
  %v597 = vadd.f32 0.0, %v596
  %v598 = vpop.f32.mrb[0].mxu0
  %v599 = vpop.f32.mrb[0].mxu0
  %v600 = vpop.f32.mrb[0].mxu0
  %601 = vdwg.mxu0
  %602 = vmatprep.subr.bf16.mxu0 0
  %603 = vmatpush1.bf16.msra.mxu0 %v450
  %604 = vmatprep.subr.bf16.mxu0 0
  %605 = vmatpush1.bf16.msra.mxu0 %v451
  %606 = vmatprep.subr.bf16.mxu0 0
  %607 = vmatpush1.bf16.msra.mxu0 %v452
  %608 = vmatprep.subr.bf16.mxu0 0
  %609 = vmatpush1.bf16.msra.mxu0 %v453
  %610 = vmatprep.subr.bf16.mxu0 0
  %611 = vmatpush1.bf16.msra.mxu0 %v454
  %612 = vmatprep.subr.bf16.mxu0 0
  %613 = vmatpush1.bf16.msra.mxu0 %v455
  %614 = vmatprep.subr.bf16.mxu0 0
  %615 = vmatpush1.bf16.msra.mxu0 %v456
  %616 = vmatprep.subr.bf16.mxu0 0
  %617 = vmatpush1.bf16.msra.mxu0 %v457
  %618 = vmatprep.subr.bf16.mxu0 0
  %619 = vmatpush1.bf16.msra.mxu0 %v458
  %620 = vmatprep.subr.bf16.mxu0 0
  %621 = vmatpush1.bf16.msra.mxu0 %v459
  %622 = vmatprep.subr.bf16.mxu0 0
  %623 = vmatpush1.bf16.msra.mxu0 %v460
  %624 = vmatprep.subr.bf16.mxu0 0
  %625 = vmatpush1.bf16.msra.mxu0 %v461
  %626 = vmatprep.subr.bf16.mxu0 0
  %627 = vmatpush1.bf16.msra.mxu0 %v462
  %628 = vmatprep.subr.bf16.mxu0 0
  %629 = vmatpush1.bf16.msra.mxu0 %v463
  %630 = vmatprep.subr.bf16.mxu0 0
  %631 = vmatpush1.bf16.msra.mxu0 %v464
  %632 = vmatprep.subr.bf16.mxu0 0
  %633 = vmatpush1.bf16.msra.mxu0 %v465
  %634 = vmatprep.mubr.bf16.mxu0 %v165
  %635 = vmatmul.mubr.bf16.gmra.mrb[0].mxu0 %v164
  %v636 = vpop.f32.mrb[0].mxu0
  %v637 = vadd.f32 %v597, %v636
  %v638 = vpop.f32.mrb[0].mxu0
  %v639 = vpop.f32.mrb[0].mxu0
  %v640 = vpop.f32.mrb[0].mxu0
  %641 = vdwg.mxu0
  %642 = vmatprep.subr.bf16.mxu0 0
  %643 = vmatpush1.bf16.msra.mxu0 %v466
  %644 = vmatprep.subr.bf16.mxu0 0
  %645 = vmatpush1.bf16.msra.mxu0 %v467
  %646 = vmatprep.subr.bf16.mxu0 0
  %647 = vmatpush1.bf16.msra.mxu0 %v468
  %648 = vmatprep.subr.bf16.mxu0 0
  %649 = vmatpush1.bf16.msra.mxu0 %v469
  %650 = vmatprep.subr.bf16.mxu0 0
  %651 = vmatpush1.bf16.msra.mxu0 %v470
  %652 = vmatprep.subr.bf16.mxu0 0
  %653 = vmatpush1.bf16.msra.mxu0 %v471
  %654 = vmatprep.subr.bf16.mxu0 0
  %655 = vmatpush1.bf16.msra.mxu0 %v472
  %656 = vmatprep.subr.bf16.mxu0 0
  %657 = vmatpush1.bf16.msra.mxu0 %v473
  %658 = vmatprep.subr.bf16.mxu0 0
  %659 = vmatpush1.bf16.msra.mxu0 %v474
  %660 = vmatprep.subr.bf16.mxu0 0
  %661 = vmatpush1.bf16.msra.mxu0 %v475
  %662 = vmatprep.subr.bf16.mxu0 0
  %663 = vmatpush1.bf16.msra.mxu0 %v476
  %664 = vmatprep.subr.bf16.mxu0 0
  %665 = vmatpush1.bf16.msra.mxu0 %v477
  %666 = vmatprep.subr.bf16.mxu0 0
  %667 = vmatpush1.bf16.msra.mxu0 %v478
  %668 = vmatprep.subr.bf16.mxu0 0
  %669 = vmatpush1.bf16.msra.mxu0 %v479
  %670 = vmatprep.subr.bf16.mxu0 0
  %671 = vmatpush1.bf16.msra.mxu0 %v480
  %672 = vmatprep.subr.bf16.mxu0 0
  %673 = vmatpush1.bf16.msra.mxu0 %v481
  %674 = vmatprep.mubr.bf16.mxu0 %v167
  %675 = vmatmul.mubr.bf16.gmra.mrb[0].mxu0 %v166
  %v676 = vpop.f32.mrb[0].mxu0
  %v677 = vadd.f32 %v637, %v676
  %v678 = vpop.f32.mrb[0].mxu0
  %v679 = vpop.f32.mrb[0].mxu0
  %v680 = vpop.f32.mrb[0].mxu0
  %681 = vdwg.mxu0
  %682 = vmatprep.subr.bf16.mxu0 0
  %683 = vmatpush1.bf16.msra.mxu0 %v482
  %684 = vmatprep.subr.bf16.mxu0 0
  %685 = vmatpush1.bf16.msra.mxu0 %v483
  %686 = vmatprep.subr.bf16.mxu0 0
  %687 = vmatpush1.bf16.msra.mxu0 %v484
  %688 = vmatprep.subr.bf16.mxu0 0
  %689 = vmatpush1.bf16.msra.mxu0 %v485
  %690 = vmatprep.subr.bf16.mxu0 0
  %691 = vmatpush1.bf16.msra.mxu0 %v486
  %692 = vmatprep.subr.bf16.mxu0 0
  %693 = vmatpush1.bf16.msra.mxu0 %v487
  %694 = vmatprep.subr.bf16.mxu0 0
  %695 = vmatpush1.bf16.msra.mxu0 %v488
  %696 = vmatprep.subr.bf16.mxu0 0
  %697 = vmatpush1.bf16.msra.mxu0 %v489
  %698 = vmatprep.subr.bf16.mxu0 0
  %699 = vmatpush1.bf16.msra.mxu0 %v490
  %700 = vmatprep.subr.bf16.mxu0 0
  %701 = vmatpush1.bf16.msra.mxu0 %v491
  %702 = vmatprep.subr.bf16.mxu0 0
  %703 = vmatpush1.bf16.msra.mxu0 %v492
  %704 = vmatprep.subr.bf16.mxu0 0
  %705 = vmatpush1.bf16.msra.mxu0 %v493
  %706 = vmatprep.subr.bf16.mxu0 0
  %707 = vmatpush1.bf16.msra.mxu0 %v494
  %708 = vmatprep.subr.bf16.mxu0 0
  %709 = vmatpush1.bf16.msra.mxu0 %v495
  %710 = vmatprep.subr.bf16.mxu0 0
  %711 = vmatpush1.bf16.msra.mxu0 %v496
  %712 = vmatprep.subr.bf16.mxu0 0
  %713 = vmatpush1.bf16.msra.mxu0 %v497
  %714 = vmatprep.mubr.bf16.mxu0 %v169
  %715 = vmatmul.mubr.bf16.gmra.mrb[0].mxu0 %v168
  %v716 = vpop.f32.mrb[0].mxu0
  %v717 = vadd.f32 %v677, %v716
  %v718 = vpop.f32.mrb[0].mxu0
  %v719 = vpop.f32.mrb[0].mxu0
  %v720 = vpop.f32.mrb[0].mxu0
  %721 = vdwg.mxu0
  %v722 = vadd.f32 %v17, %v717
  %723 = vst [vmem:[%s2] sm:$0xff] %v722
  // Predicated region
  $region14: #{stacked_stn_forward.9} parent=0 // pred_check
    _
  $region15: #{stacked_stn_forward.9} parent=0 // pred_check_branch
    %725 = sbr.rel (0) target = $region17
  $region16: #{stacked_stn_forward.9} parent=0 // pred_region
    _
  $region17: #{stacked_stn_forward.9} parent=0 // pred_fallthru
    _
  // Predicated region
  $region18: #{stacked_stn_forward.9} parent=0 // pred_check
    _
  $region19: #{stacked_stn_forward.9} parent=0 // pred_check_branch
    %727 = sbr.rel (0) target = $region21
  $region20: #{stacked_stn_forward.9} parent=0 // pred_region
    _
  $region21: #{stacked_stn_forward.9} parent=0 // pred_fallthru
    _

// kernel: stacked_stn_forward.11
$region0: #{stacked_stn_forward.11}
  #allocation0 [shape = 'u32[]', space=smem, size = 0x4, offset = 0x4, fixed_abs, tag = 'smem constant byte address 0x4 - core index']
  #allocation1 [shape = 'u32[144,128]{1,0:T(1,128)}', space=vmem, size = 0x12000, scoped, tag = 'internal scratch']
  %s0 = inlined_call_operand.vmem [shape: f32[2,6], index: 0, kind: input, shape index: {}]
  %s1 = inlined_call_operand.vmem [shape: f32[1,1024], index: 1, kind: input, shape index: {}]
  %s2 = inlined_call_operand.vmem [shape: f32[1,1024], index: 2, kind: input, shape index: {}]
  %s3 = inlined_call_operand.vmem [shape: bf16[2,64,32], index: 3, kind: input, shape index: {}]
  %s4 = inlined_call_operand.vmem [shape: bf16[2,2,1024], index: 4, kind: output, shape index: {}]
  %s5 = sld [smem:[#allocation0]]
  $region53: #{stacked_stn_forward.11} parent=0
    _
  %s7 = ssub.s32 1, %s5
  %s8 = scalar_select 0, %s7, %s5
  $region1: #{stacked_stn_forward.11} parent=0
    #allocation2 [shape = 'u8[1024]{0}', space=smem, size = 0x400, scoped, tag = 'input window, operand 0, single buffered']
    #allocation3 [shape = 's32[2]{0}', space=sflag, size = 0x8, scoped, tag = 'scoped memory for stacked_stn_forward.11']
    %9 = vsyncpa [#allocation3], 0
    loop: start=0, step=1, limit=4
    $region2: #{stacked_stn_forward.11} parent=1 // loop_pre_header
      _
    $region3: #{stacked_stn_forward.11} parent=1 // loop_header
      %s11 = sphi 0, %s15
      %p12 = scmp.ge.s32.totalorder %s11, 4
      %s18 = sphi 0, %s30
      %s19 = sphi 0, %s26
      %s20 = sphi 0, %s18
      %s21 = sphi 0, %s19
      %s22 = sphi 0, %s20
      %s23 = sphi 0, %s21
      %s31 = sphi 0, %s31
      %s33 = sphi 0, %s31
      %s34 = sphi 0, %s33
      %s48 = sphi 0, %s34
      %s54 = sphi 0, %s56
      %s57 = sphi 0, %s54
      %s58 = sphi 0, %s57
      %s74 = sphi 0, %s58
      %s80 = sphi 0, %s82
      %s83 = sphi 0, %s80
      %s84 = sphi 0, %s83
      %s100 = sphi 0, %s84
      %s106 = sphi 0, %s108
      %s109 = sphi 0, %s106
      %s110 = sphi 0, %s109
      %s126 = sphi 0, %s110
      %s134 = sphi 0, %s136
      %s137 = sphi 0, %s134
      %s138 = sphi 0, %s137
      %s154 = sphi 0, %s138
    $region4: #{stacked_stn_forward.11} parent=1 // loop_header_branch
      %14 = sbr.rel (%p12) target = $region8
    $region5: #{stacked_stn_forward.11} parent=1 // loop_body
      %s16 = ssub.s32 %s11, 1
      %s17 = ssub.s32 %s11, 2
      %s24 = sadd.s32 1, %s19
      %p25 = scmp.ge.s32.totalorder %s24, 1
      %s26 = scalar_select %p25, 0, %s24
      %s27 = sadd.s32 1, %s18
      %s28 = scalar_select %p25, %s27, %s18
      %p29 = scmp.ge.s32.totalorder %s28, 2
      %s30 = scalar_select %p29, 0, %s28
      %s32 = sadd.s32 %s31, 1
      %p35 = scmp.eq.s32.totalorder %s11, 1
      %p36 = scmp.ne.s32.totalorder %s31, %s33
      %p37 = scmp.eq.s32.totalorder %s11, 0
      %p38 = por %p36, %p37
      %p39 = scmp.ne.s32.totalorder %s31, %s33
      %p40 = scmp.eq.s32.totalorder %s16, 1
      %p41 = por %p39, %p40
      %p42 = scmp.ne.s32.totalorder %s33, %s34
      %p43 = scmp.eq.s32.totalorder %s16, 0
      %p44 = por %p42, %p43
      %p45 = scmp.ne.s32.totalorder %s33, %s34
      %p46 = scmp.eq.s32.totalorder %s17, 1
      %p47 = por %p45, %p46
      %p49 = scmp.ne.s32.totalorder %s34, %s48
      %p50 = scmp.eq.s32.totalorder %s17, 0
      %p51 = por %p49, %p50
      %s52 = ssub.s32 %s19, %s26
      %p53 = scmp.eq.s32.totalorder %s52, 0
      %s55 = sadd.s32 %s54, 1
      %s56 = scalar_select %p53, %s54, %s55
      %p59 = pneg %p53
      %p60 = scmp.eq.s32.totalorder %s11, 1
      %p61 = por %p59, %p60
      %p62 = scmp.ne.s32.totalorder %s54, %s57
      %p63 = scmp.eq.s32.totalorder %s11, 0
      %p64 = por %p62, %p63
      %p65 = scmp.ne.s32.totalorder %s54, %s57
      %p66 = scmp.eq.s32.totalorder %s16, 1
      %p67 = por %p65, %p66
      %p68 = scmp.ne.s32.totalorder %s57, %s58
      %p69 = scmp.eq.s32.totalorder %s16, 0
      %p70 = por %p68, %p69
      %p71 = scmp.ne.s32.totalorder %s57, %s58
      %p72 = scmp.eq.s32.totalorder %s17, 1
      %p73 = por %p71, %p72
      %p75 = scmp.ne.s32.totalorder %s58, %s74
      %p76 = scmp.eq.s32.totalorder %s17, 0
      %p77 = por %p75, %p76
      %s78 = ssub.s32 %s19, %s26
      %p79 = scmp.eq.s32.totalorder %s78, 0
      %s81 = sadd.s32 %s80, 1
      %s82 = scalar_select %p79, %s80, %s81
      %p85 = pneg %p79
      %p86 = scmp.eq.s32.totalorder %s11, 1
      %p87 = por %p85, %p86
      %p88 = scmp.ne.s32.totalorder %s80, %s83
      %p89 = scmp.eq.s32.totalorder %s11, 0
      %p90 = por %p88, %p89
      %p91 = scmp.ne.s32.totalorder %s80, %s83
      %p92 = scmp.eq.s32.totalorder %s16, 1
      %p93 = por %p91, %p92
      %p94 = scmp.ne.s32.totalorder %s83, %s84
      %p95 = scmp.eq.s32.totalorder %s16, 0
      %p96 = por %p94, %p95
      %p97 = scmp.ne.s32.totalorder %s83, %s84
      %p98 = scmp.eq.s32.totalorder %s17, 1
      %p99 = por %p97, %p98
      %p101 = scmp.ne.s32.totalorder %s84, %s100
      %p102 = scmp.eq.s32.totalorder %s17, 0
      %p103 = por %p101, %p102
      %s104 = ssub.s32 %s18, %s30
      %p105 = scmp.eq.s32.totalorder %s104, 0
      %s107 = sadd.s32 %s106, 1
      %s108 = scalar_select %p105, %s106, %s107
      %p111 = pneg %p105
      %p112 = scmp.eq.s32.totalorder %s11, 1
      %p113 = por %p111, %p112
      %p114 = scmp.ne.s32.totalorder %s106, %s109
      %p115 = scmp.eq.s32.totalorder %s11, 0
      %p116 = por %p114, %p115
      %p117 = scmp.ne.s32.totalorder %s106, %s109
      %p118 = scmp.eq.s32.totalorder %s16, 1
      %p119 = por %p117, %p118
      %p120 = scmp.ne.s32.totalorder %s109, %s110
      %p121 = scmp.eq.s32.totalorder %s16, 0
      %p122 = por %p120, %p121
      %p123 = scmp.ne.s32.totalorder %s109, %s110
      %p124 = scmp.eq.s32.totalorder %s17, 1
      %p125 = por %p123, %p124
      %p127 = scmp.ne.s32.totalorder %s110, %s126
      %p128 = scmp.eq.s32.totalorder %s17, 0
      %p129 = por %p127, %p128
      %s130 = ssub.s32 %s18, %s30
      %s131 = ssub.s32 %s19, %s26
      %s132 = sor.u32 %s130, %s131
      %p133 = scmp.eq.s32.totalorder %s132, 0
      %s135 = sadd.s32 %s134, 1
      %s136 = scalar_select %p133, %s134, %s135
      %p139 = pneg %p133
      %p140 = scmp.eq.s32.totalorder %s11, 1
      %p141 = por %p139, %p140
      %p142 = scmp.ne.s32.totalorder %s134, %s137
      %p143 = scmp.eq.s32.totalorder %s11, 0
      %p144 = por %p142, %p143
      %p145 = scmp.ne.s32.totalorder %s134, %s137
      %p146 = scmp.eq.s32.totalorder %s16, 1
      %p147 = por %p145, %p146
      %p148 = scmp.ne.s32.totalorder %s137, %s138
      %p149 = scmp.eq.s32.totalorder %s16, 0
      %p150 = por %p148, %p149
      %p151 = scmp.ne.s32.totalorder %s137, %s138
      %p152 = scmp.eq.s32.totalorder %s17, 1
      %p153 = por %p151, %p152
      %p155 = scmp.ne.s32.totalorder %s138, %s154
      %p156 = scmp.eq.s32.totalorder %s17, 0
      %p157 = por %p155, %p156
      %p158 = scmp.le.s32.totalorder 1, %s11
      %p159 = scmp.lt.s32.totalorder %s11, 3
      %p160 = pnand %p158, %p159
      %p161 = pneg %p160
      // Predicated region
      $region9: #{stacked_stn_forward.11} parent=5 // pred_check
        _
      $region10: #{stacked_stn_forward.11} parent=5 // pred_check_branch
        %163 = sbr.rel (%p160) target = $region12
      $region11: #{stacked_stn_forward.11} parent=5 // pred_region
        %s164 = ssub.s32 %s11, 1
        // Predicated region
        $region13: #{stacked_stn_forward.11} parent=11 // pred_check
          %p165 = pneg %p44
        $region14: #{stacked_stn_forward.11} parent=11 // pred_check_branch
          %167 = sbr.rel (%p165) target = $region16
        $region15: #{stacked_stn_forward.11} parent=11 // pred_region
          %s169 = ssub.s32 32, 32
          %170 = vsyncadd [#allocation3], %s169
          %s172 = sshll.u32 %s0, 4
          %s173 = int_to_ptr.vmem [resolvable:$true] %s172
          %175 = dma.vmem_to_smem %s173, 32, [#allocation2], [#allocation3]
        $region16: #{stacked_stn_forward.11} parent=11 // pred_fallthru
          _
        // Predicated region
        $region17: #{stacked_stn_forward.11} parent=11 // pred_check
          %p176 = pneg %p70
        $region18: #{stacked_stn_forward.11} parent=11 // pred_check_branch
          %178 = sbr.rel (%p176) target = $region20
        $region19: #{stacked_stn_forward.11} parent=11 // pred_region
          %s179 = smul.u32 8, %s21
          %p180 = scmp.lt.s32.totalorder %s179, 7
          %s181 = scalar_select %p180, %s179, 7
          %s182 = scalar_lea.vmem %s1, %s181
          %s183 = smul.u32 8, %s21
        $region20: #{stacked_stn_forward.11} parent=11 // pred_fallthru
          _
        // Predicated region
        $region21: #{stacked_stn_forward.11} parent=11 // pred_check
          %p184 = pneg %p96
        $region22: #{stacked_stn_forward.11} parent=11 // pred_check_branch
          %186 = sbr.rel (%p184) target = $region24
        $region23: #{stacked_stn_forward.11} parent=11 // pred_region
          %s187 = smul.u32 8, %s21
          %p188 = scmp.lt.s32.totalorder %s187, 7
          %s189 = scalar_select %p188, %s187, 7
          %s190 = scalar_lea.vmem %s2, %s189
          %s191 = smul.u32 8, %s21
        $region24: #{stacked_stn_forward.11} parent=11 // pred_fallthru
          _
      $region12: #{stacked_stn_forward.11} parent=5 // pred_fallthru
        _
      %p192 = scmp.lt.s32.totalorder %s11, 2
      // Predicated region
      $region25: #{stacked_stn_forward.11} parent=5 // pred_check
        %p193 = pneg %p192
      $region26: #{stacked_stn_forward.11} parent=5 // pred_check_branch
        %195 = sbr.rel (%p193) target = $region28
      $region27: #{stacked_stn_forward.11} parent=5 // pred_region
        // Predicated region
        $region29: #{stacked_stn_forward.11} parent=27 // pred_check
          %p196 = pneg %p116
        $region30: #{stacked_stn_forward.11} parent=27 // pred_check_branch
          %198 = sbr.rel (%p196) target = $region32
        $region31: #{stacked_stn_forward.11} parent=27 // pred_region
          %p199 = scmp.lt.s32.totalorder %s18, 1
          %s200 = scalar_select %p199, %s18, 1
          %s201 = smul.addr %s200, 8
          %s202 = smul.addr %s201, 4
          %s203 = scalar_lea.vmem %s3, %s202
        $region32: #{stacked_stn_forward.11} parent=27 // pred_fallthru
          _
      $region28: #{stacked_stn_forward.11} parent=5 // pred_fallthru
        _
      %p204 = scmp.le.s32.totalorder 1, %s11
      %p205 = scmp.lt.s32.totalorder %s11, 3
      %p206 = pnand %p204, %p205
      %p207 = pneg %p206
      // Predicated region
      $region33: #{stacked_stn_forward.11} parent=5 // pred_check
        _
      $region34: #{stacked_stn_forward.11} parent=5 // pred_check_branch
        %209 = sbr.rel (%p206) target = $region36
      $region35: #{stacked_stn_forward.11} parent=5 // pred_region
        %s210 = ssub.s32 %s11, 1
        // Predicated region
        $region37: #{stacked_stn_forward.11} parent=35 // pred_check
          %p211 = pneg %p44
        $region38: #{stacked_stn_forward.11} parent=35 // pred_check_branch
          %213 = sbr.rel (%p211) target = $region40
        $region39: #{stacked_stn_forward.11} parent=35 // pred_region
          %214 = dma.done [#allocation3], 32
        $region40: #{stacked_stn_forward.11} parent=35 // pred_fallthru
          _
        %215 = sfence
        %p216 = pneg %p44
        %p217 = pneg %p41
        %s218 = smul.u32 8, %s21
        %p219 = scmp.lt.s32.totalorder %s218, 7
        %s220 = scalar_select %p219, %s218, 7
        %s221 = scalar_lea.vmem %s1, %s220
        %p222 = pneg %p70
        %p223 = pneg %p67
        %s224 = smul.u32 8, %s21
        %p225 = scmp.lt.s32.totalorder %s224, 7
        %s226 = scalar_select %p225, %s224, 7
        %s227 = scalar_lea.vmem %s2, %s226
        %p228 = pneg %p96
        %p229 = pneg %p93
        %p230 = scmp.lt.s32.totalorder %s20, 1
        %s231 = scalar_select %p230, %s20, 1
        %s232 = smul.addr %s231, 8
        %s233 = smul.addr %s232, 4
        %s234 = scalar_lea.vmem %s3, %s233
        %p235 = pneg %p122
        %p236 = pneg %p119
        %p237 = pneg %p150
        %p238 = pneg %p147
        %s239 = smul.u32 8, %s21
        %p240 = scmp.lt.s32.totalorder %s20, 1
        %s241 = scalar_select %p240, %s20, 1
        %p242 = scmp.lt.s32.totalorder %s239, 7
        %s243 = scalar_select %p242, %s239, 7
        %s244 = smul.addr %s241, 8
        %s245 = sadd.s32 %s243, %s244
        %s246 = scalar_lea.vmem %s4, %s245
        %s247 = smul.u32 8, %s21
        %p248 = scmp.lt.s32.totalorder %s247, 7
        %s249 = scalar_select %p248, %s247, 7
        %s250 = scalar_lea.vmem %s1, %s249
        %s251 = smul.u32 8, %s21
        %s252 = smul.u32 8, %s21
        %p253 = scmp.lt.s32.totalorder %s252, 7
        %s254 = scalar_select %p253, %s252, 7
        %s255 = scalar_lea.vmem %s2, %s254
        %s256 = smul.u32 8, %s21
        %p257 = scmp.lt.s32.totalorder %s20, 1
        %s258 = scalar_select %p257, %s20, 1
        %s259 = smul.addr %s258, 8
        %s260 = smul.addr %s259, 4
        %s261 = scalar_lea.vmem %s3, %s260
        %s262 = smul.u32 8, %s21
        %p263 = scmp.lt.s32.totalorder %s20, 1
        %s264 = scalar_select %p263, %s20, 1
        %p265 = scmp.lt.s32.totalorder %s262, 7
        %s266 = scalar_select %p265, %s262, 7
        %s267 = smul.addr %s264, 8
        %s268 = sadd.s32 %s266, %s267
        %s269 = scalar_lea.vmem %s4, %s268
        %s270 = smul.u32 8, %s21
        %s272 = smul.u32 %s20, 128
        %s273 = sld [smem:[#allocation2 + %s272]]
        %s274 = sadd.s32 %s272, 1
        %s275 = sld [smem:[#allocation2 + %s274]]
        %s276 = sadd.s32 %s272, 2
        %s277 = sld [smem:[#allocation2 + %s276]]
        %s278 = sadd.s32 %s272, 3
        %s279 = sld [smem:[#allocation2 + %s278]]
        %s280 = sadd.s32 %s272, 4
        %s281 = sld [smem:[#allocation2 + %s280]]
        %s282 = sadd.s32 %s272, 5
        %s283 = sld [smem:[#allocation2 + %s282]]
        %v284 = vld [vmem:[%s250] sm:$0xff]
        %v285 = vld [vmem:[%s255] sm:$0xff]
        %v286 = vstv %s273
        %v287 = vmul.f32 %v286, %v284
        %v288 = vstv %s275
        %v289 = vmul.f32 %v288, %v285
        %v290 = vadd.f32 %v287, %v289
        %v291 = vstv %s277
        %v292 = vadd.f32 %v290, %v291
        %v293 = vstv %s279
        %v294 = vmul.f32 %v293, %v284
        %v295 = vstv %s281
        %v296 = vmul.f32 %v295, %v285
        %v297 = vadd.f32 %v294, %v296
        %v298 = vstv %s283
        %v299 = vadd.f32 %v297, %v298
        %v300 = vadd.f32 %v292, 1.0
        %v301 = vmul.f32 %v300, 15.5
        %v302 = vadd.f32 %v299, 1.0
        %v303 = vmul.f32 %v302, 15.5
        %v304 = vfloor.f32 %v301
        %v305 = vfloor.f32 %v303
        %v306 = vsub.f32 %v301, %v304
        %v307 = vsub.f32 %v303, %v305
        %v308 = vadd.f32 %v306, 1.0
        %v309 = vmul.f32 %v308, -0.75
        %v310 = vsub.f32 %v309, -3.75
        %v311 = vmul.f32 %v310, %v308
        %v312 = vadd.f32 %v311, -6.0
        %v313 = vmul.f32 %v312, %v308
        %v314 = vsub.f32 %v313, -3.0
        %v315 = vmul.f32 %v306, 1.25
        %v316 = vsub.f32 %v315, 2.25
        %v317 = vmul.f32 %v316, %v306
        %v318 = vmul.f32 %v317, %v306
        %v319 = vadd.f32 %v318, 1.0
        %v320 = vsub.f32 1.0, %v306
        %v321 = vmul.f32 %v320, 1.25
        %v322 = vsub.f32 %v321, 2.25
        %v323 = vmul.f32 %v322, %v320
        %v324 = vmul.f32 %v323, %v320
        %v325 = vadd.f32 %v324, 1.0
        %v326 = vsub.f32 2.0, %v306
        %v327 = vmul.f32 %v326, -0.75
        %v328 = vsub.f32 %v327, -3.75
        %v329 = vmul.f32 %v328, %v326
        %v330 = vadd.f32 %v329, -6.0
        %v331 = vmul.f32 %v330, %v326
        %v332 = vsub.f32 %v331, -3.0
        %v333 = vadd.f32 %v307, 1.0
        %v334 = vmul.f32 %v333, -0.75
        %v335 = vsub.f32 %v334, -3.75
        %v336 = vmul.f32 %v335, %v333
        %v337 = vadd.f32 %v336, -6.0
        %v338 = vmul.f32 %v337, %v333
        %v339 = vsub.f32 %v338, -3.0
        %v340 = vmul.f32 %v307, 1.25
        %v341 = vsub.f32 %v340, 2.25
        %v342 = vmul.f32 %v341, %v307
        %v343 = vmul.f32 %v342, %v307
        %v344 = vadd.f32 %v343, 1.0
        %v345 = vsub.f32 1.0, %v307
        %v346 = vmul.f32 %v345, 1.25
        %v347 = vsub.f32 %v346, 2.25
        %v348 = vmul.f32 %v347, %v345
        %v349 = vmul.f32 %v348, %v345
        %v350 = vadd.f32 %v349, 1.0
        %v351 = vsub.f32 2.0, %v307
        %v352 = vmul.f32 %v351, -0.75
        %v353 = vsub.f32 %v352, -3.75
        %v354 = vmul.f32 %v353, %v351
        %v355 = vadd.f32 %v354, -6.0
        %v356 = vmul.f32 %v355, %v351
        %v357 = vsub.f32 %v356, -3.0
        %v358 = vlaneseq
        %v359 = vshrl.u32 %v358, 7
        %v360 = vadd.s32 %v359, 8
        %v361 = vadd.s32 %v359, 16
        %v362 = vadd.s32 %v359, 24
        %v363 = vadd.f32 %v305, -1.0
        %v364 = vmax.f32 %v363, 0.0
        %v365 = vmin.f32 %v364, 31.0
        %v366 = vcvt.f32.s32.to.zero.pseudo %v365
        %v367 = vadd.f32 %v304, -1.0
        %v368 = vmax.f32 %v367, 0.0
        %v369 = vmin.f32 %v368, 31.0
        %v370 = vcvt.f32.s32.to.zero.pseudo %v369
        %v371 = vlaneseq
        %v372 = vshrl.u32 %v371, 7
        %v373 = vsub.s32 0, %v372
        %v374 = vrot.slane %v366, %v373
        %v375 = vlaneseq
        %v376 = vshrl.u32 %v375, 7
        %v377 = vsub.s32 1, %v376
        %v378 = vrot.slane %v366, %v377
        %v379 = vlaneseq
        %v380 = vshrl.u32 %v379, 7
        %v381 = vsub.s32 2, %v380
        %v382 = vrot.slane %v366, %v381
        %v383 = vlaneseq
        %v384 = vshrl.u32 %v383, 7
        %v385 = vsub.s32 3, %v384
        %v386 = vrot.slane %v366, %v385
        %v387 = vlaneseq
        %v388 = vshrl.u32 %v387, 7
        %v389 = vsub.s32 4, %v388
        %v390 = vrot.slane %v366, %v389
        %v391 = vlaneseq
        %v392 = vshrl.u32 %v391, 7
        %v393 = vsub.s32 5, %v392
        %v394 = vrot.slane %v366, %v393
        %v395 = vlaneseq
        %v396 = vshrl.u32 %v395, 7
        %v397 = vsub.s32 6, %v396
        %v398 = vrot.slane %v366, %v397
        %v399 = vlaneseq
        %v400 = vshrl.u32 %v399, 7
        %v401 = vsub.s32 7, %v400
        %v402 = vrot.slane %v366, %v401
        %vm403 = vcmp.eq.s32.totalorder %v359, %v374
        %vm404 = vcmp.eq.s32.totalorder %v359, %v378
        %vm405 = vcmp.eq.s32.totalorder %v359, %v382
        %vm406 = vcmp.eq.s32.totalorder %v359, %v386
        %vm407 = vcmp.eq.s32.totalorder %v359, %v390
        %vm408 = vcmp.eq.s32.totalorder %v359, %v394
        %vm409 = vcmp.eq.s32.totalorder %v359, %v398
        %vm410 = vcmp.eq.s32.totalorder %v359, %v402
        %vm411 = vcmp.eq.s32.totalorder %v360, %v374
        %vm412 = vcmp.eq.s32.totalorder %v360, %v378
        %vm413 = vcmp.eq.s32.totalorder %v360, %v382
        %vm414 = vcmp.eq.s32.totalorder %v360, %v386
        %vm415 = vcmp.eq.s32.totalorder %v360, %v390
        %vm416 = vcmp.eq.s32.totalorder %v360, %v394
        %vm417 = vcmp.eq.s32.totalorder %v360, %v398
        %vm418 = vcmp.eq.s32.totalorder %v360, %v402
        %vm419 = vcmp.eq.s32.totalorder %v361, %v374
        %vm420 = vcmp.eq.s32.totalorder %v361, %v378
        %vm421 = vcmp.eq.s32.totalorder %v361, %v382
        %vm422 = vcmp.eq.s32.totalorder %v361, %v386
        %vm423 = vcmp.eq.s32.totalorder %v361, %v390
        %vm424 = vcmp.eq.s32.totalorder %v361, %v394
        %vm425 = vcmp.eq.s32.totalorder %v361, %v398
        %vm426 = vcmp.eq.s32.totalorder %v361, %v402
        %vm427 = vcmp.eq.s32.totalorder %v362, %v374
        %vm428 = vcmp.eq.s32.totalorder %v362, %v378
        %vm429 = vcmp.eq.s32.totalorder %v362, %v382
        %vm430 = vcmp.eq.s32.totalorder %v362, %v386
        %vm431 = vcmp.eq.s32.totalorder %v362, %v390
        %vm432 = vcmp.eq.s32.totalorder %v362, %v394
        %vm433 = vcmp.eq.s32.totalorder %v362, %v398
        %vm434 = vcmp.eq.s32.totalorder %v362, %v402
        %v436 = vlaneseq
        %v437 = vshrl.u32 %v436, 7
        %v438 = vsub.s32 0, %v437
        %v439 = vrot.slane %v339, %v438
        %v440 = vlaneseq
        %v441 = vshrl.u32 %v440, 7
        %v442 = vsub.s32 1, %v441
        %v443 = vrot.slane %v339, %v442
        %v444 = vlaneseq
        %v445 = vshrl.u32 %v444, 7
        %v446 = vsub.s32 2, %v445
        %v447 = vrot.slane %v339, %v446
        %v448 = vlaneseq
        %v449 = vshrl.u32 %v448, 7
        %v450 = vsub.s32 3, %v449
        %v451 = vrot.slane %v339, %v450
        %v452 = vlaneseq
        %v453 = vshrl.u32 %v452, 7
        %v454 = vsub.s32 4, %v453
        %v455 = vrot.slane %v339, %v454
        %v456 = vlaneseq
        %v457 = vshrl.u32 %v456, 7
        %v458 = vsub.s32 5, %v457
        %v459 = vrot.slane %v339, %v458
        %v460 = vlaneseq
        %v461 = vshrl.u32 %v460, 7
        %v462 = vsub.s32 6, %v461
        %v463 = vrot.slane %v339, %v462
        %v464 = vlaneseq
        %v465 = vshrl.u32 %v464, 7
        %v466 = vsub.s32 7, %v465
        %v467 = vrot.slane %v339, %v466
        %v476 = vsel %vm403, %v439, 0.0
        %v477 = vsel %vm404, %v443, 0.0
        %v478 = vsel %vm405, %v447, 0.0
        %v479 = vsel %vm406, %v451, 0.0
        %v480 = vsel %vm407, %v455, 0.0
        %v481 = vsel %vm408, %v459, 0.0
        %v482 = vsel %vm409, %v463, 0.0
        %v483 = vsel %vm410, %v467, 0.0
        %v484 = vsel %vm411, %v439, 0.0
        %v485 = vsel %vm412, %v443, 0.0
        %v486 = vsel %vm413, %v447, 0.0
        %v487 = vsel %vm414, %v451, 0.0
        %v488 = vsel %vm415, %v455, 0.0
        %v489 = vsel %vm416, %v459, 0.0
        %v490 = vsel %vm417, %v463, 0.0
        %v491 = vsel %vm418, %v467, 0.0
        %v492 = vsel %vm419, %v439, 0.0
        %v493 = vsel %vm420, %v443, 0.0
        %v494 = vsel %vm421, %v447, 0.0
        %v495 = vsel %vm422, %v451, 0.0
        %v496 = vsel %vm423, %v455, 0.0
        %v497 = vsel %vm424, %v459, 0.0
        %v498 = vsel %vm425, %v463, 0.0
        %v499 = vsel %vm426, %v467, 0.0
        %v500 = vsel %vm427, %v439, 0.0
        %v501 = vsel %vm428, %v443, 0.0
        %v502 = vsel %vm429, %v447, 0.0
        %v503 = vsel %vm430, %v451, 0.0
        %v504 = vsel %vm431, %v455, 0.0
        %v505 = vsel %vm432, %v459, 0.0
        %v506 = vsel %vm433, %v463, 0.0
        %v507 = vsel %vm434, %v467, 0.0
        %v508 = vadd.f32 %v476, 0.0
        %v509 = vadd.f32 %v477, 0.0
        %v510 = vadd.f32 %v478, 0.0
        %v511 = vadd.f32 %v479, 0.0
        %v512 = vadd.f32 %v480, 0.0
        %v513 = vadd.f32 %v481, 0.0
        %v514 = vadd.f32 %v482, 0.0
        %v515 = vadd.f32 %v483, 0.0
        %v516 = vadd.f32 %v484, 0.0
        %v517 = vadd.f32 %v485, 0.0
        %v518 = vadd.f32 %v486, 0.0
        %v519 = vadd.f32 %v487, 0.0
        %v520 = vadd.f32 %v488, 0.0
        %v521 = vadd.f32 %v489, 0.0
        %v522 = vadd.f32 %v490, 0.0
        %v523 = vadd.f32 %v491, 0.0
        %v524 = vadd.f32 %v492, 0.0
        %v525 = vadd.f32 %v493, 0.0
        %v526 = vadd.f32 %v494, 0.0
        %v527 = vadd.f32 %v495, 0.0
        %v528 = vadd.f32 %v496, 0.0
        %v529 = vadd.f32 %v497, 0.0
        %v530 = vadd.f32 %v498, 0.0
        %v531 = vadd.f32 %v499, 0.0
        %v532 = vadd.f32 %v500, 0.0
        %v533 = vadd.f32 %v501, 0.0
        %v534 = vadd.f32 %v502, 0.0
        %v535 = vadd.f32 %v503, 0.0
        %v536 = vadd.f32 %v504, 0.0
        %v537 = vadd.f32 %v505, 0.0
        %v538 = vadd.f32 %v506, 0.0
        %v539 = vadd.f32 %v507, 0.0
        %v540 = vlaneseq
        %v541 = vshrl.u32 %v540, 7
        %v542 = vsub.s32 0, %v541
        %v543 = vrot.slane %v370, %v542
        %v544 = vlaneseq
        %v545 = vshrl.u32 %v544, 7
        %v546 = vsub.s32 1, %v545
        %v547 = vrot.slane %v370, %v546
        %v548 = vlaneseq
        %v549 = vshrl.u32 %v548, 7
        %v550 = vsub.s32 2, %v549
        %v551 = vrot.slane %v370, %v550
        %v552 = vlaneseq
        %v553 = vshrl.u32 %v552, 7
        %v554 = vsub.s32 3, %v553
        %v555 = vrot.slane %v370, %v554
        %v556 = vlaneseq
        %v557 = vshrl.u32 %v556, 7
        %v558 = vsub.s32 4, %v557
        %v559 = vrot.slane %v370, %v558
        %v560 = vlaneseq
        %v561 = vshrl.u32 %v560, 7
        %v562 = vsub.s32 5, %v561
        %v563 = vrot.slane %v370, %v562
        %v564 = vlaneseq
        %v565 = vshrl.u32 %v564, 7
        %v566 = vsub.s32 6, %v565
        %v567 = vrot.slane %v370, %v566
        %v568 = vlaneseq
        %v569 = vshrl.u32 %v568, 7
        %v570 = vsub.s32 7, %v569
        %v571 = vrot.slane %v370, %v570
        %vm572 = vcmp.eq.s32.totalorder %v359, %v543
        %vm573 = vcmp.eq.s32.totalorder %v359, %v547
        %vm574 = vcmp.eq.s32.totalorder %v359, %v551
        %vm575 = vcmp.eq.s32.totalorder %v359, %v555
        %vm576 = vcmp.eq.s32.totalorder %v359, %v559
        %vm577 = vcmp.eq.s32.totalorder %v359, %v563
        %vm578 = vcmp.eq.s32.totalorder %v359, %v567
        %vm579 = vcmp.eq.s32.totalorder %v359, %v571
        %vm580 = vcmp.eq.s32.totalorder %v360, %v543
        %vm581 = vcmp.eq.s32.totalorder %v360, %v547
        %vm582 = vcmp.eq.s32.totalorder %v360, %v551
        %vm583 = vcmp.eq.s32.totalorder %v360, %v555
        %vm584 = vcmp.eq.s32.totalorder %v360, %v559
        %vm585 = vcmp.eq.s32.totalorder %v360, %v563
        %vm586 = vcmp.eq.s32.totalorder %v360, %v567
        %vm587 = vcmp.eq.s32.totalorder %v360, %v571
        %vm588 = vcmp.eq.s32.totalorder %v361, %v543
        %vm589 = vcmp.eq.s32.totalorder %v361, %v547
        %vm590 = vcmp.eq.s32.totalorder %v361, %v551
        %vm591 = vcmp.eq.s32.totalorder %v361, %v555
        %vm592 = vcmp.eq.s32.totalorder %v361, %v559
        %vm593 = vcmp.eq.s32.totalorder %v361, %v563
        %vm594 = vcmp.eq.s32.totalorder %v361, %v567
        %vm595 = vcmp.eq.s32.totalorder %v361, %v571
        %vm596 = vcmp.eq.s32.totalorder %v362, %v543
        %vm597 = vcmp.eq.s32.totalorder %v362, %v547
        %vm598 = vcmp.eq.s32.totalorder %v362, %v551
        %vm599 = vcmp.eq.s32.totalorder %v362, %v555
        %vm600 = vcmp.eq.s32.totalorder %v362, %v559
        %vm601 = vcmp.eq.s32.totalorder %v362, %v563
        %vm602 = vcmp.eq.s32.totalorder %v362, %v567
        %vm603 = vcmp.eq.s32.totalorder %v362, %v571
        %v605 = vlaneseq
        %v606 = vshrl.u32 %v605, 7
        %v607 = vsub.s32 0, %v606
        %v608 = vrot.slane %v314, %v607
        %v609 = vlaneseq
        %v610 = vshrl.u32 %v609, 7
        %v611 = vsub.s32 1, %v610
        %v612 = vrot.slane %v314, %v611
        %v613 = vlaneseq
        %v614 = vshrl.u32 %v613, 7
        %v615 = vsub.s32 2, %v614
        %v616 = vrot.slane %v314, %v615
        %v617 = vlaneseq
        %v618 = vshrl.u32 %v617, 7
        %v619 = vsub.s32 3, %v618
        %v620 = vrot.slane %v314, %v619
        %v621 = vlaneseq
        %v622 = vshrl.u32 %v621, 7
        %v623 = vsub.s32 4, %v622
        %v624 = vrot.slane %v314, %v623
        %v625 = vlaneseq
        %v626 = vshrl.u32 %v625, 7
        %v627 = vsub.s32 5, %v626
        %v628 = vrot.slane %v314, %v627
        %v629 = vlaneseq
        %v630 = vshrl.u32 %v629, 7
        %v631 = vsub.s32 6, %v630
        %v632 = vrot.slane %v314, %v631
        %v633 = vlaneseq
        %v634 = vshrl.u32 %v633, 7
        %v635 = vsub.s32 7, %v634
        %v636 = vrot.slane %v314, %v635
        %v645 = vsel %vm572, %v608, 0.0
        %v646 = vsel %vm573, %v612, 0.0
        %v647 = vsel %vm574, %v616, 0.0
        %v648 = vsel %vm575, %v620, 0.0
        %v649 = vsel %vm576, %v624, 0.0
        %v650 = vsel %vm577, %v628, 0.0
        %v651 = vsel %vm578, %v632, 0.0
        %v652 = vsel %vm579, %v636, 0.0
        %v653 = vsel %vm580, %v608, 0.0
        %v654 = vsel %vm581, %v612, 0.0
        %v655 = vsel %vm582, %v616, 0.0
        %v656 = vsel %vm583, %v620, 0.0
        %v657 = vsel %vm584, %v624, 0.0
        %v658 = vsel %vm585, %v628, 0.0
        %v659 = vsel %vm586, %v632, 0.0
        %v660 = vsel %vm587, %v636, 0.0
        %v661 = vsel %vm588, %v608, 0.0
        %v662 = vsel %vm589, %v612, 0.0
        %v663 = vsel %vm590, %v616, 0.0
        %v664 = vsel %vm591, %v620, 0.0
        %v665 = vsel %vm592, %v624, 0.0
        %v666 = vsel %vm593, %v628, 0.0
        %v667 = vsel %vm594, %v632, 0.0
        %v668 = vsel %vm595, %v636, 0.0
        %v669 = vsel %vm596, %v608, 0.0
        %v670 = vsel %vm597, %v612, 0.0
        %v671 = vsel %vm598, %v616, 0.0
        %v672 = vsel %vm599, %v620, 0.0
        %v673 = vsel %vm600, %v624, 0.0
        %v674 = vsel %vm601, %v628, 0.0
        %v675 = vsel %vm602, %v632, 0.0
        %v676 = vsel %vm603, %v636, 0.0
        %v677 = vadd.f32 %v645, 0.0
        %v678 = vadd.f32 %v646, 0.0
        %v679 = vadd.f32 %v647, 0.0
        %v680 = vadd.f32 %v648, 0.0
        %v681 = vadd.f32 %v649, 0.0
        %v682 = vadd.f32 %v650, 0.0
        %v683 = vadd.f32 %v651, 0.0
        %v684 = vadd.f32 %v652, 0.0
        %v685 = vadd.f32 %v653, 0.0
        %v686 = vadd.f32 %v654, 0.0
        %v687 = vadd.f32 %v655, 0.0
        %v688 = vadd.f32 %v656, 0.0
        %v689 = vadd.f32 %v657, 0.0
        %v690 = vadd.f32 %v658, 0.0
        %v691 = vadd.f32 %v659, 0.0
        %v692 = vadd.f32 %v660, 0.0
        %v693 = vadd.f32 %v661, 0.0
        %v694 = vadd.f32 %v662, 0.0
        %v695 = vadd.f32 %v663, 0.0
        %v696 = vadd.f32 %v664, 0.0
        %v697 = vadd.f32 %v665, 0.0
        %v698 = vadd.f32 %v666, 0.0
        %v699 = vadd.f32 %v667, 0.0
        %v700 = vadd.f32 %v668, 0.0
        %v701 = vadd.f32 %v669, 0.0
        %v702 = vadd.f32 %v670, 0.0
        %v703 = vadd.f32 %v671, 0.0
        %v704 = vadd.f32 %v672, 0.0
        %v705 = vadd.f32 %v673, 0.0
        %v706 = vadd.f32 %v674, 0.0
        %v707 = vadd.f32 %v675, 0.0
        %v708 = vadd.f32 %v676, 0.0
        %v709 = vadd.f32 %v305, 0.0
        %v710 = vmax.f32 %v709, 0.0
        %v711 = vmin.f32 %v710, 31.0
        %v712 = vcvt.f32.s32.to.zero.pseudo %v711
        %v713 = vadd.f32 %v304, 0.0
        %v714 = vmax.f32 %v713, 0.0
        %v715 = vmin.f32 %v714, 31.0
        %v716 = vcvt.f32.s32.to.zero.pseudo %v715
        %v717 = vlaneseq
        %v718 = vshrl.u32 %v717, 7
        %v719 = vsub.s32 0, %v718
        %v720 = vrot.slane %v712, %v719
        %v721 = vlaneseq
        %v722 = vshrl.u32 %v721, 7
        %v723 = vsub.s32 1, %v722
        %v724 = vrot.slane %v712, %v723
        %v725 = vlaneseq
        %v726 = vshrl.u32 %v725, 7
        %v727 = vsub.s32 2, %v726
        %v728 = vrot.slane %v712, %v727
        %v729 = vlaneseq
        %v730 = vshrl.u32 %v729, 7
        %v731 = vsub.s32 3, %v730
        %v732 = vrot.slane %v712, %v731
        %v733 = vlaneseq
        %v734 = vshrl.u32 %v733, 7
        %v735 = vsub.s32 4, %v734
        %v736 = vrot.slane %v712, %v735
        %v737 = vlaneseq
        %v738 = vshrl.u32 %v737, 7
        %v739 = vsub.s32 5, %v738
        %v740 = vrot.slane %v712, %v739
        %v741 = vlaneseq
        %v742 = vshrl.u32 %v741, 7
        %v743 = vsub.s32 6, %v742
        %v744 = vrot.slane %v712, %v743
        %v745 = vlaneseq
        %v746 = vshrl.u32 %v745, 7
        %v747 = vsub.s32 7, %v746
        %v748 = vrot.slane %v712, %v747
        %vm749 = vcmp.eq.s32.totalorder %v359, %v720
        %vm750 = vcmp.eq.s32.totalorder %v359, %v724
        %vm751 = vcmp.eq.s32.totalorder %v359, %v728
        %vm752 = vcmp.eq.s32.totalorder %v359, %v732
        %vm753 = vcmp.eq.s32.totalorder %v359, %v736
        %vm754 = vcmp.eq.s32.totalorder %v359, %v740
        %vm755 = vcmp.eq.s32.totalorder %v359, %v744
        %vm756 = vcmp.eq.s32.totalorder %v359, %v748
        %vm757 = vcmp.eq.s32.totalorder %v360, %v720
        %vm758 = vcmp.eq.s32.totalorder %v360, %v724
        %vm759 = vcmp.eq.s32.totalorder %v360, %v728
        %vm760 = vcmp.eq.s32.totalorder %v360, %v732
        %vm761 = vcmp.eq.s32.totalorder %v360, %v736
        %vm762 = vcmp.eq.s32.totalorder %v360, %v740
        %vm763 = vcmp.eq.s32.totalorder %v360, %v744
        %vm764 = vcmp.eq.s32.totalorder %v360, %v748
        %vm765 = vcmp.eq.s32.totalorder %v361, %v720
        %vm766 = vcmp.eq.s32.totalorder %v361, %v724
        %vm767 = vcmp.eq.s32.totalorder %v361, %v728
        %vm768 = vcmp.eq.s32.totalorder %v361, %v732
        %vm769 = vcmp.eq.s32.totalorder %v361, %v736
        %vm770 = vcmp.eq.s32.totalorder %v361, %v740
        %vm771 = vcmp.eq.s32.totalorder %v361, %v744
        %vm772 = vcmp.eq.s32.totalorder %v361, %v748
        %vm773 = vcmp.eq.s32.totalorder %v362, %v720
        %vm774 = vcmp.eq.s32.totalorder %v362, %v724
        %vm775 = vcmp.eq.s32.totalorder %v362, %v728
        %vm776 = vcmp.eq.s32.totalorder %v362, %v732
        %vm777 = vcmp.eq.s32.totalorder %v362, %v736
        %vm778 = vcmp.eq.s32.totalorder %v362, %v740
        %vm779 = vcmp.eq.s32.totalorder %v362, %v744
        %vm780 = vcmp.eq.s32.totalorder %v362, %v748
        %v782 = vlaneseq
        %v783 = vshrl.u32 %v782, 7
        %v784 = vsub.s32 0, %v783
        %v785 = vrot.slane %v344, %v784
        %v786 = vlaneseq
        %v787 = vshrl.u32 %v786, 7
        %v788 = vsub.s32 1, %v787
        %v789 = vrot.slane %v344, %v788
        %v790 = vlaneseq
        %v791 = vshrl.u32 %v790, 7
        %v792 = vsub.s32 2, %v791
        %v793 = vrot.slane %v344, %v792
        %v794 = vlaneseq
        %v795 = vshrl.u32 %v794, 7
        %v796 = vsub.s32 3, %v795
        %v797 = vrot.slane %v344, %v796
        %v798 = vlaneseq
        %v799 = vshrl.u32 %v798, 7
        %v800 = vsub.s32 4, %v799
        %v801 = vrot.slane %v344, %v800
        %v802 = vlaneseq
        %v803 = vshrl.u32 %v802, 7
        %v804 = vsub.s32 5, %v803
        %v805 = vrot.slane %v344, %v804
        %v806 = vlaneseq
        %v807 = vshrl.u32 %v806, 7
        %v808 = vsub.s32 6, %v807
        %v809 = vrot.slane %v344, %v808
        %v810 = vlaneseq
        %v811 = vshrl.u32 %v810, 7
        %v812 = vsub.s32 7, %v811
        %v813 = vrot.slane %v344, %v812
        %v822 = vsel %vm749, %v785, 0.0
        %v823 = vsel %vm750, %v789, 0.0
        %v824 = vsel %vm751, %v793, 0.0
        %v825 = vsel %vm752, %v797, 0.0
        %v826 = vsel %vm753, %v801, 0.0
        %v827 = vsel %vm754, %v805, 0.0
        %v828 = vsel %vm755, %v809, 0.0
        %v829 = vsel %vm756, %v813, 0.0
        %v830 = vsel %vm757, %v785, 0.0
        %v831 = vsel %vm758, %v789, 0.0
        %v832 = vsel %vm759, %v793, 0.0
        %v833 = vsel %vm760, %v797, 0.0
        %v834 = vsel %vm761, %v801, 0.0
        %v835 = vsel %vm762, %v805, 0.0
        %v836 = vsel %vm763, %v809, 0.0
        %v837 = vsel %vm764, %v813, 0.0
        %v838 = vsel %vm765, %v785, 0.0
        %v839 = vsel %vm766, %v789, 0.0
        %v840 = vsel %vm767, %v793, 0.0
        %v841 = vsel %vm768, %v797, 0.0
        %v842 = vsel %vm769, %v801, 0.0
        %v843 = vsel %vm770, %v805, 0.0
        %v844 = vsel %vm771, %v809, 0.0
        %v845 = vsel %vm772, %v813, 0.0
        %v846 = vsel %vm773, %v785, 0.0
        %v847 = vsel %vm774, %v789, 0.0
        %v848 = vsel %vm775, %v793, 0.0
        %v849 = vsel %vm776, %v797, 0.0
        %v850 = vsel %vm777, %v801, 0.0
        %v851 = vsel %vm778, %v805, 0.0
        %v852 = vsel %vm779, %v809, 0.0
        %v853 = vsel %vm780, %v813, 0.0
        %v854 = vadd.f32 %v508, %v822
        %v855 = vadd.f32 %v509, %v823
        %v856 = vadd.f32 %v510, %v824
        %v857 = vadd.f32 %v511, %v825
        %v858 = vadd.f32 %v512, %v826
        %v859 = vadd.f32 %v513, %v827
        %v860 = vadd.f32 %v514, %v828
        %v861 = vadd.f32 %v515, %v829
        %v862 = vadd.f32 %v516, %v830
        %v863 = vadd.f32 %v517, %v831
        %v864 = vadd.f32 %v518, %v832
        %v865 = vadd.f32 %v519, %v833
        %v866 = vadd.f32 %v520, %v834
        %v867 = vadd.f32 %v521, %v835
        %v868 = vadd.f32 %v522, %v836
        %v869 = vadd.f32 %v523, %v837
        %v870 = vadd.f32 %v524, %v838
        %v871 = vadd.f32 %v525, %v839
        %v872 = vadd.f32 %v526, %v840
        %v873 = vadd.f32 %v527, %v841
        %v874 = vadd.f32 %v528, %v842
        %v875 = vadd.f32 %v529, %v843
        %v876 = vadd.f32 %v530, %v844
        %v877 = vadd.f32 %v531, %v845
        %v878 = vadd.f32 %v532, %v846
        %v879 = vadd.f32 %v533, %v847
        %v880 = vadd.f32 %v534, %v848
        %v881 = vadd.f32 %v535, %v849
        %v882 = vadd.f32 %v536, %v850
        %v883 = vadd.f32 %v537, %v851
        %v884 = vadd.f32 %v538, %v852
        %v885 = vadd.f32 %v539, %v853
        %v886 = vlaneseq
        %v887 = vshrl.u32 %v886, 7
        %v888 = vsub.s32 0, %v887
        %v889 = vrot.slane %v716, %v888
        %v890 = vlaneseq
        %v891 = vshrl.u32 %v890, 7
        %v892 = vsub.s32 1, %v891
        %v893 = vrot.slane %v716, %v892
        %v894 = vlaneseq
        %v895 = vshrl.u32 %v894, 7
        %v896 = vsub.s32 2, %v895
        %v897 = vrot.slane %v716, %v896
        %v898 = vlaneseq
        %v899 = vshrl.u32 %v898, 7
        %v900 = vsub.s32 3, %v899
        %v901 = vrot.slane %v716, %v900
        %v902 = vlaneseq
        %v903 = vshrl.u32 %v902, 7
        %v904 = vsub.s32 4, %v903
        %v905 = vrot.slane %v716, %v904
        %v906 = vlaneseq
        %v907 = vshrl.u32 %v906, 7
        %v908 = vsub.s32 5, %v907
        %v909 = vrot.slane %v716, %v908
        %v910 = vlaneseq
        %v911 = vshrl.u32 %v910, 7
        %v912 = vsub.s32 6, %v911
        %v913 = vrot.slane %v716, %v912
        %v914 = vlaneseq
        %v915 = vshrl.u32 %v914, 7
        %v916 = vsub.s32 7, %v915
        %v917 = vrot.slane %v716, %v916
        %vm918 = vcmp.eq.s32.totalorder %v359, %v889
        %vm919 = vcmp.eq.s32.totalorder %v359, %v893
        %vm920 = vcmp.eq.s32.totalorder %v359, %v897
        %vm921 = vcmp.eq.s32.totalorder %v359, %v901
        %vm922 = vcmp.eq.s32.totalorder %v359, %v905
        %vm923 = vcmp.eq.s32.totalorder %v359, %v909
        %vm924 = vcmp.eq.s32.totalorder %v359, %v913
        %vm925 = vcmp.eq.s32.totalorder %v359, %v917
        %vm926 = vcmp.eq.s32.totalorder %v360, %v889
        %vm927 = vcmp.eq.s32.totalorder %v360, %v893
        %vm928 = vcmp.eq.s32.totalorder %v360, %v897
        %vm929 = vcmp.eq.s32.totalorder %v360, %v901
        %vm930 = vcmp.eq.s32.totalorder %v360, %v905
        %vm931 = vcmp.eq.s32.totalorder %v360, %v909
        %vm932 = vcmp.eq.s32.totalorder %v360, %v913
        %vm933 = vcmp.eq.s32.totalorder %v360, %v917
        %vm934 = vcmp.eq.s32.totalorder %v361, %v889
        %vm935 = vcmp.eq.s32.totalorder %v361, %v893
        %vm936 = vcmp.eq.s32.totalorder %v361, %v897
        %vm937 = vcmp.eq.s32.totalorder %v361, %v901
        %vm938 = vcmp.eq.s32.totalorder %v361, %v905
        %vm939 = vcmp.eq.s32.totalorder %v361, %v909
        %vm940 = vcmp.eq.s32.totalorder %v361, %v913
        %vm941 = vcmp.eq.s32.totalorder %v361, %v917
        %vm942 = vcmp.eq.s32.totalorder %v362, %v889
        %vm943 = vcmp.eq.s32.totalorder %v362, %v893
        %vm944 = vcmp.eq.s32.totalorder %v362, %v897
        %vm945 = vcmp.eq.s32.totalorder %v362, %v901
        %vm946 = vcmp.eq.s32.totalorder %v362, %v905
        %vm947 = vcmp.eq.s32.totalorder %v362, %v909
        %vm948 = vcmp.eq.s32.totalorder %v362, %v913
        %vm949 = vcmp.eq.s32.totalorder %v362, %v917
        %v951 = vlaneseq
        %v952 = vshrl.u32 %v951, 7
        %v953 = vsub.s32 0, %v952
        %v954 = vrot.slane %v319, %v953
        %v955 = vlaneseq
        %v956 = vshrl.u32 %v955, 7
        %v957 = vsub.s32 1, %v956
        %v958 = vrot.slane %v319, %v957
        %v959 = vlaneseq
        %v960 = vshrl.u32 %v959, 7
        %v961 = vsub.s32 2, %v960
        %v962 = vrot.slane %v319, %v961
        %v963 = vlaneseq
        %v964 = vshrl.u32 %v963, 7
        %v965 = vsub.s32 3, %v964
        %v966 = vrot.slane %v319, %v965
        %v967 = vlaneseq
        %v968 = vshrl.u32 %v967, 7
        %v969 = vsub.s32 4, %v968
        %v970 = vrot.slane %v319, %v969
        %v971 = vlaneseq
        %v972 = vshrl.u32 %v971, 7
        %v973 = vsub.s32 5, %v972
        %v974 = vrot.slane %v319, %v973
        %v975 = vlaneseq
        %v976 = vshrl.u32 %v975, 7
        %v977 = vsub.s32 6, %v976
        %v978 = vrot.slane %v319, %v977
        %v979 = vlaneseq
        %v980 = vshrl.u32 %v979, 7
        %v981 = vsub.s32 7, %v980
        %v982 = vrot.slane %v319, %v981
        %v991 = vsel %vm918, %v954, 0.0
        %v992 = vsel %vm919, %v958, 0.0
        %v993 = vsel %vm920, %v962, 0.0
        %v994 = vsel %vm921, %v966, 0.0
        %v995 = vsel %vm922, %v970, 0.0
        %v996 = vsel %vm923, %v974, 0.0
        %v997 = vsel %vm924, %v978, 0.0
        %v998 = vsel %vm925, %v982, 0.0
        %v999 = vsel %vm926, %v954, 0.0
        %v1000 = vsel %vm927, %v958, 0.0
        %v1001 = vsel %vm928, %v962, 0.0
        %v1002 = vsel %vm929, %v966, 0.0
        %v1003 = vsel %vm930, %v970, 0.0
        %v1004 = vsel %vm931, %v974, 0.0
        %v1005 = vsel %vm932, %v978, 0.0
        %v1006 = vsel %vm933, %v982, 0.0
        %v1007 = vsel %vm934, %v954, 0.0
        %v1008 = vsel %vm935, %v958, 0.0
        %v1009 = vsel %vm936, %v962, 0.0
        %v1010 = vsel %vm937, %v966, 0.0
        %v1011 = vsel %vm938, %v970, 0.0
        %v1012 = vsel %vm939, %v974, 0.0
        %v1013 = vsel %vm940, %v978, 0.0
        %v1014 = vsel %vm941, %v982, 0.0
        %v1015 = vsel %vm942, %v954, 0.0
        %v1016 = vsel %vm943, %v958, 0.0
        %v1017 = vsel %vm944, %v962, 0.0
        %v1018 = vsel %vm945, %v966, 0.0
        %v1019 = vsel %vm946, %v970, 0.0
        %v1020 = vsel %vm947, %v974, 0.0
        %v1021 = vsel %vm948, %v978, 0.0
        %v1022 = vsel %vm949, %v982, 0.0
        %v1023 = vadd.f32 %v677, %v991
        %v1024 = vadd.f32 %v678, %v992
        %v1025 = vadd.f32 %v679, %v993
        %v1026 = vadd.f32 %v680, %v994
        %v1027 = vadd.f32 %v681, %v995
        %v1028 = vadd.f32 %v682, %v996
        %v1029 = vadd.f32 %v683, %v997
        %v1030 = vadd.f32 %v684, %v998
        %v1031 = vadd.f32 %v685, %v999
        %v1032 = vadd.f32 %v686, %v1000
        %v1033 = vadd.f32 %v687, %v1001
        %v1034 = vadd.f32 %v688, %v1002
        %v1035 = vadd.f32 %v689, %v1003
        %v1036 = vadd.f32 %v690, %v1004
        %v1037 = vadd.f32 %v691, %v1005
        %v1038 = vadd.f32 %v692, %v1006
        %v1039 = vadd.f32 %v693, %v1007
        %v1040 = vadd.f32 %v694, %v1008
        %v1041 = vadd.f32 %v695, %v1009
        %v1042 = vadd.f32 %v696, %v1010
        %v1043 = vadd.f32 %v697, %v1011
        %v1044 = vadd.f32 %v698, %v1012
        %v1045 = vadd.f32 %v699, %v1013
        %v1046 = vadd.f32 %v700, %v1014
        %v1047 = vadd.f32 %v701, %v1015
        %v1048 = vadd.f32 %v702, %v1016
        %v1049 = vadd.f32 %v703, %v1017
        %v1050 = vadd.f32 %v704, %v1018
        %v1051 = vadd.f32 %v705, %v1019
        %v1052 = vadd.f32 %v706, %v1020
        %v1053 = vadd.f32 %v707, %v1021
        %v1054 = vadd.f32 %v708, %v1022
        %v1055 = vadd.f32 %v305, 1.0
        %v1056 = vmax.f32 %v1055, 0.0
        %v1057 = vmin.f32 %v1056, 31.0
        %v1058 = vcvt.f32.s32.to.zero.pseudo %v1057
        %v1059 = vadd.f32 %v304, 1.0
        %v1060 = vmax.f32 %v1059, 0.0
        %v1061 = vmin.f32 %v1060, 31.0
        %v1062 = vcvt.f32.s32.to.zero.pseudo %v1061
        %v1063 = vlaneseq
        %v1064 = vshrl.u32 %v1063, 7
        %v1065 = vsub.s32 0, %v1064
        %v1066 = vrot.slane %v1058, %v1065
        %v1067 = vlaneseq
        %v1068 = vshrl.u32 %v1067, 7
        %v1069 = vsub.s32 1, %v1068
        %v1070 = vrot.slane %v1058, %v1069
        %v1071 = vlaneseq
        %v1072 = vshrl.u32 %v1071, 7
        %v1073 = vsub.s32 2, %v1072
        %v1074 = vrot.slane %v1058, %v1073
        %v1075 = vlaneseq
        %v1076 = vshrl.u32 %v1075, 7
        %v1077 = vsub.s32 3, %v1076
        %v1078 = vrot.slane %v1058, %v1077
        %v1079 = vlaneseq
        %v1080 = vshrl.u32 %v1079, 7
        %v1081 = vsub.s32 4, %v1080
        %v1082 = vrot.slane %v1058, %v1081
        %v1083 = vlaneseq
        %v1084 = vshrl.u32 %v1083, 7
        %v1085 = vsub.s32 5, %v1084
        %v1086 = vrot.slane %v1058, %v1085
        %v1087 = vlaneseq
        %v1088 = vshrl.u32 %v1087, 7
        %v1089 = vsub.s32 6, %v1088
        %v1090 = vrot.slane %v1058, %v1089
        %v1091 = vlaneseq
        %v1092 = vshrl.u32 %v1091, 7
        %v1093 = vsub.s32 7, %v1092
        %v1094 = vrot.slane %v1058, %v1093
        %vm1095 = vcmp.eq.s32.totalorder %v359, %v1066
        %vm1096 = vcmp.eq.s32.totalorder %v359, %v1070
        %vm1097 = vcmp.eq.s32.totalorder %v359, %v1074
        %vm1098 = vcmp.eq.s32.totalorder %v359, %v1078
        %vm1099 = vcmp.eq.s32.totalorder %v359, %v1082
        %vm1100 = vcmp.eq.s32.totalorder %v359, %v1086
        %vm1101 = vcmp.eq.s32.totalorder %v359, %v1090
        %vm1102 = vcmp.eq.s32.totalorder %v359, %v1094
        %vm1103 = vcmp.eq.s32.totalorder %v360, %v1066
        %vm1104 = vcmp.eq.s32.totalorder %v360, %v1070
        %vm1105 = vcmp.eq.s32.totalorder %v360, %v1074
        %vm1106 = vcmp.eq.s32.totalorder %v360, %v1078
        %vm1107 = vcmp.eq.s32.totalorder %v360, %v1082
        %vm1108 = vcmp.eq.s32.totalorder %v360, %v1086
        %vm1109 = vcmp.eq.s32.totalorder %v360, %v1090
        %vm1110 = vcmp.eq.s32.totalorder %v360, %v1094
        %vm1111 = vcmp.eq.s32.totalorder %v361, %v1066
        %vm1112 = vcmp.eq.s32.totalorder %v361, %v1070
        %vm1113 = vcmp.eq.s32.totalorder %v361, %v1074
        %vm1114 = vcmp.eq.s32.totalorder %v361, %v1078
        %vm1115 = vcmp.eq.s32.totalorder %v361, %v1082
        %vm1116 = vcmp.eq.s32.totalorder %v361, %v1086
        %vm1117 = vcmp.eq.s32.totalorder %v361, %v1090
        %vm1118 = vcmp.eq.s32.totalorder %v361, %v1094
        %vm1119 = vcmp.eq.s32.totalorder %v362, %v1066
        %vm1120 = vcmp.eq.s32.totalorder %v362, %v1070
        %vm1121 = vcmp.eq.s32.totalorder %v362, %v1074
        %vm1122 = vcmp.eq.s32.totalorder %v362, %v1078
        %vm1123 = vcmp.eq.s32.totalorder %v362, %v1082
        %vm1124 = vcmp.eq.s32.totalorder %v362, %v1086
        %vm1125 = vcmp.eq.s32.totalorder %v362, %v1090
        %vm1126 = vcmp.eq.s32.totalorder %v362, %v1094
        %v1128 = vlaneseq
        %v1129 = vshrl.u32 %v1128, 7
        %v1130 = vsub.s32 0, %v1129
        %v1131 = vrot.slane %v350, %v1130
        %v1132 = vlaneseq
        %v1133 = vshrl.u32 %v1132, 7
        %v1134 = vsub.s32 1, %v1133
        %v1135 = vrot.slane %v350, %v1134
        %v1136 = vlaneseq
        %v1137 = vshrl.u32 %v1136, 7
        %v1138 = vsub.s32 2, %v1137
        %v1139 = vrot.slane %v350, %v1138
        %v1140 = vlaneseq
        %v1141 = vshrl.u32 %v1140, 7
        %v1142 = vsub.s32 3, %v1141
        %v1143 = vrot.slane %v350, %v1142
        %v1144 = vlaneseq
        %v1145 = vshrl.u32 %v1144, 7
        %v1146 = vsub.s32 4, %v1145
        %v1147 = vrot.slane %v350, %v1146
        %v1148 = vlaneseq
        %v1149 = vshrl.u32 %v1148, 7
        %v1150 = vsub.s32 5, %v1149
        %v1151 = vrot.slane %v350, %v1150
        %v1152 = vlaneseq
        %v1153 = vshrl.u32 %v1152, 7
        %v1154 = vsub.s32 6, %v1153
        %v1155 = vrot.slane %v350, %v1154
        %v1156 = vlaneseq
        %v1157 = vshrl.u32 %v1156, 7
        %v1158 = vsub.s32 7, %v1157
        %v1159 = vrot.slane %v350, %v1158
        %v1168 = vsel %vm1095, %v1131, 0.0
        %v1169 = vsel %vm1096, %v1135, 0.0
        %v1170 = vsel %vm1097, %v1139, 0.0
        %v1171 = vsel %vm1098, %v1143, 0.0
        %v1172 = vsel %vm1099, %v1147, 0.0
        %v1173 = vsel %vm1100, %v1151, 0.0
        %v1174 = vsel %vm1101, %v1155, 0.0
        %v1175 = vsel %vm1102, %v1159, 0.0
        %v1176 = vsel %vm1103, %v1131, 0.0
        %v1177 = vsel %vm1104, %v1135, 0.0
        %v1178 = vsel %vm1105, %v1139, 0.0
        %v1179 = vsel %vm1106, %v1143, 0.0
        %v1180 = vsel %vm1107, %v1147, 0.0
        %v1181 = vsel %vm1108, %v1151, 0.0
        %v1182 = vsel %vm1109, %v1155, 0.0
        %v1183 = vsel %vm1110, %v1159, 0.0
        %v1184 = vsel %vm1111, %v1131, 0.0
        %v1185 = vsel %vm1112, %v1135, 0.0
        %v1186 = vsel %vm1113, %v1139, 0.0
        %v1187 = vsel %vm1114, %v1143, 0.0
        %v1188 = vsel %vm1115, %v1147, 0.0
        %v1189 = vsel %vm1116, %v1151, 0.0
        %v1190 = vsel %vm1117, %v1155, 0.0
        %v1191 = vsel %vm1118, %v1159, 0.0
        %v1192 = vsel %vm1119, %v1131, 0.0
        %v1193 = vsel %vm1120, %v1135, 0.0
        %v1194 = vsel %vm1121, %v1139, 0.0
        %v1195 = vsel %vm1122, %v1143, 0.0
        %v1196 = vsel %vm1123, %v1147, 0.0
        %v1197 = vsel %vm1124, %v1151, 0.0
        %v1198 = vsel %vm1125, %v1155, 0.0
        %v1199 = vsel %vm1126, %v1159, 0.0
        %v1200 = vadd.f32 %v854, %v1168
        %v1201 = vadd.f32 %v855, %v1169
        %v1202 = vadd.f32 %v856, %v1170
        %v1203 = vadd.f32 %v857, %v1171
        %v1204 = vadd.f32 %v858, %v1172
        %v1205 = vadd.f32 %v859, %v1173
        %v1206 = vadd.f32 %v860, %v1174
        %v1207 = vadd.f32 %v861, %v1175
        %v1208 = vadd.f32 %v862, %v1176
        %v1209 = vadd.f32 %v863, %v1177
        %v1210 = vadd.f32 %v864, %v1178
        %v1211 = vadd.f32 %v865, %v1179
        %v1212 = vadd.f32 %v866, %v1180
        %v1213 = vadd.f32 %v867, %v1181
        %v1214 = vadd.f32 %v868, %v1182
        %v1215 = vadd.f32 %v869, %v1183
        %v1216 = vadd.f32 %v870, %v1184
        %v1217 = vadd.f32 %v871, %v1185
        %v1218 = vadd.f32 %v872, %v1186
        %v1219 = vadd.f32 %v873, %v1187
        %v1220 = vadd.f32 %v874, %v1188
        %v1221 = vadd.f32 %v875, %v1189
        %v1222 = vadd.f32 %v876, %v1190
        %v1223 = vadd.f32 %v877, %v1191
        %v1224 = vadd.f32 %v878, %v1192
        %v1225 = vadd.f32 %v879, %v1193
        %v1226 = vadd.f32 %v880, %v1194
        %v1227 = vadd.f32 %v881, %v1195
        %v1228 = vadd.f32 %v882, %v1196
        %v1229 = vadd.f32 %v883, %v1197
        %v1230 = vadd.f32 %v884, %v1198
        %v1231 = vadd.f32 %v885, %v1199
        %v1232 = vlaneseq
        %v1233 = vshrl.u32 %v1232, 7
        %v1234 = vsub.s32 0, %v1233
        %v1235 = vrot.slane %v1062, %v1234
        %v1236 = vlaneseq
        %v1237 = vshrl.u32 %v1236, 7
        %v1238 = vsub.s32 1, %v1237
        %v1239 = vrot.slane %v1062, %v1238
        %v1240 = vlaneseq
        %v1241 = vshrl.u32 %v1240, 7
        %v1242 = vsub.s32 2, %v1241
        %v1243 = vrot.slane %v1062, %v1242
        %v1244 = vlaneseq
        %v1245 = vshrl.u32 %v1244, 7
        %v1246 = vsub.s32 3, %v1245
        %v1247 = vrot.slane %v1062, %v1246
        %v1248 = vlaneseq
        %v1249 = vshrl.u32 %v1248, 7
        %v1250 = vsub.s32 4, %v1249
        %v1251 = vrot.slane %v1062, %v1250
        %v1252 = vlaneseq
        %v1253 = vshrl.u32 %v1252, 7
        %v1254 = vsub.s32 5, %v1253
        %v1255 = vrot.slane %v1062, %v1254
        %v1256 = vlaneseq
        %v1257 = vshrl.u32 %v1256, 7
        %v1258 = vsub.s32 6, %v1257
        %v1259 = vrot.slane %v1062, %v1258
        %v1260 = vlaneseq
        %v1261 = vshrl.u32 %v1260, 7
        %v1262 = vsub.s32 7, %v1261
        %v1263 = vrot.slane %v1062, %v1262
        %vm1264 = vcmp.eq.s32.totalorder %v359, %v1235
        %vm1265 = vcmp.eq.s32.totalorder %v359, %v1239
        %vm1266 = vcmp.eq.s32.totalorder %v359, %v1243
        %vm1267 = vcmp.eq.s32.totalorder %v359, %v1247
        %vm1268 = vcmp.eq.s32.totalorder %v359, %v1251
        %vm1269 = vcmp.eq.s32.totalorder %v359, %v1255
        %vm1270 = vcmp.eq.s32.totalorder %v359, %v1259
        %vm1271 = vcmp.eq.s32.totalorder %v359, %v1263
        %vm1272 = vcmp.eq.s32.totalorder %v360, %v1235
        %vm1273 = vcmp.eq.s32.totalorder %v360, %v1239
        %vm1274 = vcmp.eq.s32.totalorder %v360, %v1243
        %vm1275 = vcmp.eq.s32.totalorder %v360, %v1247
        %vm1276 = vcmp.eq.s32.totalorder %v360, %v1251
        %vm1277 = vcmp.eq.s32.totalorder %v360, %v1255
        %vm1278 = vcmp.eq.s32.totalorder %v360, %v1259
        %vm1279 = vcmp.eq.s32.totalorder %v360, %v1263
        %vm1280 = vcmp.eq.s32.totalorder %v361, %v1235
        %vm1281 = vcmp.eq.s32.totalorder %v361, %v1239
        %vm1282 = vcmp.eq.s32.totalorder %v361, %v1243
        %vm1283 = vcmp.eq.s32.totalorder %v361, %v1247
        %vm1284 = vcmp.eq.s32.totalorder %v361, %v1251
        %vm1285 = vcmp.eq.s32.totalorder %v361, %v1255
        %vm1286 = vcmp.eq.s32.totalorder %v361, %v1259
        %vm1287 = vcmp.eq.s32.totalorder %v361, %v1263
        %vm1288 = vcmp.eq.s32.totalorder %v362, %v1235
        %vm1289 = vcmp.eq.s32.totalorder %v362, %v1239
        %vm1290 = vcmp.eq.s32.totalorder %v362, %v1243
        %vm1291 = vcmp.eq.s32.totalorder %v362, %v1247
        %vm1292 = vcmp.eq.s32.totalorder %v362, %v1251
        %vm1293 = vcmp.eq.s32.totalorder %v362, %v1255
        %vm1294 = vcmp.eq.s32.totalorder %v362, %v1259
        %vm1295 = vcmp.eq.s32.totalorder %v362, %v1263
        %v1297 = vlaneseq
        %v1298 = vshrl.u32 %v1297, 7
        %v1299 = vsub.s32 0, %v1298
        %v1300 = vrot.slane %v325, %v1299
        %v1301 = vlaneseq
        %v1302 = vshrl.u32 %v1301, 7
        %v1303 = vsub.s32 1, %v1302
        %v1304 = vrot.slane %v325, %v1303
        %v1305 = vlaneseq
        %v1306 = vshrl.u32 %v1305, 7
        %v1307 = vsub.s32 2, %v1306
        %v1308 = vrot.slane %v325, %v1307
        %v1309 = vlaneseq
        %v1310 = vshrl.u32 %v1309, 7
        %v1311 = vsub.s32 3, %v1310
        %v1312 = vrot.slane %v325, %v1311
        %v1313 = vlaneseq
        %v1314 = vshrl.u32 %v1313, 7
        %v1315 = vsub.s32 4, %v1314
        %v1316 = vrot.slane %v325, %v1315
        %v1317 = vlaneseq
        %v1318 = vshrl.u32 %v1317, 7
        %v1319 = vsub.s32 5, %v1318
        %v1320 = vrot.slane %v325, %v1319
        %v1321 = vlaneseq
        %v1322 = vshrl.u32 %v1321, 7
        %v1323 = vsub.s32 6, %v1322
        %v1324 = vrot.slane %v325, %v1323
        %v1325 = vlaneseq
        %v1326 = vshrl.u32 %v1325, 7
        %v1327 = vsub.s32 7, %v1326
        %v1328 = vrot.slane %v325, %v1327
        %v1337 = vsel %vm1264, %v1300, 0.0
        %v1338 = vsel %vm1265, %v1304, 0.0
        %v1339 = vsel %vm1266, %v1308, 0.0
        %v1340 = vsel %vm1267, %v1312, 0.0
        %v1341 = vsel %vm1268, %v1316, 0.0
        %v1342 = vsel %vm1269, %v1320, 0.0
        %v1343 = vsel %vm1270, %v1324, 0.0
        %v1344 = vsel %vm1271, %v1328, 0.0
        %v1345 = vsel %vm1272, %v1300, 0.0
        %v1346 = vsel %vm1273, %v1304, 0.0
        %v1347 = vsel %vm1274, %v1308, 0.0
        %v1348 = vsel %vm1275, %v1312, 0.0
        %v1349 = vsel %vm1276, %v1316, 0.0
        %v1350 = vsel %vm1277, %v1320, 0.0
        %v1351 = vsel %vm1278, %v1324, 0.0
        %v1352 = vsel %vm1279, %v1328, 0.0
        %v1353 = vsel %vm1280, %v1300, 0.0
        %v1354 = vsel %vm1281, %v1304, 0.0
        %v1355 = vsel %vm1282, %v1308, 0.0
        %v1356 = vsel %vm1283, %v1312, 0.0
        %v1357 = vsel %vm1284, %v1316, 0.0
        %v1358 = vsel %vm1285, %v1320, 0.0
        %v1359 = vsel %vm1286, %v1324, 0.0
        %v1360 = vsel %vm1287, %v1328, 0.0
        %v1361 = vsel %vm1288, %v1300, 0.0
        %v1362 = vsel %vm1289, %v1304, 0.0
        %v1363 = vsel %vm1290, %v1308, 0.0
        %v1364 = vsel %vm1291, %v1312, 0.0
        %v1365 = vsel %vm1292, %v1316, 0.0
        %v1366 = vsel %vm1293, %v1320, 0.0
        %v1367 = vsel %vm1294, %v1324, 0.0
        %v1368 = vsel %vm1295, %v1328, 0.0
        %v1369 = vadd.f32 %v1023, %v1337
        %v1370 = vadd.f32 %v1024, %v1338
        %v1371 = vadd.f32 %v1025, %v1339
        %v1372 = vadd.f32 %v1026, %v1340
        %v1373 = vadd.f32 %v1027, %v1341
        %v1374 = vadd.f32 %v1028, %v1342
        %v1375 = vadd.f32 %v1029, %v1343
        %v1376 = vadd.f32 %v1030, %v1344
        %v1377 = vadd.f32 %v1031, %v1345
        %v1378 = vadd.f32 %v1032, %v1346
        %v1379 = vadd.f32 %v1033, %v1347
        %v1380 = vadd.f32 %v1034, %v1348
        %v1381 = vadd.f32 %v1035, %v1349
        %v1382 = vadd.f32 %v1036, %v1350
        %v1383 = vadd.f32 %v1037, %v1351
        %v1384 = vadd.f32 %v1038, %v1352
        %v1385 = vadd.f32 %v1039, %v1353
        %v1386 = vadd.f32 %v1040, %v1354
        %v1387 = vadd.f32 %v1041, %v1355
        %v1388 = vadd.f32 %v1042, %v1356
        %v1389 = vadd.f32 %v1043, %v1357
        %v1390 = vadd.f32 %v1044, %v1358
        %v1391 = vadd.f32 %v1045, %v1359
        %v1392 = vadd.f32 %v1046, %v1360
        %v1393 = vadd.f32 %v1047, %v1361
        %v1394 = vadd.f32 %v1048, %v1362
        %v1395 = vadd.f32 %v1049, %v1363
        %v1396 = vadd.f32 %v1050, %v1364
        %v1397 = vadd.f32 %v1051, %v1365
        %v1398 = vadd.f32 %v1052, %v1366
        %v1399 = vadd.f32 %v1053, %v1367
        %v1400 = vadd.f32 %v1054, %v1368
        %v1401 = vadd.f32 %v305, 2.0
        %v1402 = vmax.f32 %v1401, 0.0
        %v1403 = vmin.f32 %v1402, 31.0
        %v1404 = vcvt.f32.s32.to.zero.pseudo %v1403
        %v1405 = vadd.f32 %v304, 2.0
        %v1406 = vmax.f32 %v1405, 0.0
        %v1407 = vmin.f32 %v1406, 31.0
        %v1408 = vcvt.f32.s32.to.zero.pseudo %v1407
        %v1409 = vlaneseq
        %v1410 = vshrl.u32 %v1409, 7
        %v1411 = vsub.s32 0, %v1410
        %v1412 = vrot.slane %v1404, %v1411
        %v1413 = vlaneseq
        %v1414 = vshrl.u32 %v1413, 7
        %v1415 = vsub.s32 1, %v1414
        %v1416 = vrot.slane %v1404, %v1415
        %v1417 = vlaneseq
        %v1418 = vshrl.u32 %v1417, 7
        %v1419 = vsub.s32 2, %v1418
        %v1420 = vrot.slane %v1404, %v1419
        %v1421 = vlaneseq
        %v1422 = vshrl.u32 %v1421, 7
        %v1423 = vsub.s32 3, %v1422
        %v1424 = vrot.slane %v1404, %v1423
        %v1425 = vlaneseq
        %v1426 = vshrl.u32 %v1425, 7
        %v1427 = vsub.s32 4, %v1426
        %v1428 = vrot.slane %v1404, %v1427
        %v1429 = vlaneseq
        %v1430 = vshrl.u32 %v1429, 7
        %v1431 = vsub.s32 5, %v1430
        %v1432 = vrot.slane %v1404, %v1431
        %v1433 = vlaneseq
        %v1434 = vshrl.u32 %v1433, 7
        %v1435 = vsub.s32 6, %v1434
        %v1436 = vrot.slane %v1404, %v1435
        %v1437 = vlaneseq
        %v1438 = vshrl.u32 %v1437, 7
        %v1439 = vsub.s32 7, %v1438
        %v1440 = vrot.slane %v1404, %v1439
        %vm1441 = vcmp.eq.s32.totalorder %v359, %v1412
        %vm1442 = vcmp.eq.s32.totalorder %v359, %v1416
        %vm1443 = vcmp.eq.s32.totalorder %v359, %v1420
        %vm1444 = vcmp.eq.s32.totalorder %v359, %v1424
        %vm1445 = vcmp.eq.s32.totalorder %v359, %v1428
        %vm1446 = vcmp.eq.s32.totalorder %v359, %v1432
        %vm1447 = vcmp.eq.s32.totalorder %v359, %v1436
        %vm1448 = vcmp.eq.s32.totalorder %v359, %v1440
        %vm1449 = vcmp.eq.s32.totalorder %v360, %v1412
        %vm1450 = vcmp.eq.s32.totalorder %v360, %v1416
        %vm1451 = vcmp.eq.s32.totalorder %v360, %v1420
        %vm1452 = vcmp.eq.s32.totalorder %v360, %v1424
        %vm1453 = vcmp.eq.s32.totalorder %v360, %v1428
        %vm1454 = vcmp.eq.s32.totalorder %v360, %v1432
        %vm1455 = vcmp.eq.s32.totalorder %v360, %v1436
        %vm1456 = vcmp.eq.s32.totalorder %v360, %v1440
        %vm1457 = vcmp.eq.s32.totalorder %v361, %v1412
        %vm1458 = vcmp.eq.s32.totalorder %v361, %v1416
        %vm1459 = vcmp.eq.s32.totalorder %v361, %v1420
        %vm1460 = vcmp.eq.s32.totalorder %v361, %v1424
        %vm1461 = vcmp.eq.s32.totalorder %v361, %v1428
        %vm1462 = vcmp.eq.s32.totalorder %v361, %v1432
        %vm1463 = vcmp.eq.s32.totalorder %v361, %v1436
        %vm1464 = vcmp.eq.s32.totalorder %v361, %v1440
        %vm1465 = vcmp.eq.s32.totalorder %v362, %v1412
        %vm1466 = vcmp.eq.s32.totalorder %v362, %v1416
        %vm1467 = vcmp.eq.s32.totalorder %v362, %v1420
        %vm1468 = vcmp.eq.s32.totalorder %v362, %v1424
        %vm1469 = vcmp.eq.s32.totalorder %v362, %v1428
        %vm1470 = vcmp.eq.s32.totalorder %v362, %v1432
        %vm1471 = vcmp.eq.s32.totalorder %v362, %v1436
        %vm1472 = vcmp.eq.s32.totalorder %v362, %v1440
        %v1474 = vlaneseq
        %v1475 = vshrl.u32 %v1474, 7
        %v1476 = vsub.s32 0, %v1475
        %v1477 = vrot.slane %v357, %v1476
        %v1478 = vlaneseq
        %v1479 = vshrl.u32 %v1478, 7
        %v1480 = vsub.s32 1, %v1479
        %v1481 = vrot.slane %v357, %v1480
        %v1482 = vlaneseq
        %v1483 = vshrl.u32 %v1482, 7
        %v1484 = vsub.s32 2, %v1483
        %v1485 = vrot.slane %v357, %v1484
        %v1486 = vlaneseq
        %v1487 = vshrl.u32 %v1486, 7
        %v1488 = vsub.s32 3, %v1487
        %v1489 = vrot.slane %v357, %v1488
        %v1490 = vlaneseq
        %v1491 = vshrl.u32 %v1490, 7
        %v1492 = vsub.s32 4, %v1491
        %v1493 = vrot.slane %v357, %v1492
        %v1494 = vlaneseq
        %v1495 = vshrl.u32 %v1494, 7
        %v1496 = vsub.s32 5, %v1495
        %v1497 = vrot.slane %v357, %v1496
        %v1498 = vlaneseq
        %v1499 = vshrl.u32 %v1498, 7
        %v1500 = vsub.s32 6, %v1499
        %v1501 = vrot.slane %v357, %v1500
        %v1502 = vlaneseq
        %v1503 = vshrl.u32 %v1502, 7
        %v1504 = vsub.s32 7, %v1503
        %v1505 = vrot.slane %v357, %v1504
        %v1514 = vsel %vm1441, %v1477, 0.0
        %v1515 = vsel %vm1442, %v1481, 0.0
        %v1516 = vsel %vm1443, %v1485, 0.0
        %v1517 = vsel %vm1444, %v1489, 0.0
        %v1518 = vsel %vm1445, %v1493, 0.0
        %v1519 = vsel %vm1446, %v1497, 0.0
        %v1520 = vsel %vm1447, %v1501, 0.0
        %v1521 = vsel %vm1448, %v1505, 0.0
        %v1522 = vsel %vm1449, %v1477, 0.0
        %v1523 = vsel %vm1450, %v1481, 0.0
        %v1524 = vsel %vm1451, %v1485, 0.0
        %v1525 = vsel %vm1452, %v1489, 0.0
        %v1526 = vsel %vm1453, %v1493, 0.0
        %v1527 = vsel %vm1454, %v1497, 0.0
        %v1528 = vsel %vm1455, %v1501, 0.0
        %v1529 = vsel %vm1456, %v1505, 0.0
        %v1530 = vsel %vm1457, %v1477, 0.0
        %v1531 = vsel %vm1458, %v1481, 0.0
        %v1532 = vsel %vm1459, %v1485, 0.0
        %v1533 = vsel %vm1460, %v1489, 0.0
        %v1534 = vsel %vm1461, %v1493, 0.0
        %v1535 = vsel %vm1462, %v1497, 0.0
        %v1536 = vsel %vm1463, %v1501, 0.0
        %v1537 = vsel %vm1464, %v1505, 0.0
        %v1538 = vsel %vm1465, %v1477, 0.0
        %v1539 = vsel %vm1466, %v1481, 0.0
        %v1540 = vsel %vm1467, %v1485, 0.0
        %v1541 = vsel %vm1468, %v1489, 0.0
        %v1542 = vsel %vm1469, %v1493, 0.0
        %v1543 = vsel %vm1470, %v1497, 0.0
        %v1544 = vsel %vm1471, %v1501, 0.0
        %v1545 = vsel %vm1472, %v1505, 0.0
        %v1546 = vadd.f32 %v1200, %v1514
        %v1547 = vadd.f32 %v1201, %v1515
        %v1548 = vadd.f32 %v1202, %v1516
        %v1549 = vadd.f32 %v1203, %v1517
        %v1550 = vadd.f32 %v1204, %v1518
        %v1551 = vadd.f32 %v1205, %v1519
        %v1552 = vadd.f32 %v1206, %v1520
        %v1553 = vadd.f32 %v1207, %v1521
        %v1554 = vadd.f32 %v1208, %v1522
        %v1555 = vadd.f32 %v1209, %v1523
        %v1556 = vadd.f32 %v1210, %v1524
        %v1557 = vadd.f32 %v1211, %v1525
        %v1558 = vadd.f32 %v1212, %v1526
        %v1559 = vadd.f32 %v1213, %v1527
        %v1560 = vadd.f32 %v1214, %v1528
        %v1561 = vadd.f32 %v1215, %v1529
        %v1562 = vadd.f32 %v1216, %v1530
        %v1563 = vadd.f32 %v1217, %v1531
        %v1564 = vadd.f32 %v1218, %v1532
        %v1565 = vadd.f32 %v1219, %v1533
        %v1566 = vadd.f32 %v1220, %v1534
        %v1567 = vadd.f32 %v1221, %v1535
        %v1568 = vadd.f32 %v1222, %v1536
        %v1569 = vadd.f32 %v1223, %v1537
        %v1570 = vadd.f32 %v1224, %v1538
        %v1571 = vadd.f32 %v1225, %v1539
        %v1572 = vadd.f32 %v1226, %v1540
        %v1573 = vadd.f32 %v1227, %v1541
        %v1574 = vadd.f32 %v1228, %v1542
        %v1575 = vadd.f32 %v1229, %v1543
        %v1576 = vadd.f32 %v1230, %v1544
        %v1577 = vadd.f32 %v1231, %v1545
        %v1578 = vlaneseq
        %v1579 = vshrl.u32 %v1578, 7
        %v1580 = vsub.s32 0, %v1579
        %v1581 = vrot.slane %v1408, %v1580
        %v1582 = vlaneseq
        %v1583 = vshrl.u32 %v1582, 7
        %v1584 = vsub.s32 1, %v1583
        %v1585 = vrot.slane %v1408, %v1584
        %v1586 = vlaneseq
        %v1587 = vshrl.u32 %v1586, 7
        %v1588 = vsub.s32 2, %v1587
        %v1589 = vrot.slane %v1408, %v1588
        %v1590 = vlaneseq
        %v1591 = vshrl.u32 %v1590, 7
        %v1592 = vsub.s32 3, %v1591
        %v1593 = vrot.slane %v1408, %v1592
        %v1594 = vlaneseq
        %v1595 = vshrl.u32 %v1594, 7
        %v1596 = vsub.s32 4, %v1595
        %v1597 = vrot.slane %v1408, %v1596
        %v1598 = vlaneseq
        %v1599 = vshrl.u32 %v1598, 7
        %v1600 = vsub.s32 5, %v1599
        %v1601 = vrot.slane %v1408, %v1600
        %v1602 = vlaneseq
        %v1603 = vshrl.u32 %v1602, 7
        %v1604 = vsub.s32 6, %v1603
        %v1605 = vrot.slane %v1408, %v1604
        %v1606 = vlaneseq
        %v1607 = vshrl.u32 %v1606, 7
        %v1608 = vsub.s32 7, %v1607
        %v1609 = vrot.slane %v1408, %v1608
        %vm1610 = vcmp.eq.s32.totalorder %v359, %v1581
        %vm1611 = vcmp.eq.s32.totalorder %v359, %v1585
        %vm1612 = vcmp.eq.s32.totalorder %v359, %v1589
        %vm1613 = vcmp.eq.s32.totalorder %v359, %v1593
        %vm1614 = vcmp.eq.s32.totalorder %v359, %v1597
        %vm1615 = vcmp.eq.s32.totalorder %v359, %v1601
        %vm1616 = vcmp.eq.s32.totalorder %v359, %v1605
        %vm1617 = vcmp.eq.s32.totalorder %v359, %v1609
        %vm1618 = vcmp.eq.s32.totalorder %v360, %v1581
        %vm1619 = vcmp.eq.s32.totalorder %v360, %v1585
        %vm1620 = vcmp.eq.s32.totalorder %v360, %v1589
        %vm1621 = vcmp.eq.s32.totalorder %v360, %v1593
        %vm1622 = vcmp.eq.s32.totalorder %v360, %v1597
        %vm1623 = vcmp.eq.s32.totalorder %v360, %v1601
        %vm1624 = vcmp.eq.s32.totalorder %v360, %v1605
        %vm1625 = vcmp.eq.s32.totalorder %v360, %v1609
        %vm1626 = vcmp.eq.s32.totalorder %v361, %v1581
        %vm1627 = vcmp.eq.s32.totalorder %v361, %v1585
        %vm1628 = vcmp.eq.s32.totalorder %v361, %v1589
        %vm1629 = vcmp.eq.s32.totalorder %v361, %v1593
        %vm1630 = vcmp.eq.s32.totalorder %v361, %v1597
        %vm1631 = vcmp.eq.s32.totalorder %v361, %v1601
        %vm1632 = vcmp.eq.s32.totalorder %v361, %v1605
        %vm1633 = vcmp.eq.s32.totalorder %v361, %v1609
        %vm1634 = vcmp.eq.s32.totalorder %v362, %v1581
        %vm1635 = vcmp.eq.s32.totalorder %v362, %v1585
        %vm1636 = vcmp.eq.s32.totalorder %v362, %v1589
        %vm1637 = vcmp.eq.s32.totalorder %v362, %v1593
        %vm1638 = vcmp.eq.s32.totalorder %v362, %v1597
        %vm1639 = vcmp.eq.s32.totalorder %v362, %v1601
        %vm1640 = vcmp.eq.s32.totalorder %v362, %v1605
        %vm1641 = vcmp.eq.s32.totalorder %v362, %v1609
        %v1643 = vlaneseq
        %v1644 = vshrl.u32 %v1643, 7
        %v1645 = vsub.s32 0, %v1644
        %v1646 = vrot.slane %v332, %v1645
        %v1647 = vlaneseq
        %v1648 = vshrl.u32 %v1647, 7
        %v1649 = vsub.s32 1, %v1648
        %v1650 = vrot.slane %v332, %v1649
        %v1651 = vlaneseq
        %v1652 = vshrl.u32 %v1651, 7
        %v1653 = vsub.s32 2, %v1652
        %v1654 = vrot.slane %v332, %v1653
        %v1655 = vlaneseq
        %v1656 = vshrl.u32 %v1655, 7
        %v1657 = vsub.s32 3, %v1656
        %v1658 = vrot.slane %v332, %v1657
        %v1659 = vlaneseq
        %v1660 = vshrl.u32 %v1659, 7
        %v1661 = vsub.s32 4, %v1660
        %v1662 = vrot.slane %v332, %v1661
        %v1663 = vlaneseq
        %v1664 = vshrl.u32 %v1663, 7
        %v1665 = vsub.s32 5, %v1664
        %v1666 = vrot.slane %v332, %v1665
        %v1667 = vlaneseq
        %v1668 = vshrl.u32 %v1667, 7
        %v1669 = vsub.s32 6, %v1668
        %v1670 = vrot.slane %v332, %v1669
        %v1671 = vlaneseq
        %v1672 = vshrl.u32 %v1671, 7
        %v1673 = vsub.s32 7, %v1672
        %v1674 = vrot.slane %v332, %v1673
        %v1683 = vsel %vm1610, %v1646, 0.0
        %v1684 = vsel %vm1611, %v1650, 0.0
        %v1685 = vsel %vm1612, %v1654, 0.0
        %v1686 = vsel %vm1613, %v1658, 0.0
        %v1687 = vsel %vm1614, %v1662, 0.0
        %v1688 = vsel %vm1615, %v1666, 0.0
        %v1689 = vsel %vm1616, %v1670, 0.0
        %v1690 = vsel %vm1617, %v1674, 0.0
        %v1691 = vsel %vm1618, %v1646, 0.0
        %v1692 = vsel %vm1619, %v1650, 0.0
        %v1693 = vsel %vm1620, %v1654, 0.0
        %v1694 = vsel %vm1621, %v1658, 0.0
        %v1695 = vsel %vm1622, %v1662, 0.0
        %v1696 = vsel %vm1623, %v1666, 0.0
        %v1697 = vsel %vm1624, %v1670, 0.0
        %v1698 = vsel %vm1625, %v1674, 0.0
        %v1699 = vsel %vm1626, %v1646, 0.0
        %v1700 = vsel %vm1627, %v1650, 0.0
        %v1701 = vsel %vm1628, %v1654, 0.0
        %v1702 = vsel %vm1629, %v1658, 0.0
        %v1703 = vsel %vm1630, %v1662, 0.0
        %v1704 = vsel %vm1631, %v1666, 0.0
        %v1705 = vsel %vm1632, %v1670, 0.0
        %v1706 = vsel %vm1633, %v1674, 0.0
        %v1707 = vsel %vm1634, %v1646, 0.0
        %v1708 = vsel %vm1635, %v1650, 0.0
        %v1709 = vsel %vm1636, %v1654, 0.0
        %v1710 = vsel %vm1637, %v1658, 0.0
        %v1711 = vsel %vm1638, %v1662, 0.0
        %v1712 = vsel %vm1639, %v1666, 0.0
        %v1713 = vsel %vm1640, %v1670, 0.0
        %v1714 = vsel %vm1641, %v1674, 0.0
        %v1715 = vadd.f32 %v1369, %v1683
        %v1716 = vadd.f32 %v1370, %v1684
        %v1717 = vadd.f32 %v1371, %v1685
        %v1718 = vadd.f32 %v1372, %v1686
        %v1719 = vadd.f32 %v1373, %v1687
        %v1720 = vadd.f32 %v1374, %v1688
        %v1721 = vadd.f32 %v1375, %v1689
        %v1722 = vadd.f32 %v1376, %v1690
        %v1723 = vadd.f32 %v1377, %v1691
        %v1724 = vadd.f32 %v1378, %v1692
        %v1725 = vadd.f32 %v1379, %v1693
        %v1726 = vadd.f32 %v1380, %v1694
        %v1727 = vadd.f32 %v1381, %v1695
        %v1728 = vadd.f32 %v1382, %v1696
        %v1729 = vadd.f32 %v1383, %v1697
        %v1730 = vadd.f32 %v1384, %v1698
        %v1731 = vadd.f32 %v1385, %v1699
        %v1732 = vadd.f32 %v1386, %v1700
        %v1733 = vadd.f32 %v1387, %v1701
        %v1734 = vadd.f32 %v1388, %v1702
        %v1735 = vadd.f32 %v1389, %v1703
        %v1736 = vadd.f32 %v1390, %v1704
        %v1737 = vadd.f32 %v1391, %v1705
        %v1738 = vadd.f32 %v1392, %v1706
        %v1739 = vadd.f32 %v1393, %v1707
        %v1740 = vadd.f32 %v1394, %v1708
        %v1741 = vadd.f32 %v1395, %v1709
        %v1742 = vadd.f32 %v1396, %v1710
        %v1743 = vadd.f32 %v1397, %v1711
        %v1744 = vadd.f32 %v1398, %v1712
        %v1745 = vadd.f32 %v1399, %v1713
        %v1746 = vadd.f32 %v1400, %v1714
        %v1747 = vld [vmem:[%s261] sm:$0xf]
        %v1748 = vld [vmem:[%s261 + $0x4] sm:$0xf]
        %v1749 = vld [vmem:[%s261 + $0x8] sm:$0xf]
        %v1750 = vld [vmem:[%s261 + $0xc] sm:$0xf]
        %v1751 = vld [vmem:[%s261 + $0x10] sm:$0xf]
        %v1752 = vld [vmem:[%s261 + $0x14] sm:$0xf]
        %v1753 = vld [vmem:[%s261 + $0x18] sm:$0xf]
        %v1754 = vld [vmem:[%s261 + $0x1c] sm:$0xf]
        %v1755 = vpack.c.bf16 %v1723, %v1715
        %v1756 = vpack.c.bf16 %v1724, %v1716
        %v1757 = vpack.c.bf16 %v1725, %v1717
        %v1758 = vpack.c.bf16 %v1726, %v1718
        %v1759 = vpack.c.bf16 %v1727, %v1719
        %v1760 = vpack.c.bf16 %v1728, %v1720
        %v1761 = vpack.c.bf16 %v1729, %v1721
        %v1762 = vpack.c.bf16 %v1730, %v1722
        %v1763 = vpack.c.bf16 %v1739, %v1731
        %v1764 = vpack.c.bf16 %v1740, %v1732
        %v1765 = vpack.c.bf16 %v1741, %v1733
        %v1766 = vpack.c.bf16 %v1742, %v1734
        %v1767 = vpack.c.bf16 %v1743, %v1735
        %v1768 = vpack.c.bf16 %v1744, %v1736
        %v1769 = vpack.c.bf16 %v1745, %v1737
        %v1770 = vpack.c.bf16 %v1746, %v1738
        %v1779 = vunpack.c.l.b16 %v1747
        %v1780 = vunpack.c.l.b16 %v1748
        %v1781 = vunpack.c.l.b16 %v1749
        %v1782 = vunpack.c.l.b16 %v1750
        %v1783 = vunpack.c.l.b16 %v1751
        %v1784 = vunpack.c.l.b16 %v1752
        %v1785 = vunpack.c.l.b16 %v1753
        %v1786 = vunpack.c.l.b16 %v1754
        %v1787 = vpack.c.b16 %v1780, %v1779
        %v1788 = vpack.c.b16 %v1782, %v1781
        %v1789 = vpack.c.b16 %v1784, %v1783
        %v1790 = vpack.c.b16 %v1786, %v1785
        %vm1791 = vcmask 261120
        %v1793 = vsel %vm1791, %v1787, 0
        %v1796 = vsel %vm1791, %v1788, 0
        %v1799 = vsel %vm1791, %v1789, 0
        %v1802 = vsel %vm1791, %v1790, 0
        %1804 = vmatprep.subr.bf16.mxu0 %v1756
        %1805 = vmatpush1.bf16.msra.mxu0 %v1755
        %1806 = vmatprep.subr.bf16.mxu0 %v1764
        %1807 = vmatpush1.bf16.msra.mxu0 %v1763
        %1808 = vmatprep.subr.bf16.mxu0 0
        %1809 = vmatpush1.bf16.msra.mxu0 0
        %1810 = vmatprep.subr.bf16.mxu0 0
        %1811 = vmatpush1.bf16.msra.mxu0 0
        %1812 = vmatprep.subr.bf16.mxu0 0
        %1813 = vmatpush1.bf16.msra.mxu0 0
        %1814 = vmatprep.subr.bf16.mxu0 0
        %1815 = vmatpush1.bf16.msra.mxu0 0
        %1816 = vmatprep.subr.bf16.mxu0 0
        %1817 = vmatpush1.bf16.msra.mxu0 0
        %1818 = vmatprep.subr.bf16.mxu0 0
        %1819 = vmatpush1.bf16.msra.mxu0 0
        %1820 = vmatprep.subr.bf16.mxu0 0
        %1821 = vmatpush1.bf16.msra.mxu0 0
        %1822 = vmatprep.subr.bf16.mxu0 0
        %1823 = vmatpush1.bf16.msra.mxu0 0
        %1824 = vmatprep.subr.bf16.mxu0 0
        %1825 = vmatpush1.bf16.msra.mxu0 0
        %1826 = vmatprep.subr.bf16.mxu0 0
        %1827 = vmatpush1.bf16.msra.mxu0 0
        %1828 = vmatprep.subr.bf16.mxu0 0
        %1829 = vmatpush1.bf16.msra.mxu0 0
        %1830 = vmatprep.subr.bf16.mxu0 0
        %1831 = vmatpush1.bf16.msra.mxu0 0
        %1832 = vmatprep.subr.bf16.mxu0 0
        %1833 = vmatpush1.bf16.msra.mxu0 0
        %1834 = vmatprep.subr.bf16.mxu0 0
        %1835 = vmatpush1.bf16.msra.mxu0 0
        %1836 = vmatprep.mubr.bf16.mxu0 0
        %1837 = vmatmul.mubr.bf16.gmra.mrb[0].mxu0 %v1793
        %v1838 = vpop.f32.mrb[0].mxu0
        %v1839 = vadd.f32 0.0, %v1838
        %v1840 = vpop.f32.mrb[0].mxu0
        %v1841 = vadd.f32 0.0, %v1840
        %v1842 = vpop.f32.mrb[0].mxu0
        %v1843 = vadd.f32 0.0, %v1842
        %v1844 = vpop.f32.mrb[0].mxu0
        %v1845 = vadd.f32 0.0, %v1844
        %1846 = vmatprep.mubr.bf16.mxu0 0
        %1847 = vmatmul.mubr.bf16.gmra.mrb[0].mxu0 %v1796
        %v1848 = vpop.f32.mrb[0].mxu0
        %v1849 = vadd.f32 0.0, %v1848
        %v1850 = vpop.f32.mrb[0].mxu0
        %v1851 = vadd.f32 0.0, %v1850
        %v1852 = vpop.f32.mrb[0].mxu0
        %v1853 = vadd.f32 0.0, %v1852
        %v1854 = vpop.f32.mrb[0].mxu0
        %v1855 = vadd.f32 0.0, %v1854
        %1856 = vmatprep.mubr.bf16.mxu0 0
        %1857 = vmatmul.mubr.bf16.gmra.mrb[0].mxu0 %v1799
        %v1858 = vpop.f32.mrb[0].mxu0
        %v1859 = vadd.f32 0.0, %v1858
        %v1860 = vpop.f32.mrb[0].mxu0
        %v1861 = vadd.f32 0.0, %v1860
        %v1862 = vpop.f32.mrb[0].mxu0
        %v1863 = vadd.f32 0.0, %v1862
        %v1864 = vpop.f32.mrb[0].mxu0
        %v1865 = vadd.f32 0.0, %v1864
        %1866 = vmatprep.mubr.bf16.mxu0 0
        %1867 = vmatmul.mubr.bf16.gmra.mrb[0].mxu0 %v1802
        %v1868 = vpop.f32.mrb[0].mxu0
        %v1869 = vadd.f32 0.0, %v1868
        %v1870 = vpop.f32.mrb[0].mxu0
        %v1871 = vadd.f32 0.0, %v1870
        %v1872 = vpop.f32.mrb[0].mxu0
        %v1873 = vadd.f32 0.0, %v1872
        %v1874 = vpop.f32.mrb[0].mxu0
        %v1875 = vadd.f32 0.0, %v1874
        %1876 = vdwg.mxu0
        %1877 = vmatprep.subr.bf16.mxu0 %v1758
        %1878 = vmatpush1.bf16.msra.mxu0 %v1757
        %1879 = vmatprep.subr.bf16.mxu0 %v1766
        %1880 = vmatpush1.bf16.msra.mxu0 %v1765
        %1881 = vmatprep.subr.bf16.mxu0 0
        %1882 = vmatpush1.bf16.msra.mxu0 0
        %1883 = vmatprep.subr.bf16.mxu0 0
        %1884 = vmatpush1.bf16.msra.mxu0 0
        %1885 = vmatprep.subr.bf16.mxu0 0
        %1886 = vmatpush1.bf16.msra.mxu0 0
        %1887 = vmatprep.subr.bf16.mxu0 0
        %1888 = vmatpush1.bf16.msra.mxu0 0
        %1889 = vmatprep.subr.bf16.mxu0 0
        %1890 = vmatpush1.bf16.msra.mxu0 0
        %1891 = vmatprep.subr.bf16.mxu0 0
        %1892 = vmatpush1.bf16.msra.mxu0 0
        %1893 = vmatprep.subr.bf16.mxu0 0
        %1894 = vmatpush1.bf16.msra.mxu0 0
        %1895 = vmatprep.subr.bf16.mxu0 0
        %1896 = vmatpush1.bf16.msra.mxu0 0
        %1897 = vmatprep.subr.bf16.mxu0 0
        %1898 = vmatpush1.bf16.msra.mxu0 0
        %1899 = vmatprep.subr.bf16.mxu0 0
        %1900 = vmatpush1.bf16.msra.mxu0 0
        %1901 = vmatprep.subr.bf16.mxu0 0
        %1902 = vmatpush1.bf16.msra.mxu0 0
        %1903 = vmatprep.subr.bf16.mxu0 0
        %1904 = vmatpush1.bf16.msra.mxu0 0
        %1905 = vmatprep.subr.bf16.mxu0 0
        %1906 = vmatpush1.bf16.msra.mxu0 0
        %1907 = vmatprep.subr.bf16.mxu0 0
        %1908 = vmatpush1.bf16.msra.mxu0 0
        %1909 = vmatprep.mubr.bf16.mxu0 0
        %1910 = vmatmul.mubr.bf16.gmra.mrb[0].mxu0 %v1793
        %v1911 = vpop.f32.mrb[0].mxu0
        %v1912 = vadd.f32 0.0, %v1911
        %v1913 = vpop.f32.mrb[0].mxu0
        %v1914 = vadd.f32 0.0, %v1913
        %v1915 = vpop.f32.mrb[0].mxu0
        %v1916 = vadd.f32 0.0, %v1915
        %v1917 = vpop.f32.mrb[0].mxu0
        %v1918 = vadd.f32 0.0, %v1917
        %1919 = vmatprep.mubr.bf16.mxu0 0
        %1920 = vmatmul.mubr.bf16.gmra.mrb[0].mxu0 %v1796
        %v1921 = vpop.f32.mrb[0].mxu0
        %v1922 = vadd.f32 0.0, %v1921
        %v1923 = vpop.f32.mrb[0].mxu0
        %v1924 = vadd.f32 0.0, %v1923
        %v1925 = vpop.f32.mrb[0].mxu0
        %v1926 = vadd.f32 0.0, %v1925
        %v1927 = vpop.f32.mrb[0].mxu0
        %v1928 = vadd.f32 0.0, %v1927
        %1929 = vmatprep.mubr.bf16.mxu0 0
        %1930 = vmatmul.mubr.bf16.gmra.mrb[0].mxu0 %v1799
        %v1931 = vpop.f32.mrb[0].mxu0
        %v1932 = vadd.f32 0.0, %v1931
        %v1933 = vpop.f32.mrb[0].mxu0
        %v1934 = vadd.f32 0.0, %v1933
        %v1935 = vpop.f32.mrb[0].mxu0
        %v1936 = vadd.f32 0.0, %v1935
        %v1937 = vpop.f32.mrb[0].mxu0
        %v1938 = vadd.f32 0.0, %v1937
        %1939 = vmatprep.mubr.bf16.mxu0 0
        %1940 = vmatmul.mubr.bf16.gmra.mrb[0].mxu0 %v1802
        %v1941 = vpop.f32.mrb[0].mxu0
        %v1942 = vadd.f32 0.0, %v1941
        %v1943 = vpop.f32.mrb[0].mxu0
        %v1944 = vadd.f32 0.0, %v1943
        %v1945 = vpop.f32.mrb[0].mxu0
        %v1946 = vadd.f32 0.0, %v1945
        %v1947 = vpop.f32.mrb[0].mxu0
        %v1948 = vadd.f32 0.0, %v1947
        %1949 = vdwg.mxu0
        %1950 = vmatprep.subr.bf16.mxu0 %v1760
        %1951 = vmatpush1.bf16.msra.mxu0 %v1759
        %1952 = vmatprep.subr.bf16.mxu0 %v1768
        %1953 = vmatpush1.bf16.msra.mxu0 %v1767
        %1954 = vmatprep.subr.bf16.mxu0 0
        %1955 = vmatpush1.bf16.msra.mxu0 0
        %1956 = vmatprep.subr.bf16.mxu0 0
        %1957 = vmatpush1.bf16.msra.mxu0 0
        %1958 = vmatprep.subr.bf16.mxu0 0
        %1959 = vmatpush1.bf16.msra.mxu0 0
        %1960 = vmatprep.subr.bf16.mxu0 0
        %1961 = vmatpush1.bf16.msra.mxu0 0
        %1962 = vmatprep.subr.bf16.mxu0 0
        %1963 = vmatpush1.bf16.msra.mxu0 0
        %1964 = vmatprep.subr.bf16.mxu0 0
        %1965 = vmatpush1.bf16.msra.mxu0 0
        %1966 = vmatprep.subr.bf16.mxu0 0
        %1967 = vmatpush1.bf16.msra.mxu0 0
        %1968 = vmatprep.subr.bf16.mxu0 0
        %1969 = vmatpush1.bf16.msra.mxu0 0
        %1970 = vmatprep.subr.bf16.mxu0 0
        %1971 = vmatpush1.bf16.msra.mxu0 0
        %1972 = vmatprep.subr.bf16.mxu0 0
        %1973 = vmatpush1.bf16.msra.mxu0 0
        %1974 = vmatprep.subr.bf16.mxu0 0
        %1975 = vmatpush1.bf16.msra.mxu0 0
        %1976 = vmatprep.subr.bf16.mxu0 0
        %1977 = vmatpush1.bf16.msra.mxu0 0
        %1978 = vmatprep.subr.bf16.mxu0 0
        %1979 = vmatpush1.bf16.msra.mxu0 0
        %1980 = vmatprep.subr.bf16.mxu0 0
        %1981 = vmatpush1.bf16.msra.mxu0 0
        %1982 = vmatprep.mubr.bf16.mxu0 0
        %1983 = vmatmul.mubr.bf16.gmra.mrb[0].mxu0 %v1793
        %v1984 = vpop.f32.mrb[0].mxu0
        %v1985 = vadd.f32 0.0, %v1984
        %v1986 = vpop.f32.mrb[0].mxu0
        %v1987 = vadd.f32 0.0, %v1986
        %v1988 = vpop.f32.mrb[0].mxu0
        %v1989 = vadd.f32 0.0, %v1988
        %v1990 = vpop.f32.mrb[0].mxu0
        %v1991 = vadd.f32 0.0, %v1990
        %1992 = vmatprep.mubr.bf16.mxu0 0
        %1993 = vmatmul.mubr.bf16.gmra.mrb[0].mxu0 %v1796
        %v1994 = vpop.f32.mrb[0].mxu0
        %v1995 = vadd.f32 0.0, %v1994
        %v1996 = vpop.f32.mrb[0].mxu0
        %v1997 = vadd.f32 0.0, %v1996
        %v1998 = vpop.f32.mrb[0].mxu0
        %v1999 = vadd.f32 0.0, %v1998
        %v2000 = vpop.f32.mrb[0].mxu0
        %v2001 = vadd.f32 0.0, %v2000
        %2002 = vmatprep.mubr.bf16.mxu0 0
        %2003 = vmatmul.mubr.bf16.gmra.mrb[0].mxu0 %v1799
        %v2004 = vpop.f32.mrb[0].mxu0
        %v2005 = vadd.f32 0.0, %v2004
        %v2006 = vpop.f32.mrb[0].mxu0
        %v2007 = vadd.f32 0.0, %v2006
        %v2008 = vpop.f32.mrb[0].mxu0
        %v2009 = vadd.f32 0.0, %v2008
        %v2010 = vpop.f32.mrb[0].mxu0
        %v2011 = vadd.f32 0.0, %v2010
        %2012 = vmatprep.mubr.bf16.mxu0 0
        %2013 = vmatmul.mubr.bf16.gmra.mrb[0].mxu0 %v1802
        %v2014 = vpop.f32.mrb[0].mxu0
        %v2015 = vadd.f32 0.0, %v2014
        %v2016 = vpop.f32.mrb[0].mxu0
        %v2017 = vadd.f32 0.0, %v2016
        %v2018 = vpop.f32.mrb[0].mxu0
        %v2019 = vadd.f32 0.0, %v2018
        %v2020 = vpop.f32.mrb[0].mxu0
        %v2021 = vadd.f32 0.0, %v2020
        %2022 = vdwg.mxu0
        %2023 = vmatprep.subr.bf16.mxu0 %v1762
        %2024 = vmatpush1.bf16.msra.mxu0 %v1761
        %2025 = vmatprep.subr.bf16.mxu0 %v1770
        %2026 = vmatpush1.bf16.msra.mxu0 %v1769
        %2027 = vmatprep.subr.bf16.mxu0 0
        %2028 = vmatpush1.bf16.msra.mxu0 0
        %2029 = vmatprep.subr.bf16.mxu0 0
        %2030 = vmatpush1.bf16.msra.mxu0 0
        %2031 = vmatprep.subr.bf16.mxu0 0
        %2032 = vmatpush1.bf16.msra.mxu0 0
        %2033 = vmatprep.subr.bf16.mxu0 0
        %2034 = vmatpush1.bf16.msra.mxu0 0
        %2035 = vmatprep.subr.bf16.mxu0 0
        %2036 = vmatpush1.bf16.msra.mxu0 0
        %2037 = vmatprep.subr.bf16.mxu0 0
        %2038 = vmatpush1.bf16.msra.mxu0 0
        %2039 = vmatprep.subr.bf16.mxu0 0
        %2040 = vmatpush1.bf16.msra.mxu0 0
        %2041 = vmatprep.subr.bf16.mxu0 0
        %2042 = vmatpush1.bf16.msra.mxu0 0
        %2043 = vmatprep.subr.bf16.mxu0 0
        %2044 = vmatpush1.bf16.msra.mxu0 0
        %2045 = vmatprep.subr.bf16.mxu0 0
        %2046 = vmatpush1.bf16.msra.mxu0 0
        %2047 = vmatprep.subr.bf16.mxu0 0
        %2048 = vmatpush1.bf16.msra.mxu0 0
        %2049 = vmatprep.subr.bf16.mxu0 0
        %2050 = vmatpush1.bf16.msra.mxu0 0
        %2051 = vmatprep.subr.bf16.mxu0 0
        %2052 = vmatpush1.bf16.msra.mxu0 0
        %2053 = vmatprep.subr.bf16.mxu0 0
        %2054 = vmatpush1.bf16.msra.mxu0 0
        %2055 = vmatprep.mubr.bf16.mxu0 0
        %2056 = vmatmul.mubr.bf16.gmra.mrb[0].mxu0 %v1793
        %v2057 = vpop.f32.mrb[0].mxu0
        %v2058 = vadd.f32 0.0, %v2057
        %v2059 = vpop.f32.mrb[0].mxu0
        %v2060 = vadd.f32 0.0, %v2059
        %v2061 = vpop.f32.mrb[0].mxu0
        %v2062 = vadd.f32 0.0, %v2061
        %v2063 = vpop.f32.mrb[0].mxu0
        %v2064 = vadd.f32 0.0, %v2063
        %2065 = vmatprep.mubr.bf16.mxu0 0
        %2066 = vmatmul.mubr.bf16.gmra.mrb[0].mxu0 %v1796
        %v2067 = vpop.f32.mrb[0].mxu0
        %v2068 = vadd.f32 0.0, %v2067
        %v2069 = vpop.f32.mrb[0].mxu0
        %v2070 = vadd.f32 0.0, %v2069
        %v2071 = vpop.f32.mrb[0].mxu0
        %v2072 = vadd.f32 0.0, %v2071
        %v2073 = vpop.f32.mrb[0].mxu0
        %v2074 = vadd.f32 0.0, %v2073
        %2075 = vmatprep.mubr.bf16.mxu0 0
        %2076 = vmatmul.mubr.bf16.gmra.mrb[0].mxu0 %v1799
        %v2077 = vpop.f32.mrb[0].mxu0
        %v2078 = vadd.f32 0.0, %v2077
        %v2079 = vpop.f32.mrb[0].mxu0
        %v2080 = vadd.f32 0.0, %v2079
        %v2081 = vpop.f32.mrb[0].mxu0
        %v2082 = vadd.f32 0.0, %v2081
        %v2083 = vpop.f32.mrb[0].mxu0
        %v2084 = vadd.f32 0.0, %v2083
        %2085 = vmatprep.mubr.bf16.mxu0 0
        %2086 = vmatmul.mubr.bf16.gmra.mrb[0].mxu0 %v1802
        %v2087 = vpop.f32.mrb[0].mxu0
        %v2088 = vadd.f32 0.0, %v2087
        %v2089 = vpop.f32.mrb[0].mxu0
        %v2090 = vadd.f32 0.0, %v2089
        %v2091 = vpop.f32.mrb[0].mxu0
        %v2092 = vadd.f32 0.0, %v2091
        %v2093 = vpop.f32.mrb[0].mxu0
        %v2094 = vadd.f32 0.0, %v2093
        %2095 = vdwg.mxu0
        %v2096 = vmul.f32 %v1839, %v1546
        %v2097 = vmul.f32 %v1841, %v1547
        %v2098 = vmul.f32 %v1912, %v1548
        %v2099 = vmul.f32 %v1914, %v1549
        %v2100 = vmul.f32 %v1985, %v1550
        %v2101 = vmul.f32 %v1987, %v1551
        %v2102 = vmul.f32 %v2058, %v1552
        %v2103 = vmul.f32 %v2060, %v1553
        %v2104 = vmul.f32 %v1843, %v1554
        %v2105 = vmul.f32 %v1845, %v1555
        %v2106 = vmul.f32 %v1916, %v1556
        %v2107 = vmul.f32 %v1918, %v1557
        %v2108 = vmul.f32 %v1989, %v1558
        %v2109 = vmul.f32 %v1991, %v1559
        %v2110 = vmul.f32 %v2062, %v1560
        %v2111 = vmul.f32 %v2064, %v1561
        %v2112 = vmul.f32 %v1849, %v1562
        %v2113 = vmul.f32 %v1851, %v1563
        %v2114 = vmul.f32 %v1922, %v1564
        %v2115 = vmul.f32 %v1924, %v1565
        %v2116 = vmul.f32 %v1995, %v1566
        %v2117 = vmul.f32 %v1997, %v1567
        %v2118 = vmul.f32 %v2068, %v1568
        %v2119 = vmul.f32 %v2070, %v1569
        %v2120 = vmul.f32 %v1853, %v1570
        %v2121 = vmul.f32 %v1855, %v1571
        %v2122 = vmul.f32 %v1926, %v1572
        %v2123 = vmul.f32 %v1928, %v1573
        %v2124 = vmul.f32 %v1999, %v1574
        %v2125 = vmul.f32 %v2001, %v1575
        %v2126 = vmul.f32 %v2072, %v1576
        %v2127 = vmul.f32 %v2074, %v1577
        %v2128 = vadd.f32 %v2096, %v2104
        %v2129 = vadd.f32 %v2128, %v2112
        %v2130 = vadd.f32 %v2129, %v2120
        %v2131 = vrot.slane %v2130, 4
        %v2132 = vadd.f32 %v2130, %v2131
        %v2133 = vrot.slane %v2132, 2
        %v2134 = vadd.f32 %v2132, %v2133
        %v2135 = vrot.slane %v2134, 1
        %v2136 = vadd.f32 %v2134, %v2135
        %v2137 = vadd.f32 %v2097, %v2105
        %v2138 = vadd.f32 %v2137, %v2113
        %v2139 = vadd.f32 %v2138, %v2121
        %v2140 = vrot.slane %v2139, 4
        %v2141 = vadd.f32 %v2139, %v2140
        %v2142 = vrot.slane %v2141, 2
        %v2143 = vadd.f32 %v2141, %v2142
        %v2144 = vrot.slane %v2143, 1
        %v2145 = vadd.f32 %v2143, %v2144
        %v2146 = vadd.f32 %v2098, %v2106
        %v2147 = vadd.f32 %v2146, %v2114
        %v2148 = vadd.f32 %v2147, %v2122
        %v2149 = vrot.slane %v2148, 4
        %v2150 = vadd.f32 %v2148, %v2149
        %v2151 = vrot.slane %v2150, 2
        %v2152 = vadd.f32 %v2150, %v2151
        %v2153 = vrot.slane %v2152, 1
        %v2154 = vadd.f32 %v2152, %v2153
        %v2155 = vadd.f32 %v2099, %v2107
        %v2156 = vadd.f32 %v2155, %v2115
        %v2157 = vadd.f32 %v2156, %v2123
        %v2158 = vrot.slane %v2157, 4
        %v2159 = vadd.f32 %v2157, %v2158
        %v2160 = vrot.slane %v2159, 2
        %v2161 = vadd.f32 %v2159, %v2160
        %v2162 = vrot.slane %v2161, 1
        %v2163 = vadd.f32 %v2161, %v2162
        %v2164 = vadd.f32 %v2100, %v2108
        %v2165 = vadd.f32 %v2164, %v2116
        %v2166 = vadd.f32 %v2165, %v2124
        %v2167 = vrot.slane %v2166, 4
        %v2168 = vadd.f32 %v2166, %v2167
        %v2169 = vrot.slane %v2168, 2
        %v2170 = vadd.f32 %v2168, %v2169
        %v2171 = vrot.slane %v2170, 1
        %v2172 = vadd.f32 %v2170, %v2171
        %v2173 = vadd.f32 %v2101, %v2109
        %v2174 = vadd.f32 %v2173, %v2117
        %v2175 = vadd.f32 %v2174, %v2125
        %v2176 = vrot.slane %v2175, 4
        %v2177 = vadd.f32 %v2175, %v2176
        %v2178 = vrot.slane %v2177, 2
        %v2179 = vadd.f32 %v2177, %v2178
        %v2180 = vrot.slane %v2179, 1
        %v2181 = vadd.f32 %v2179, %v2180
        %v2182 = vadd.f32 %v2102, %v2110
        %v2183 = vadd.f32 %v2182, %v2118
        %v2184 = vadd.f32 %v2183, %v2126
        %v2185 = vrot.slane %v2184, 4
        %v2186 = vadd.f32 %v2184, %v2185
        %v2187 = vrot.slane %v2186, 2
        %v2188 = vadd.f32 %v2186, %v2187
        %v2189 = vrot.slane %v2188, 1
        %v2190 = vadd.f32 %v2188, %v2189
        %v2191 = vadd.f32 %v2103, %v2111
        %v2192 = vadd.f32 %v2191, %v2119
        %v2193 = vadd.f32 %v2192, %v2127
        %v2194 = vrot.slane %v2193, 4
        %v2195 = vadd.f32 %v2193, %v2194
        %v2196 = vrot.slane %v2195, 2
        %v2197 = vadd.f32 %v2195, %v2196
        %v2198 = vrot.slane %v2197, 1
        %v2199 = vadd.f32 %v2197, %v2198
        %v2200 = vpack.c.bf16 %v2136, %v2136
        %v2201 = vpack.c.bf16 %v2145, %v2145
        %v2202 = vpack.c.bf16 %v2154, %v2154
        %v2203 = vpack.c.bf16 %v2163, %v2163
        %v2204 = vpack.c.bf16 %v2172, %v2172
        %v2205 = vpack.c.bf16 %v2181, %v2181
        %v2206 = vpack.c.bf16 %v2190, %v2190
        %v2207 = vpack.c.bf16 %v2199, %v2199
        %v2216 = vcombine.low %v2200, %v2201
        %v2217 = vcombine.low %v2202, %v2203
        %v2218 = vcombine.low %v2204, %v2205
        %v2219 = vcombine.low %v2206, %v2207
        %v2221 = vunpack.c.l.s4 1966171168
        %v2222 = vunpack.c.0.s8 %v2221
        %v2223 = vlaneseq
        %v2224 = vshrl.u32 %v2223, 7
        %v2225 = vsub.s32 %v2222, %v2224
        %v2226 = vrot.slane %v2216, %v2225
        %v2228 = vunpack.c.l.s4 1966171168
        %v2229 = vunpack.c.0.s8 %v2228
        %v2230 = vlaneseq
        %v2231 = vshrl.u32 %v2230, 7
        %v2232 = vsub.s32 %v2229, %v2231
        %v2233 = vrot.slane %v2217, %v2232
        %v2235 = vunpack.c.l.s4 1966171168
        %v2236 = vunpack.c.0.s8 %v2235
        %v2237 = vlaneseq
        %v2238 = vshrl.u32 %v2237, 7
        %v2239 = vsub.s32 %v2236, %v2238
        %v2240 = vrot.slane %v2218, %v2239
        %v2242 = vunpack.c.l.s4 1966171168
        %v2243 = vunpack.c.0.s8 %v2242
        %v2244 = vlaneseq
        %v2245 = vshrl.u32 %v2244, 7
        %v2246 = vsub.s32 %v2243, %v2245
        %v2247 = vrot.slane %v2219, %v2246
        %v2248 = vcombine.low %v2226, %v2233
        %v2249 = vcombine.low %v2240, %v2247
        %v2251 = vunpack.c.l.s4 1966171168
        %v2252 = vunpack.c.0.s8 %v2251
        %v2253 = vlaneseq
        %v2254 = vshrl.u32 %v2253, 7
        %v2255 = vsub.s32 %v2252, %v2254
        %v2256 = vrot.slane %v2248, %v2255
        %v2258 = vunpack.c.l.s4 1966171168
        %v2259 = vunpack.c.0.s8 %v2258
        %v2260 = vlaneseq
        %v2261 = vshrl.u32 %v2260, 7
        %v2262 = vsub.s32 %v2259, %v2261
        %v2263 = vrot.slane %v2249, %v2262
        %v2264 = vcombine.low %v2256, %v2263
        %vm2266 = vcmask 1040384
        %vm2267 = vsmask.f32 256
        %vm2268 = vmand %vm2266, %vm2267
        %vm2269 = vcmask 1041409
        %vm2270 = vsmask.f32 1280
        %vm2271 = vmand %vm2269, %vm2270
        %vm2272 = vmor %vm2271, %vm2268
        %vm2273 = vcmask 1042434
        %vm2274 = vsmask.f32 2304
        %vm2275 = vmand %vm2273, %vm2274
        %vm2276 = vmor %vm2275, %vm2272
        %vm2277 = vcmask 1043459
        %vm2278 = vsmask.f32 3328
        %vm2279 = vmand %vm2277, %vm2278
        %vm2280 = vmor %vm2279, %vm2276
        %vm2281 = vcmask 1044484
        %vm2282 = vsmask.f32 4352
        %vm2283 = vmand %vm2281, %vm2282
        %vm2284 = vmor %vm2283, %vm2280
        %vm2285 = vcmask 1045509
        %vm2286 = vsmask.f32 5376
        %vm2287 = vmand %vm2285, %vm2286
        %vm2288 = vmor %vm2287, %vm2284
        %vm2289 = vcmask 1046534
        %vm2290 = vsmask.f32 6400
        %vm2291 = vmand %vm2289, %vm2290
        %vm2292 = vmor %vm2291, %vm2288
        %vm2293 = vcmask 1047559
        %vm2294 = vsmask.f32 7424
        %vm2295 = vmand %vm2293, %vm2294
        %vm2296 = vmor %vm2295, %vm2292
        %v2297 = vld [vmem:[%s269] sm:$0xff]
        %v2298 = vsel %vm2296, %v2264, %v2297
        %2299 = vst [vmem:[%s269] sm:$0xff] %v2298
        %v2300 = vmul.f32 %v1859, %v1546
        %v2301 = vmul.f32 %v1861, %v1547
        %v2302 = vmul.f32 %v1932, %v1548
        %v2303 = vmul.f32 %v1934, %v1549
        %v2304 = vmul.f32 %v2005, %v1550
        %v2305 = vmul.f32 %v2007, %v1551
        %v2306 = vmul.f32 %v2078, %v1552
        %v2307 = vmul.f32 %v2080, %v1553
        %v2308 = vmul.f32 %v1863, %v1554
        %v2309 = vmul.f32 %v1865, %v1555
        %v2310 = vmul.f32 %v1936, %v1556
        %v2311 = vmul.f32 %v1938, %v1557
        %v2312 = vmul.f32 %v2009, %v1558
        %v2313 = vmul.f32 %v2011, %v1559
        %v2314 = vmul.f32 %v2082, %v1560
        %v2315 = vmul.f32 %v2084, %v1561
        %v2316 = vmul.f32 %v1869, %v1562
        %v2317 = vmul.f32 %v1871, %v1563
        %v2318 = vmul.f32 %v1942, %v1564
        %v2319 = vmul.f32 %v1944, %v1565
        %v2320 = vmul.f32 %v2015, %v1566
        %v2321 = vmul.f32 %v2017, %v1567
        %v2322 = vmul.f32 %v2088, %v1568
        %v2323 = vmul.f32 %v2090, %v1569
        %v2324 = vmul.f32 %v1873, %v1570
        %v2325 = vmul.f32 %v1875, %v1571
        %v2326 = vmul.f32 %v1946, %v1572
        %v2327 = vmul.f32 %v1948, %v1573
        %v2328 = vmul.f32 %v2019, %v1574
        %v2329 = vmul.f32 %v2021, %v1575
        %v2330 = vmul.f32 %v2092, %v1576
        %v2331 = vmul.f32 %v2094, %v1577
        %v2332 = vadd.f32 %v2300, %v2308
        %v2333 = vadd.f32 %v2332, %v2316
        %v2334 = vadd.f32 %v2333, %v2324
        %v2335 = vrot.slane %v2334, 4
        %v2336 = vadd.f32 %v2334, %v2335
        %v2337 = vrot.slane %v2336, 2
        %v2338 = vadd.f32 %v2336, %v2337
        %v2339 = vrot.slane %v2338, 1
        %v2340 = vadd.f32 %v2338, %v2339
        %v2341 = vadd.f32 %v2301, %v2309
        %v2342 = vadd.f32 %v2341, %v2317
        %v2343 = vadd.f32 %v2342, %v2325
        %v2344 = vrot.slane %v2343, 4
        %v2345 = vadd.f32 %v2343, %v2344
        %v2346 = vrot.slane %v2345, 2
        %v2347 = vadd.f32 %v2345, %v2346
        %v2348 = vrot.slane %v2347, 1
        %v2349 = vadd.f32 %v2347, %v2348
        %v2350 = vadd.f32 %v2302, %v2310
        %v2351 = vadd.f32 %v2350, %v2318
        %v2352 = vadd.f32 %v2351, %v2326
        %v2353 = vrot.slane %v2352, 4
        %v2354 = vadd.f32 %v2352, %v2353
        %v2355 = vrot.slane %v2354, 2
        %v2356 = vadd.f32 %v2354, %v2355
        %v2357 = vrot.slane %v2356, 1
        %v2358 = vadd.f32 %v2356, %v2357
        %v2359 = vadd.f32 %v2303, %v2311
        %v2360 = vadd.f32 %v2359, %v2319
        %v2361 = vadd.f32 %v2360, %v2327
        %v2362 = vrot.slane %v2361, 4
        %v2363 = vadd.f32 %v2361, %v2362
        %v2364 = vrot.slane %v2363, 2
        %v2365 = vadd.f32 %v2363, %v2364
        %v2366 = vrot.slane %v2365, 1
        %v2367 = vadd.f32 %v2365, %v2366
        %v2368 = vadd.f32 %v2304, %v2312
        %v2369 = vadd.f32 %v2368, %v2320
        %v2370 = vadd.f32 %v2369, %v2328
        %v2371 = vrot.slane %v2370, 4
        %v2372 = vadd.f32 %v2370, %v2371
        %v2373 = vrot.slane %v2372, 2
        %v2374 = vadd.f32 %v2372, %v2373
        %v2375 = vrot.slane %v2374, 1
        %v2376 = vadd.f32 %v2374, %v2375
        %v2377 = vadd.f32 %v2305, %v2313
        %v2378 = vadd.f32 %v2377, %v2321
        %v2379 = vadd.f32 %v2378, %v2329
        %v2380 = vrot.slane %v2379, 4
        %v2381 = vadd.f32 %v2379, %v2380
        %v2382 = vrot.slane %v2381, 2
        %v2383 = vadd.f32 %v2381, %v2382
        %v2384 = vrot.slane %v2383, 1
        %v2385 = vadd.f32 %v2383, %v2384
        %v2386 = vadd.f32 %v2306, %v2314
        %v2387 = vadd.f32 %v2386, %v2322
        %v2388 = vadd.f32 %v2387, %v2330
        %v2389 = vrot.slane %v2388, 4
        %v2390 = vadd.f32 %v2388, %v2389
        %v2391 = vrot.slane %v2390, 2
        %v2392 = vadd.f32 %v2390, %v2391
        %v2393 = vrot.slane %v2392, 1
        %v2394 = vadd.f32 %v2392, %v2393
        %v2395 = vadd.f32 %v2307, %v2315
        %v2396 = vadd.f32 %v2395, %v2323
        %v2397 = vadd.f32 %v2396, %v2331
        %v2398 = vrot.slane %v2397, 4
        %v2399 = vadd.f32 %v2397, %v2398
        %v2400 = vrot.slane %v2399, 2
        %v2401 = vadd.f32 %v2399, %v2400
        %v2402 = vrot.slane %v2401, 1
        %v2403 = vadd.f32 %v2401, %v2402
        %v2404 = vpack.c.bf16 %v2340, %v2340
        %v2405 = vpack.c.bf16 %v2349, %v2349
        %v2406 = vpack.c.bf16 %v2358, %v2358
        %v2407 = vpack.c.bf16 %v2367, %v2367
        %v2408 = vpack.c.bf16 %v2376, %v2376
        %v2409 = vpack.c.bf16 %v2385, %v2385
        %v2410 = vpack.c.bf16 %v2394, %v2394
        %v2411 = vpack.c.bf16 %v2403, %v2403
        %v2420 = vcombine.low %v2404, %v2405
        %v2421 = vcombine.low %v2406, %v2407
        %v2422 = vcombine.low %v2408, %v2409
        %v2423 = vcombine.low %v2410, %v2411
        %v2425 = vunpack.c.l.s4 1966171168
        %v2426 = vunpack.c.0.s8 %v2425
        %v2427 = vlaneseq
        %v2428 = vshrl.u32 %v2427, 7
        %v2429 = vsub.s32 %v2426, %v2428
        %v2430 = vrot.slane %v2420, %v2429
        %v2432 = vunpack.c.l.s4 1966171168
        %v2433 = vunpack.c.0.s8 %v2432
        %v2434 = vlaneseq
        %v2435 = vshrl.u32 %v2434, 7
        %v2436 = vsub.s32 %v2433, %v2435
        %v2437 = vrot.slane %v2421, %v2436
        %v2439 = vunpack.c.l.s4 1966171168
        %v2440 = vunpack.c.0.s8 %v2439
        %v2441 = vlaneseq
        %v2442 = vshrl.u32 %v2441, 7
        %v2443 = vsub.s32 %v2440, %v2442
        %v2444 = vrot.slane %v2422, %v2443
        %v2446 = vunpack.c.l.s4 1966171168
        %v2447 = vunpack.c.0.s8 %v2446
        %v2448 = vlaneseq
        %v2449 = vshrl.u32 %v2448, 7
        %v2450 = vsub.s32 %v2447, %v2449
        %v2451 = vrot.slane %v2423, %v2450
        %v2452 = vcombine.low %v2430, %v2437
        %v2453 = vcombine.low %v2444, %v2451
        %v2455 = vunpack.c.l.s4 1966171168
        %v2456 = vunpack.c.0.s8 %v2455
        %v2457 = vlaneseq
        %v2458 = vshrl.u32 %v2457, 7
        %v2459 = vsub.s32 %v2456, %v2458
        %v2460 = vrot.slane %v2452, %v2459
        %v2462 = vunpack.c.l.s4 1966171168
        %v2463 = vunpack.c.0.s8 %v2462
        %v2464 = vlaneseq
        %v2465 = vshrl.u32 %v2464, 7
        %v2466 = vsub.s32 %v2463, %v2465
        %v2467 = vrot.slane %v2453, %v2466
        %v2468 = vcombine.low %v2460, %v2467
        %v2470 = vshll.u32 %v2468, 16
        %vm2473 = vsmask.f32 7938
        %vm2474 = vmand %vm2266, %vm2473
        %vm2475 = vsmask.f32 7942
        %vm2476 = vmand %vm2269, %vm2475
        %vm2477 = vmor %vm2476, %vm2474
        %vm2478 = vsmask.f32 7946
        %vm2479 = vmand %vm2273, %vm2478
        %vm2480 = vmor %vm2479, %vm2477
        %vm2481 = vsmask.f32 7950
        %vm2482 = vmand %vm2277, %vm2481
        %vm2483 = vmor %vm2482, %vm2480
        %vm2484 = vsmask.f32 7954
        %vm2485 = vmand %vm2281, %vm2484
        %vm2486 = vmor %vm2485, %vm2483
        %vm2487 = vsmask.f32 7958
        %vm2488 = vmand %vm2285, %vm2487
        %vm2489 = vmor %vm2488, %vm2486
        %vm2490 = vsmask.f32 7962
        %vm2491 = vmand %vm2289, %vm2490
        %vm2492 = vmor %vm2491, %vm2489
        %vm2493 = vsmask.f32 7966
        %vm2494 = vmand %vm2293, %vm2493
        %vm2495 = vmor %vm2494, %vm2492
        %v2496 = vld [vmem:[%s269] sm:$0xff]
        %v2497 = vsel %vm2495, %v2470, %v2496
        %2498 = vst [vmem:[%s269] sm:$0xff] %v2497
        %s2499 = smul.u32 8, %s21
        %p2500 = scmp.lt.s32.totalorder %s20, 1
        %s2501 = scalar_select %p2500, %s20, 1
        %p2502 = scmp.lt.s32.totalorder %s2499, 7
        %s2503 = scalar_select %p2502, %s2499, 7
        %s2504 = smul.addr %s2501, 8
        %s2505 = sadd.s32 %s2503, %s2504
        %s2506 = scalar_lea.vmem %s4, %s2505
        // Predicated region
        $region41: #{stacked_stn_forward.11} parent=35 // pred_check
          %p2507 = pneg %p147
        $region42: #{stacked_stn_forward.11} parent=35 // pred_check_branch
          %2509 = sbr.rel (%p2507) target = $region44
        $region43: #{stacked_stn_forward.11} parent=35 // pred_region
          %s2510 = smul.u32 8, %s21
        $region44: #{stacked_stn_forward.11} parent=35 // pred_fallthru
          _
      $region36: #{stacked_stn_forward.11} parent=5 // pred_fallthru
        _
      %p2511 = scmp.le.s32.totalorder 2, %s11
      // Predicated region
      $region45: #{stacked_stn_forward.11} parent=5 // pred_check
        %p2512 = pneg %p2511
      $region46: #{stacked_stn_forward.11} parent=5 // pred_check_branch
        %2514 = sbr.rel (%p2512) target = $region48
      $region47: #{stacked_stn_forward.11} parent=5 // pred_region
        %s2515 = ssub.s32 %s11, 2
        // Predicated region
        $region49: #{stacked_stn_forward.11} parent=47 // pred_check
          %p2516 = pneg %p153
        $region50: #{stacked_stn_forward.11} parent=47 // pred_check_branch
          %2518 = sbr.rel (%p2516) target = $region52
        $region51: #{stacked_stn_forward.11} parent=47 // pred_region
          %s2519 = smul.u32 8, %s23
          %p2520 = scmp.lt.s32.totalorder %s22, 1
          %s2521 = scalar_select %p2520, %s22, 1
          %p2522 = scmp.lt.s32.totalorder %s2519, 7
          %s2523 = scalar_select %p2522, %s2519, 7
          %s2524 = smul.addr %s2521, 8
          %s2525 = sadd.s32 %s2523, %s2524
          %s2526 = scalar_lea.vmem %s4, %s2525
        $region52: #{stacked_stn_forward.11} parent=47 // pred_fallthru
          _
      $region48: #{stacked_stn_forward.11} parent=5 // pred_fallthru
        _
    $region6: #{stacked_stn_forward.11} parent=1 // loop_footer
      %s15 = sadd.s32 1, %s11
    $region7: #{stacked_stn_forward.11} parent=1 // loop_footer_branch
      %10 = sbr.rel target = $region3
    $region8: #{stacked_stn_forward.11} parent=1 // loop_exit
      _
    %2527 = vsyncpa [#allocation3], 1
    %s2528 = scalar_lea.sflag [#allocation3], 1
    %2529 = vsyncpa %s2528, 1

</llo_original>
